<compile_context>
chip_gen: v7x
topology: tpu7x:2x2x1
jax: 0.10.0
libtpu: 0.0.40
codegen_flags: <defaults>
</compile_context>

<pallas_src>
import functools

import jax
import jax.numpy as jnp
from jax.experimental import pallas as pl
from jax.experimental.pallas import tpu as pltpu

LANE = 128
SUBLANE = 8
OUT_DIM = 6
N_FEATS = 3
FEAT_PAD = 8                     # 3 polymer feats padded to one sublane group
FEAT_SCALE = (1.0, 10.0, 100.0)  # torch.tensor([1, 10.0, 100.0])

# Conservative per-call activation+weight VMEM budget; fits every generation's
# default scoped VMEM (16 MiB v5e, 32 MiB v6e/v7x, 64 MiB physical on v7x).
VMEM_BUDGET_BYTES = 12 << 20


def _round_up(x, m):
    return (x + m - 1) // m * m


def _cdiv(a, b):
    return -(-a // b)


def _num_tensorcores():
    """Best-effort TensorCores-per-chip (v7x/v4: 2, v5e/v6e: 1)."""
    try:
        kind = jax.devices()[0].device_kind.lower()
    except Exception:
        return 1
    return 2 if ("v7" in kind or "v4" in kind) else 1


def _silu(x):
    # sigmoid -> EUP slot; the multiply is the only VALU cost.  Kept in f32 so
    # the elementwise path is v5e-safe even when the weight slabs are bf16.
    return x * jax.nn.sigmoid(x)


def _fnn_kernel(x_ref, p1_ref, p2_ref, o_ref, *, lay):
    """4x (Linear [+ SiLU]) on one (TB, IPF) batch tile.

    Weights come from two VMEM-resident slabs (constant index_map):
      p1: fused layer-1 weight (embedding rows + scale-folded feature rows) + b1
      p2: layers 2..4 weights + biases.
    Eval-mode Dropout layers are identities.
    """
    IPF = lay["IPF"]
    D1, D2, D3, D4 = lay["D1"], lay["D2"], lay["D3"], lay["D4"]
    o1, o2 = lay["off1"], lay["off2"]

    def mm(x, w):
        # bf16 slab: cast the activation just before the MXU push, f32 accumulate.
        return jnp.dot(x.astype(w.dtype), w, preferred_element_type=jnp.float32)

    def s2(name, nrows, ncols):
        a = o2[name]
        return p2_ref[a:a + nrows, :ncols]

    x = x_ref[...]                                             # (TB, IPF) f32

    # Layer 1: fused [emb | feats] @ [w1_emb ; w1_feat/scale] + b1, SiLU.
    h = mm(x, p1_ref[o1["w1"]:o1["w1"] + IPF, :D1])
    h = h + p1_ref[o1["b1"]:o1["b1"] + 1, :D1].astype(jnp.float32)
    h = _silu(h)

    # Layer 2: Linear + SiLU   (+ eval-mode Dropout = id)
    h = mm(h, s2("w2", D1, D2)) + s2("b2", 1, D2).astype(jnp.float32)
    h = _silu(h)

    # Layer 3: Linear + SiLU   (+ Dropout = id)
    h = mm(h, s2("w3", D2, D3)) + s2("b3", 1, D3).astype(jnp.float32)
    h = _silu(h)

    # Layer 4: Linear(hidden -> 6), lane-dense (TB, 128) unmasked store;
    # only the first 6 columns are meaningful, padding columns are exact zero.
    out = mm(h, s2("w4", D3, D4)) + s2("b4", 1, D4).astype(jnp.float32)
    o_ref[...] = out.astype(o_ref.dtype)


def init_params(key, input_dim, shared_layer_dim, hidden_dim):
    """Weights stored (in, out) so the kernel computes y = x @ W + b."""
    input_dim_fnn = input_dim + N_FEATS
    dims = [(input_dim_fnn, shared_layer_dim),
            (shared_layer_dim, hidden_dim),
            (hidden_dim, hidden_dim),
            (hidden_dim, OUT_DIM)]
    params = {}
    for i, (fan_in, fan_out) in enumerate(dims, start=1):
        key, kw, kb = jax.random.split(key, 3)
        bound = 1.0 / jnp.sqrt(fan_in)
        params[f"w{i}"] = jax.random.uniform(
            kw, (fan_in, fan_out), jnp.float32, -bound, bound)
        params[f"b{i}"] = jax.random.uniform(
            kb, (1, fan_out), jnp.float32, -bound, bound)
    return params


def pack_params(params, input_dim, *, param_dtype=jnp.float32):
    """Pack weights/biases into two width-grouped slabs (two one-shot DMAs).

    slab1 (width D1): fused layer-1 weight (embedding rows, then scale-folded
    feature rows) and b1.  slab2 (width max(D2,D3,D4)): w2,b2,w3,b3,w4,b4.
    The 1/[1,10,100] feature normalization is folded into the w1 feature rows.
    Use param_dtype=jnp.bfloat16 on v6e/v7x to halve weight DMA bytes / VMEM.
    """
    w1 = params["w1"]
    assert w1.shape[0] == input_dim + N_FEATS
    shared = w1.shape[1]
    hidden = params["w2"].shape[1]
    h3 = params["w3"].shape[1]

    IP = _round_up(input_dim, SUBLANE)
    IPF = IP + FEAT_PAD
    D1 = _round_up(shared, LANE)
    D2 = _round_up(hidden, LANE)
    D3 = _round_up(h3, LANE)
    D4 = _round_up(OUT_DIM, LANE)            # 128

    inv_scale = jnp.asarray([1.0 / s for s in FEAT_SCALE], jnp.float32)[:, None]
    w1e = w1[:input_dim, :]
    w1f = w1[input_dim:input_dim + N_FEATS, :] * inv_scale   # fold /scale

    # Fused layer-1 weight: rows [0:input_dim) = w1e, [IP:IP+3) = w1f/scale.
    w1c = jnp.zeros((IPF, shared), jnp.float32)
    w1c = w1c.at[:input_dim, :].set(w1e).at[IP:IP + N_FEATS, :].set(w1f)

    def pad_to(a, nrows, ncols):
        r, c = a.shape
        return jnp.pad(a.astype(jnp.float32), ((0, nrows - r), (0, ncols - c)))

    # --- slab 1: width D1 (no cross-layer width padding) ---
    off1 = {"w1": 0, "b1": IPF}
    slab1 = jnp.concatenate(
        [pad_to(w1c, IPF, D1), pad_to(params["b1"], SUBLANE, D1)], axis=0)

    # --- slab 2: width max(D2, D3, D4) ---
    W2 = max(D2, D3, D4)
    sections = [
        ("w2", params["w2"], D1),
        ("b2", params["b2"], SUBLANE),
        ("w3", params["w3"], D2),
        ("b3", params["b3"], SUBLANE),
        ("w4", params["w4"], D3),
        ("b4", params["b4"], SUBLANE),
    ]
    off2, blocks, cur = {}, [], 0
    for name, a, nrows in sections:
        off2[name] = cur
        blocks.append(pad_to(a, nrows, W2))
        cur += nrows
    slab2 = jnp.concatenate(blocks, axis=0)

    lay = dict(IP=IP, IPF=IPF, D1=D1, D2=D2, D3=D3, D4=D4,
               W1=D1, W2=W2, rows1=int(slab1.shape[0]), rows2=cur,
               off1=off1, off2=off2)
    return slab1.astype(param_dtype), slab2.astype(param_dtype), lay


def one_output_fnn_forward(batch, slab1, slab2, lay, *, block_b=1024,
                           num_tensorcores=None):
    """Forward pass matching OneOutputFNN.forward (eval mode)."""
    emb = batch["polymer_embedding"].astype(jnp.float32)        # (B, input_dim)
    feats = batch["polymer_feats"][:, :N_FEATS].astype(jnp.float32)  # (B, 3)

    B, input_dim = emb.shape
    IP, IPF, D4 = lay["IP"], lay["IPF"], lay["D4"]
    assert IP >= input_dim

    if num_tensorcores is None:
        num_tensorcores = _num_tensorcores()

    # ---- batch-tile selection ----
    B8 = _round_up(B, SUBLANE)
    TB = min(_round_up(block_b, SUBLANE), B8)
    nsteps = _cdiv(B8, TB)
    if num_tensorcores >= 2 and B8 > SUBLANE:
        # v7x: keep an even number of balanced "parallel" grid steps so both
        # TensorCores stay busy; on 1-TC chips fewer, bigger steps win.
        nsteps = max(2, nsteps + (nsteps % 2))
        TB = _round_up(_cdiv(B8, nsteps), SUBLANE)

    slab_bytes = (slab1.size * slab1.dtype.itemsize
                  + slab2.size * slab2.dtype.itemsize)

    def vmem_need(tb):
        # double-buffered input + output tiles, single-buffered weight slabs.
        return 2 * tb * IPF * 4 + 2 * tb * D4 * 4 + slab_bytes

    while TB > SUBLANE and vmem_need(TB) > VMEM_BUDGET_BYTES:
        TB = _round_up(TB // 2, SUBLANE)
    B_pad = _round_up(B8, TB)

    need = vmem_need(TB)
    vmem_limit = int(min(2 * need, 48 << 20)) if need > (8 << 20) else None

    # ---- cheap pad-only wrapper ops (normalization lives in the slab) ----
    x = jnp.concatenate(
        [jnp.pad(emb, ((0, 0), (0, IP - input_dim))),
         jnp.pad(feats, ((0, 0), (0, FEAT_PAD - N_FEATS)))], axis=-1)
    x = jnp.pad(x, ((0, B_pad - B), (0, 0)))                    # (B_pad, IPF)

    kernel = functools.partial(_fnn_kernel, lay=lay)
    grid = (B_pad // TB,)

    def build(single_buffer_weights):
        wkw = ({"pipeline_mode": pl.Buffered(1)}
               if single_buffer_weights else {})
        return pl.pallas_call(
            kernel,
            grid=grid,
            in_specs=[
                # activation tile, pipelined over the batch
                pl.BlockSpec((TB, IPF), lambda i: (i, 0)),
                # weight slabs: constant index_map -> fetched once, VMEM-resident
                pl.BlockSpec((lay["rows1"], lay["W1"]), lambda i: (0, 0), **wkw),
                pl.BlockSpec((lay["rows2"], lay["W2"]), lambda i: (0, 0), **wkw),
            ],
            out_specs=pl.BlockSpec((TB, D4), lambda i: (i, 0)),  # lane-dense
            out_shape=jax.ShapeDtypeStruct((B_pad, D4), jnp.float32),
            compiler_params=pltpu.CompilerParams(
                dimension_semantics=("parallel",),
                vmem_limit_bytes=vmem_limit),
        )

    try:
        out = build(True)(x, slab1, slab2)
    except Exception:
        # TODO(synk): pl.Buffered(1) single-buffering of the resident weight
        # slabs is purely a VMEM-footprint optimization; fall back to default
        # double buffering if this JAX build rejects buffer_count == 1.
        out = build(False)(x, slab1, slab2)

    return out[:B, :OUT_DIM]


if __name__ == "__main__":
    input_dim = 32
    shared_layer_dim = 64
    hidden_dim = 32
    B = 200   # not a multiple of 8 or 128 -> exercises padding / tile logic

    key = jax.random.PRNGKey(0)
    k_emb, k_feat, k_par = jax.random.split(key, 3)

    batch = {
        "polymer_embedding": jax.random.normal(k_emb, (B, input_dim), jnp.float32),
        "polymer_feats": jax.random.normal(k_feat, (B, 5), jnp.float32),
    }
    params = init_params(k_par, input_dim, shared_layer_dim, hidden_dim)

    # Literal plain-JAX reference (eval-mode dropout = identity).
    x = jnp.concatenate(
        [batch["polymer_embedding"],
         batch["polymer_feats"][:, :N_FEATS]
         / jnp.array(FEAT_SCALE, jnp.float32)],
        axis=-1)
    h = x
    for i in range(1, 4):
        h = h @ params[f"w{i}"] + params[f"b{i}"]
        h = h * jax.nn.sigmoid(h)
    ref = h @ params["w4"] + params["b4"]

    # f32 weight slabs: strict numerical check.
    slab1, slab2, lay = pack_params(params, input_dim)
    out = one_output_fnn_forward(batch, slab1, slab2, lay)
    out = jax.block_until_ready(out)
    assert out.shape == (B, OUT_DIM)
    err = float(jnp.max(jnp.abs(out - ref)))
    assert jnp.allclose(out, ref, atol=2e-5, rtol=2e-5), f"f32 max abs err = {err}"

    # bf16 weight slabs (recommended on v6e/v7x): half the weight DMA / VMEM,
    # MXU-native operands; f32 accumulation + f32 SiLU, looser tolerance.
    slab1_bf, slab2_bf, lay_bf = pack_params(
        params, input_dim, param_dtype=jnp.bfloat16)
    out_bf = one_output_fnn_forward(batch, slab1_bf, slab2_bf, lay_bf)
    out_bf = jax.block_until_ready(out_bf)
    err_bf = float(jnp.max(jnp.abs(out_bf - ref)))
    assert jnp.allclose(out_bf, ref, atol=8e-2, rtol=8e-2), \
        f"bf16 max abs err = {err_bf}"

    print("KERNEL_OK")
</pallas_src>

<mosaic_0001>
module attributes {stable_mosaic.version = 11 : i64} {
  func.func @_fnn_kernel(%arg0: i32, %arg1: memref<200x40xf32, #tpu.memory_space<vmem>>, %arg2: memref<48x128xf32, #tpu.memory_space<vmem>>, %arg3: memref<408x128xf32, #tpu.memory_space<vmem>>, %arg4: memref<200x128xf32, #tpu.memory_space<vmem>>) attributes {dimension_semantics = [#tpu.dimension_semantics<parallel>], iteration_bounds = array<i64: 1>, scalar_prefetch = 0 : i64, scratch_operands = 0 : i64, tpu.core_type = #tpu.core_type<tc>, window_params = [{transform_indices = @transform_0, window_bounds = array<i64: 200, 40>}, {pipeline_mode = #tpu.pipeline_mode<synchronous>, transform_indices = @transform_1, window_bounds = array<i64: 48, 128>}, {pipeline_mode = #tpu.pipeline_mode<synchronous>, transform_indices = @transform_2, window_bounds = array<i64: 408, 128>}, {transform_indices = @transform_3, window_bounds = array<i64: 200, 128>}]} {
    %c0 = arith.constant 0 : index
    %c0_0 = arith.constant 0 : index
    %0 = vector.load %arg1[%c0, %c0_0] : memref<200x40xf32, #tpu.memory_space<vmem>>, vector<200x40xf32>
    %c0_1 = arith.constant 0 : index
    %c0_2 = arith.constant 0 : index
    %1 = vector.load %arg2[%c0_1, %c0_2] : memref<48x128xf32, #tpu.memory_space<vmem>>, vector<40x128xf32>
    %cst = arith.constant dense<0.000000e+00> : vector<200x128xf32>
    %2 = tpu.matmul %0, %1, %cst {dimension_numbers = #tpu.dot_dimension_numbers<[1], [0], [0], [1], [0, 0, 1, 1], [], []>} : vector<200x40xf32>, vector<40x128xf32>, vector<200x128xf32> -> vector<200x128xf32>
    %c40 = arith.constant 40 : index
    %c0_3 = arith.constant 0 : index
    %3 = vector.load %arg2[%c40, %c0_3] : memref<48x128xf32, #tpu.memory_space<vmem>>, vector<1x128xf32>
    %4 = vector.broadcast %3 : vector<1x128xf32> to vector<200x128xf32>
    %5 = arith.addf %2, %4 : vector<200x128xf32>
    %6 = arith.negf %5 : vector<200x128xf32>
    %7 = math.exp %6 : vector<200x128xf32>
    %cst_4 = arith.constant 1.000000e+00 : f32
    %8 = vector.broadcast %cst_4 : f32 to vector<200x128xf32>
    %9 = arith.addf %8, %7 : vector<200x128xf32>
    %10 = arith.divf %8, %9 : vector<200x128xf32>
    %11 = arith.mulf %5, %10 : vector<200x128xf32>
    %c0_5 = arith.constant 0 : index
    %c0_6 = arith.constant 0 : index
    %12 = vector.load %arg3[%c0_5, %c0_6] : memref<408x128xf32, #tpu.memory_space<vmem>>, vector<128x128xf32>
    %cst_7 = arith.constant dense<0.000000e+00> : vector<200x128xf32>
    %13 = tpu.matmul %11, %12, %cst_7 {dimension_numbers = #tpu.dot_dimension_numbers<[1], [0], [0], [1], [0, 0, 1, 1], [], []>} : vector<200x128xf32>, vector<128x128xf32>, vector<200x128xf32> -> vector<200x128xf32>
    %c128 = arith.constant 128 : index
    %c0_8 = arith.constant 0 : index
    %14 = vector.load %arg3[%c128, %c0_8] : memref<408x128xf32, #tpu.memory_space<vmem>>, vector<1x128xf32>
    %15 = vector.broadcast %14 : vector<1x128xf32> to vector<200x128xf32>
    %16 = arith.addf %13, %15 : vector<200x128xf32>
    %17 = arith.negf %16 : vector<200x128xf32>
    %18 = math.exp %17 : vector<200x128xf32>
    %cst_9 = arith.constant 1.000000e+00 : f32
    %19 = vector.broadcast %cst_9 : f32 to vector<200x128xf32>
    %20 = arith.addf %19, %18 : vector<200x128xf32>
    %21 = arith.divf %19, %20 : vector<200x128xf32>
    %22 = arith.mulf %16, %21 : vector<200x128xf32>
    %c136 = arith.constant 136 : index
    %c0_10 = arith.constant 0 : index
    %23 = vector.load %arg3[%c136, %c0_10] : memref<408x128xf32, #tpu.memory_space<vmem>>, vector<128x128xf32>
    %cst_11 = arith.constant dense<0.000000e+00> : vector<200x128xf32>
    %24 = tpu.matmul %22, %23, %cst_11 {dimension_numbers = #tpu.dot_dimension_numbers<[1], [0], [0], [1], [0, 0, 1, 1], [], []>} : vector<200x128xf32>, vector<128x128xf32>, vector<200x128xf32> -> vector<200x128xf32>
    %c264 = arith.constant 264 : index
    %c0_12 = arith.constant 0 : index
    %25 = vector.load %arg3[%c264, %c0_12] : memref<408x128xf32, #tpu.memory_space<vmem>>, vector<1x128xf32>
    %26 = vector.broadcast %25 : vector<1x128xf32> to vector<200x128xf32>
    %27 = arith.addf %24, %26 : vector<200x128xf32>
    %28 = arith.negf %27 : vector<200x128xf32>
    %29 = math.exp %28 : vector<200x128xf32>
    %cst_13 = arith.constant 1.000000e+00 : f32
    %30 = vector.broadcast %cst_13 : f32 to vector<200x128xf32>
    %31 = arith.addf %30, %29 : vector<200x128xf32>
    %32 = arith.divf %30, %31 : vector<200x128xf32>
    %33 = arith.mulf %27, %32 : vector<200x128xf32>
    %c272 = arith.constant 272 : index
    %c0_14 = arith.constant 0 : index
    %34 = vector.load %arg3[%c272, %c0_14] : memref<408x128xf32, #tpu.memory_space<vmem>>, vector<128x128xf32>
    %cst_15 = arith.constant dense<0.000000e+00> : vector<200x128xf32>
    %35 = tpu.matmul %33, %34, %cst_15 {dimension_numbers = #tpu.dot_dimension_numbers<[1], [0], [0], [1], [0, 0, 1, 1], [], []>} : vector<200x128xf32>, vector<128x128xf32>, vector<200x128xf32> -> vector<200x128xf32>
    %c400 = arith.constant 400 : index
    %c0_16 = arith.constant 0 : index
    %36 = vector.load %arg3[%c400, %c0_16] : memref<408x128xf32, #tpu.memory_space<vmem>>, vector<1x128xf32>
    %37 = vector.broadcast %36 : vector<1x128xf32> to vector<200x128xf32>
    %38 = arith.addf %35, %37 : vector<200x128xf32>
    %c0_17 = arith.constant 0 : index
    %c0_18 = arith.constant 0 : index
    %39 = vector.load %arg4[%c0_17, %c0_18] : memref<200x128xf32, #tpu.memory_space<vmem>>, vector<200x128xf32>
    tpu.vector_store %arg4[%c0_17, %c0_18], %38 {strides = array<i32>} : memref<200x128xf32, #tpu.memory_space<vmem>>, vector<200x128xf32>,
    return
  }
  func.func @transform_0(%arg0: i32) -> (i32, i32) {
    %c0_i32 = arith.constant 0 : i32
    %c0_i32_0 = arith.constant 0 : i32
    return %arg0, %c0_i32 : i32, i32
  }
  func.func @transform_1(%arg0: i32) -> (i32, i32) {
    %c0_i32 = arith.constant 0 : i32
    %c0_i32_0 = arith.constant 0 : i32
    %c0_i32_1 = arith.constant 0 : i32
    return %c0_i32, %c0_i32_0 : i32, i32
  }
  func.func @transform_2(%arg0: i32) -> (i32, i32) {
    %c0_i32 = arith.constant 0 : i32
    %c0_i32_0 = arith.constant 0 : i32
    %c0_i32_1 = arith.constant 0 : i32
    return %c0_i32, %c0_i32_0 : i32, i32
  }
  func.func @transform_3(%arg0: i32) -> (i32, i32) {
    %c0_i32 = arith.constant 0 : i32
    %c0_i32_0 = arith.constant 0 : i32
    return %arg0, %c0_i32 : i32, i32
  }
}

module attributes {stable_mosaic.version = 11 : i64} {
  func.func @_fnn_kernel(%arg0: i32, %arg1: memref<200x40xf32, #tpu.memory_space<vmem>>, %arg2: memref<48x128xf32, #tpu.memory_space<vmem>>, %arg3: memref<408x128xf32, #tpu.memory_space<vmem>>, %arg4: memref<200x128xf32, #tpu.memory_space<vmem>>) attributes {dimension_semantics = [#tpu.dimension_semantics<parallel>], iteration_bounds = array<i64: 1>, scalar_prefetch = 0 : i64, scratch_operands = 0 : i64, tpu.core_type = #tpu.core_type<tc>, window_params = [{transform_indices = @transform_0, window_bounds = array<i64: 200, 40>}, {pipeline_mode = #tpu.pipeline_mode<synchronous>, transform_indices = @transform_1, window_bounds = array<i64: 48, 128>}, {pipeline_mode = #tpu.pipeline_mode<synchronous>, transform_indices = @transform_2, window_bounds = array<i64: 408, 128>}, {transform_indices = @transform_3, window_bounds = array<i64: 200, 128>}]} {
    %c0 = arith.constant 0 : index
    %c0_0 = arith.constant 0 : index
    %0 = vector.load %arg1[%c0, %c0_0] : memref<200x40xf32, #tpu.memory_space<vmem>>, vector<200x40xf32>
    %c0_1 = arith.constant 0 : index
    %c0_2 = arith.constant 0 : index
    %1 = vector.load %arg2[%c0_1, %c0_2] : memref<48x128xf32, #tpu.memory_space<vmem>>, vector<40x128xf32>
    %cst = arith.constant dense<0.000000e+00> : vector<200x128xf32>
    %2 = tpu.matmul %0, %1, %cst {dimension_numbers = #tpu.dot_dimension_numbers<[1], [0], [0], [1], [0, 0, 1, 1], [], []>} : vector<200x40xf32>, vector<40x128xf32>, vector<200x128xf32> -> vector<200x128xf32>
    %c40 = arith.constant 40 : index
    %c0_3 = arith.constant 0 : index
    %3 = vector.load %arg2[%c40, %c0_3] : memref<48x128xf32, #tpu.memory_space<vmem>>, vector<1x128xf32>
    %4 = vector.broadcast %3 : vector<1x128xf32> to vector<200x128xf32>
    %5 = arith.addf %2, %4 : vector<200x128xf32>
    %6 = arith.negf %5 : vector<200x128xf32>
    %7 = math.exp %6 : vector<200x128xf32>
    %cst_4 = arith.constant 1.000000e+00 : f32
    %8 = vector.broadcast %cst_4 : f32 to vector<200x128xf32>
    %9 = arith.addf %8, %7 : vector<200x128xf32>
    %10 = arith.divf %8, %9 : vector<200x128xf32>
    %11 = arith.mulf %5, %10 : vector<200x128xf32>
    %c0_5 = arith.constant 0 : index
    %c0_6 = arith.constant 0 : index
    %12 = vector.load %arg3[%c0_5, %c0_6] : memref<408x128xf32, #tpu.memory_space<vmem>>, vector<128x128xf32>
    %cst_7 = arith.constant dense<0.000000e+00> : vector<200x128xf32>
    %13 = tpu.matmul %11, %12, %cst_7 {dimension_numbers = #tpu.dot_dimension_numbers<[1], [0], [0], [1], [0, 0, 1, 1], [], []>} : vector<200x128xf32>, vector<128x128xf32>, vector<200x128xf32> -> vector<200x128xf32>
    %c128 = arith.constant 128 : index
    %c0_8 = arith.constant 0 : index
    %14 = vector.load %arg3[%c128, %c0_8] : memref<408x128xf32, #tpu.memory_space<vmem>>, vector<1x128xf32>
    %15 = vector.broadcast %14 : vector<1x128xf32> to vector<200x128xf32>
    %16 = arith.addf %13, %15 : vector<200x128xf32>
    %17 = arith.negf %16 : vector<200x128xf32>
    %18 = math.exp %17 : vector<200x128xf32>
    %cst_9 = arith.constant 1.000000e+00 : f32
    %19 = vector.broadcast %cst_9 : f32 to vector<200x128xf32>
    %20 = arith.addf %19, %18 : vector<200x128xf32>
    %21 = arith.divf %19, %20 : vector<200x128xf32>
    %22 = arith.mulf %16, %21 : vector<200x128xf32>
    %c136 = arith.constant 136 : index
    %c0_10 = arith.constant 0 : index
    %23 = vector.load %arg3[%c136, %c0_10] : memref<408x128xf32, #tpu.memory_space<vmem>>, vector<128x128xf32>
    %cst_11 = arith.constant dense<0.000000e+00> : vector<200x128xf32>
    %24 = tpu.matmul %22, %23, %cst_11 {dimension_numbers = #tpu.dot_dimension_numbers<[1], [0], [0], [1], [0, 0, 1, 1], [], []>} : vector<200x128xf32>, vector<128x128xf32>, vector<200x128xf32> -> vector<200x128xf32>
    %c264 = arith.constant 264 : index
    %c0_12 = arith.constant 0 : index
    %25 = vector.load %arg3[%c264, %c0_12] : memref<408x128xf32, #tpu.memory_space<vmem>>, vector<1x128xf32>
    %26 = vector.broadcast %25 : vector<1x128xf32> to vector<200x128xf32>
    %27 = arith.addf %24, %26 : vector<200x128xf32>
    %28 = arith.negf %27 : vector<200x128xf32>
    %29 = math.exp %28 : vector<200x128xf32>
    %cst_13 = arith.constant 1.000000e+00 : f32
    %30 = vector.broadcast %cst_13 : f32 to vector<200x128xf32>
    %31 = arith.addf %30, %29 : vector<200x128xf32>
    %32 = arith.divf %30, %31 : vector<200x128xf32>
    %33 = arith.mulf %27, %32 : vector<200x128xf32>
    %c272 = arith.constant 272 : index
    %c0_14 = arith.constant 0 : index
    %34 = vector.load %arg3[%c272, %c0_14] : memref<408x128xf32, #tpu.memory_space<vmem>>, vector<128x128xf32>
    %cst_15 = arith.constant dense<0.000000e+00> : vector<200x128xf32>
    %35 = tpu.matmul %33, %34, %cst_15 {dimension_numbers = #tpu.dot_dimension_numbers<[1], [0], [0], [1], [0, 0, 1, 1], [], []>} : vector<200x128xf32>, vector<128x128xf32>, vector<200x128xf32> -> vector<200x128xf32>
    %c400 = arith.constant 400 : index
    %c0_16 = arith.constant 0 : index
    %36 = vector.load %arg3[%c400, %c0_16] : memref<408x128xf32, #tpu.memory_space<vmem>>, vector<1x128xf32>
    %37 = vector.broadcast %36 : vector<1x128xf32> to vector<200x128xf32>
    %38 = arith.addf %35, %37 : vector<200x128xf32>
    %c0_17 = arith.constant 0 : index
    %c0_18 = arith.constant 0 : index
    %39 = vector.load %arg4[%c0_17, %c0_18] : memref<200x128xf32, #tpu.memory_space<vmem>>, vector<200x128xf32>
    tpu.vector_store %arg4[%c0_17, %c0_18], %38 {strides = array<i32>} : memref<200x128xf32, #tpu.memory_space<vmem>>, vector<200x128xf32>,
    return
  }
  func.func @transform_0(%arg0: i32) -> (i32, i32) {
    %c0_i32 = arith.constant 0 : i32
    %c0_i32_0 = arith.constant 0 : i32
    return %arg0, %c0_i32 : i32, i32
  }
  func.func @transform_1(%arg0: i32) -> (i32, i32) {
    %c0_i32 = arith.constant 0 : i32
    %c0_i32_0 = arith.constant 0 : i32
    %c0_i32_1 = arith.constant 0 : i32
    return %c0_i32, %c0_i32_0 : i32, i32
  }
  func.func @transform_2(%arg0: i32) -> (i32, i32) {
    %c0_i32 = arith.constant 0 : i32
    %c0_i32_0 = arith.constant 0 : i32
    %c0_i32_1 = arith.constant 0 : i32
    return %c0_i32, %c0_i32_0 : i32, i32
  }
  func.func @transform_3(%arg0: i32) -> (i32, i32) {
    %c0_i32 = arith.constant 0 : i32
    %c0_i32_0 = arith.constant 0 : i32
    return %arg0, %c0_i32 : i32, i32
  }
}

</mosaic_0001>

<llo_original>
// kernel: tpu_custom_call.1
$region0: #{tpu_custom_call.1}
  #allocation0 [shape = 'u32[]', space=smem, size = 0x4, offset = 0x4, fixed_abs, tag = 'smem constant byte address 0x4 - core index']
  #allocation1 [shape = 'u32[144,128]{1,0:T(1,128)}', space=vmem, size = 0x12000, scoped, tag = 'internal scratch']
  %s0 = inlined_call_operand.vmem [shape: f32[200,40], index: 0, kind: input, shape index: {}]
  %s1 = inlined_call_operand.vmem [shape: f32[48,128], index: 1, kind: input, shape index: {}]
  %s2 = inlined_call_operand.hbm [shape: f32[408,128], index: 2, kind: input, shape index: {}]
  %s3 = inlined_call_operand.hbm [shape: f32[200,128], index: 3, kind: output, shape index: {}]
  %s4 = sld [smem:[#allocation0]]
  $region26: #{tpu_custom_call.1} parent=0
    _
  %s6 = ssub.s32 1, %s4
  %s7 = scalar_select 0, %s6, %s4
  $region1: #{tpu_custom_call.1} parent=0
    #allocation2 [shape = 'u8[208896]{0}', space=vmem, size = 0x33000, scoped, tag = 'input window, operand 2, single buffered']
    #allocation3 [shape = 's32[1]{0}', space=sflag, size = 0x4, scoped, tag = 'scoped memory for tpu_custom_call.1']
    #allocation4 [shape = 's32[1]{0}', space=sflag, size = 0x4, scoped, tag = 'scoped memory for tpu_custom_call.1']
    #allocation5 [shape = 'u8[102400]{0}', space=vmem, size = 0x19000, scoped, tag = 'output window, operand 0, single buffered']
    %8 = vsyncpa [#allocation3], 0
    %9 = vsyncpa [#allocation4], 0
    // Predicated region
    $region2: #{tpu_custom_call.1} parent=1 // pred_check
      _
    $region3: #{tpu_custom_call.1} parent=1 // pred_check_branch
      %11 = sbr.rel (0) target = $region5
    $region4: #{tpu_custom_call.1} parent=1 // pred_region
      _
    $region5: #{tpu_custom_call.1} parent=1 // pred_fallthru
      _
    // Predicated region
    $region6: #{tpu_custom_call.1} parent=1 // pred_check
      _
    $region7: #{tpu_custom_call.1} parent=1 // pred_check_branch
      %13 = sbr.rel (0) target = $region9
    $region8: #{tpu_custom_call.1} parent=1 // pred_region
      _
    $region9: #{tpu_custom_call.1} parent=1 // pred_fallthru
      _
    // Predicated region
    $region10: #{tpu_custom_call.1} parent=1 // pred_check
      _
    $region11: #{tpu_custom_call.1} parent=1 // pred_check_branch
      %15 = sbr.rel (0) target = $region13
    $region12: #{tpu_custom_call.1} parent=1 // pred_region
      %s17 = ssub.s32 6528, 6528
      %18 = vsyncadd [#allocation3], %s17
      %s19 = sshll.u32 [#allocation2], 4
      %s20 = int_to_ptr.vmem [resolvable:$true] %s19
      %25 = dma.hbm_to_vmem [thread:$0]  %s2, 6528, %s20, [#allocation3], 128, 128, 8
    $region13: #{tpu_custom_call.1} parent=1 // pred_fallthru
      _
    // Predicated region
    $region14: #{tpu_custom_call.1} parent=1 // pred_check
      _
    $region15: #{tpu_custom_call.1} parent=1 // pred_check_branch
      %27 = sbr.rel (0) target = $region17
    $region16: #{tpu_custom_call.1} parent=1 // pred_region
      %28 = dma.done [#allocation3], 6528
    $region17: #{tpu_custom_call.1} parent=1 // pred_fallthru
      _
    %v29 = vld [vmem:[%s0] sm:$0xff]
    %v30 = vld [vmem:[%s0 + $0x8] sm:$0xff]
    %v31 = vld [vmem:[%s0 + $0x10] sm:$0xff]
    %v32 = vld [vmem:[%s0 + $0x18] sm:$0xff]
    %v33 = vld [vmem:[%s0 + $0x20] sm:$0xff]
    %v34 = vld [vmem:[%s0 + $0x28] sm:$0xff]
    %v35 = vld [vmem:[%s0 + $0x30] sm:$0xff]
    %v36 = vld [vmem:[%s0 + $0x38] sm:$0xff]
    %v37 = vld [vmem:[%s0 + $0x40] sm:$0xff]
    %v38 = vld [vmem:[%s0 + $0x48] sm:$0xff]
    %v39 = vld [vmem:[%s0 + $0x50] sm:$0xff]
    %v40 = vld [vmem:[%s0 + $0x58] sm:$0xff]
    %v41 = vld [vmem:[%s0 + $0x60] sm:$0xff]
    %v42 = vld [vmem:[%s0 + $0x68] sm:$0xff]
    %v43 = vld [vmem:[%s0 + $0x70] sm:$0xff]
    %v44 = vld [vmem:[%s0 + $0x78] sm:$0xff]
    %v45 = vld [vmem:[%s0 + $0x80] sm:$0xff]
    %v46 = vld [vmem:[%s0 + $0x88] sm:$0xff]
    %v47 = vld [vmem:[%s0 + $0x90] sm:$0xff]
    %v48 = vld [vmem:[%s0 + $0x98] sm:$0xff]
    %v49 = vld [vmem:[%s0 + $0xa0] sm:$0xff]
    %v50 = vld [vmem:[%s0 + $0xa8] sm:$0xff]
    %v51 = vld [vmem:[%s0 + $0xb0] sm:$0xff]
    %v52 = vld [vmem:[%s0 + $0xb8] sm:$0xff]
    %v53 = vld [vmem:[%s0 + $0xc0] sm:$0xff]
    %v54 = vld [vmem:[%s1] sm:$0xff]
    %v55 = vld [vmem:[%s1 + $0x8] sm:$0xff]
    %v56 = vld [vmem:[%s1 + $0x10] sm:$0xff]
    %v57 = vld [vmem:[%s1 + $0x18] sm:$0xff]
    %v58 = vld [vmem:[%s1 + $0x20] sm:$0xff]
    %v59 = vld [vmem:[%s1 + $0x28] sm:$0x1]
    %v60 = vlaneseq
    %v61 = vshrl.u32 %v60, 7
    %v62 = vsub.s32 0, %v61
    %v63 = vrot.slane %v59, %v62
    %vm64 = vcmask 326656
    %v66 = vsel %vm64, %v29, 0
    %v69 = vsel %vm64, %v30, 0
    %v72 = vsel %vm64, %v31, 0
    %v75 = vsel %vm64, %v32, 0
    %v78 = vsel %vm64, %v33, 0
    %v81 = vsel %vm64, %v34, 0
    %v84 = vsel %vm64, %v35, 0
    %v87 = vsel %vm64, %v36, 0
    %v90 = vsel %vm64, %v37, 0
    %v93 = vsel %vm64, %v38, 0
    %v96 = vsel %vm64, %v39, 0
    %v99 = vsel %vm64, %v40, 0
    %v102 = vsel %vm64, %v41, 0
    %v105 = vsel %vm64, %v42, 0
    %v108 = vsel %vm64, %v43, 0
    %v111 = vsel %vm64, %v44, 0
    %v114 = vsel %vm64, %v45, 0
    %v117 = vsel %vm64, %v46, 0
    %v120 = vsel %vm64, %v47, 0
    %v123 = vsel %vm64, %v48, 0
    %v126 = vsel %vm64, %v49, 0
    %v129 = vsel %vm64, %v50, 0
    %v132 = vsel %vm64, %v51, 0
    %v135 = vsel %vm64, %v52, 0
    %v138 = vsel %vm64, %v53, 0
    %140 = vmatprep.subr.mxu0 0.0
    %141 = vmatpush1.msra.mxu0 %v54
    %142 = vmatprep.subr.mxu0 0.0
    %143 = vmatpush1.msra.mxu0 %v55
    %144 = vmatprep.subr.mxu0 0.0
    %145 = vmatpush1.msra.mxu0 %v56
    %146 = vmatprep.subr.mxu0 0.0
    %147 = vmatpush1.msra.mxu0 %v57
    %148 = vmatprep.subr.mxu0 0.0
    %149 = vmatpush1.msra.mxu0 %v58
    %150 = vmatprep.subr.mxu0 0.0
    %151 = vmatpush1.msra.mxu0 0.0
    %152 = vmatprep.subr.mxu0 0.0
    %153 = vmatpush1.msra.mxu0 0.0
    %154 = vmatprep.subr.mxu0 0.0
    %155 = vmatpush1.msra.mxu0 0.0
    %156 = vmatprep.subr.mxu0 0.0
    %157 = vmatpush1.msra.mxu0 0.0
    %158 = vmatprep.subr.mxu0 0.0
    %159 = vmatpush1.msra.mxu0 0.0
    %160 = vmatprep.subr.mxu0 0.0
    %161 = vmatpush1.msra.mxu0 0.0
    %162 = vmatprep.subr.mxu0 0.0
    %163 = vmatpush1.msra.mxu0 0.0
    %164 = vmatprep.subr.mxu0 0.0
    %165 = vmatpush1.msra.mxu0 0.0
    %166 = vmatprep.subr.mxu0 0.0
    %167 = vmatpush1.msra.mxu0 0.0
    %168 = vmatprep.subr.mxu0 0.0
    %169 = vmatpush1.msra.mxu0 0.0
    %170 = vmatprep.subr.mxu0 0.0
    %171 = vmatpush1.msra.mxu0 0.0
    %172 = vmatprep.subr.mxu0 0.0
    %173 = vmatpush1.msra.mxu0 0.0
    %174 = vmatprep.subr.mxu0 0.0
    %175 = vmatpush1.msra.mxu0 0.0
    %176 = vmatprep.subr.mxu0 0.0
    %177 = vmatpush1.msra.mxu0 0.0
    %178 = vmatprep.subr.mxu0 0.0
    %179 = vmatpush1.msra.mxu0 0.0
    %180 = vmatprep.subr.mxu0 0.0
    %181 = vmatpush1.msra.mxu0 0.0
    %182 = vmatprep.subr.mxu0 0.0
    %183 = vmatpush1.msra.mxu0 0.0
    %184 = vmatprep.subr.mxu0 0.0
    %185 = vmatpush1.msra.mxu0 0.0
    %186 = vmatprep.subr.mxu0 0.0
    %187 = vmatpush1.msra.mxu0 0.0
    %188 = vmatprep.subr.mxu0 0.0
    %189 = vmatpush1.msra.mxu0 0.0
    %190 = vmatprep.subr.mxu0 0.0
    %191 = vmatpush1.msra.mxu0 0.0
    %192 = vmatprep.subr.mxu0 0.0
    %193 = vmatpush1.msra.mxu0 0.0
    %194 = vmatprep.subr.mxu0 0.0
    %195 = vmatpush1.msra.mxu0 0.0
    %196 = vmatprep.subr.mxu0 0.0
    %197 = vmatpush1.msra.mxu0 0.0
    %198 = vmatprep.subr.mxu0 0.0
    %199 = vmatpush1.msra.mxu0 0.0
    %200 = vmatprep.subr.mxu0 0.0
    %201 = vmatpush1.msra.mxu0 0.0
    %202 = vmatprep.subr.mxu0 0.0
    %203 = vmatpush1.msra.mxu0 0.0
    %204 = vmatprep.mubr.f32.mxu0 0.0
    %205 = vmatmul.mubr.f32.gmra.mrb[0].mxu0 %v66
    %v206 = vpop.f32.mrb[0].mxu0
    %v207 = vadd.f32 %v63, %v206
    %v208 = vpop.f32.mrb[0].mxu0
    %209 = vmatprep.mubr.f32.mxu0 0.0
    %210 = vmatmul.mubr.f32.gmra.mrb[0].mxu0 %v69
    %v211 = vpop.f32.mrb[0].mxu0
    %v212 = vadd.f32 %v63, %v211
    %v213 = vpop.f32.mrb[0].mxu0
    %214 = vmatprep.mubr.f32.mxu0 0.0
    %215 = vmatmul.mubr.f32.gmra.mrb[0].mxu0 %v72
    %v216 = vpop.f32.mrb[0].mxu0
    %v217 = vadd.f32 %v63, %v216
    %v218 = vpop.f32.mrb[0].mxu0
    %219 = vmatprep.mubr.f32.mxu0 0.0
    %220 = vmatmul.mubr.f32.gmra.mrb[0].mxu0 %v75
    %v221 = vpop.f32.mrb[0].mxu0
    %v222 = vadd.f32 %v63, %v221
    %v223 = vpop.f32.mrb[0].mxu0
    %224 = vmatprep.mubr.f32.mxu0 0.0
    %225 = vmatmul.mubr.f32.gmra.mrb[0].mxu0 %v78
    %v226 = vpop.f32.mrb[0].mxu0
    %v227 = vadd.f32 %v63, %v226
    %v228 = vpop.f32.mrb[0].mxu0
    %229 = vmatprep.mubr.f32.mxu0 0.0
    %230 = vmatmul.mubr.f32.gmra.mrb[0].mxu0 %v81
    %v231 = vpop.f32.mrb[0].mxu0
    %v232 = vadd.f32 %v63, %v231
    %v233 = vpop.f32.mrb[0].mxu0
    %234 = vmatprep.mubr.f32.mxu0 0.0
    %235 = vmatmul.mubr.f32.gmra.mrb[0].mxu0 %v84
    %v236 = vpop.f32.mrb[0].mxu0
    %v237 = vadd.f32 %v63, %v236
    %v238 = vpop.f32.mrb[0].mxu0
    %239 = vmatprep.mubr.f32.mxu0 0.0
    %240 = vmatmul.mubr.f32.gmra.mrb[0].mxu0 %v87
    %v241 = vpop.f32.mrb[0].mxu0
    %v242 = vadd.f32 %v63, %v241
    %v243 = vpop.f32.mrb[0].mxu0
    %244 = vmatprep.mubr.f32.mxu0 0.0
    %245 = vmatmul.mubr.f32.gmra.mrb[0].mxu0 %v90
    %v246 = vpop.f32.mrb[0].mxu0
    %v247 = vadd.f32 %v63, %v246
    %v248 = vpop.f32.mrb[0].mxu0
    %249 = vmatprep.mubr.f32.mxu0 0.0
    %250 = vmatmul.mubr.f32.gmra.mrb[0].mxu0 %v93
    %v251 = vpop.f32.mrb[0].mxu0
    %v252 = vadd.f32 %v63, %v251
    %v253 = vpop.f32.mrb[0].mxu0
    %254 = vmatprep.mubr.f32.mxu0 0.0
    %255 = vmatmul.mubr.f32.gmra.mrb[0].mxu0 %v96
    %v256 = vpop.f32.mrb[0].mxu0
    %v257 = vadd.f32 %v63, %v256
    %v258 = vpop.f32.mrb[0].mxu0
    %259 = vmatprep.mubr.f32.mxu0 0.0
    %260 = vmatmul.mubr.f32.gmra.mrb[0].mxu0 %v99
    %v261 = vpop.f32.mrb[0].mxu0
    %v262 = vadd.f32 %v63, %v261
    %v263 = vpop.f32.mrb[0].mxu0
    %264 = vmatprep.mubr.f32.mxu0 0.0
    %265 = vmatmul.mubr.f32.gmra.mrb[0].mxu0 %v102
    %v266 = vpop.f32.mrb[0].mxu0
    %v267 = vadd.f32 %v63, %v266
    %v268 = vpop.f32.mrb[0].mxu0
    %269 = vmatprep.mubr.f32.mxu0 0.0
    %270 = vmatmul.mubr.f32.gmra.mrb[0].mxu0 %v105
    %v271 = vpop.f32.mrb[0].mxu0
    %v272 = vadd.f32 %v63, %v271
    %v273 = vpop.f32.mrb[0].mxu0
    %274 = vmatprep.mubr.f32.mxu0 0.0
    %275 = vmatmul.mubr.f32.gmra.mrb[0].mxu0 %v108
    %v276 = vpop.f32.mrb[0].mxu0
    %v277 = vadd.f32 %v63, %v276
    %v278 = vpop.f32.mrb[0].mxu0
    %279 = vmatprep.mubr.f32.mxu0 0.0
    %280 = vmatmul.mubr.f32.gmra.mrb[0].mxu0 %v111
    %v281 = vpop.f32.mrb[0].mxu0
    %v282 = vadd.f32 %v63, %v281
    %v283 = vpop.f32.mrb[0].mxu0
    %284 = vmatprep.mubr.f32.mxu0 0.0
    %285 = vmatmul.mubr.f32.gmra.mrb[0].mxu0 %v114
    %v286 = vpop.f32.mrb[0].mxu0
    %v287 = vadd.f32 %v63, %v286
    %v288 = vpop.f32.mrb[0].mxu0
    %289 = vmatprep.mubr.f32.mxu0 0.0
    %290 = vmatmul.mubr.f32.gmra.mrb[0].mxu0 %v117
    %v291 = vpop.f32.mrb[0].mxu0
    %v292 = vadd.f32 %v63, %v291
    %v293 = vpop.f32.mrb[0].mxu0
    %294 = vmatprep.mubr.f32.mxu0 0.0
    %295 = vmatmul.mubr.f32.gmra.mrb[0].mxu0 %v120
    %v296 = vpop.f32.mrb[0].mxu0
    %v297 = vadd.f32 %v63, %v296
    %v298 = vpop.f32.mrb[0].mxu0
    %299 = vmatprep.mubr.f32.mxu0 0.0
    %300 = vmatmul.mubr.f32.gmra.mrb[0].mxu0 %v123
    %v301 = vpop.f32.mrb[0].mxu0
    %v302 = vadd.f32 %v63, %v301
    %v303 = vpop.f32.mrb[0].mxu0
    %304 = vmatprep.mubr.f32.mxu0 0.0
    %305 = vmatmul.mubr.f32.gmra.mrb[0].mxu0 %v126
    %v306 = vpop.f32.mrb[0].mxu0
    %v307 = vadd.f32 %v63, %v306
    %v308 = vpop.f32.mrb[0].mxu0
    %309 = vmatprep.mubr.f32.mxu0 0.0
    %310 = vmatmul.mubr.f32.gmra.mrb[0].mxu0 %v129
    %v311 = vpop.f32.mrb[0].mxu0
    %v312 = vadd.f32 %v63, %v311
    %v313 = vpop.f32.mrb[0].mxu0
    %314 = vmatprep.mubr.f32.mxu0 0.0
    %315 = vmatmul.mubr.f32.gmra.mrb[0].mxu0 %v132
    %v316 = vpop.f32.mrb[0].mxu0
    %v317 = vadd.f32 %v63, %v316
    %v318 = vpop.f32.mrb[0].mxu0
    %319 = vmatprep.mubr.f32.mxu0 0.0
    %320 = vmatmul.mubr.f32.gmra.mrb[0].mxu0 %v135
    %v321 = vpop.f32.mrb[0].mxu0
    %v322 = vadd.f32 %v63, %v321
    %v323 = vpop.f32.mrb[0].mxu0
    %324 = vmatprep.mubr.f32.mxu0 0.0
    %325 = vmatmul.mubr.f32.gmra.mrb[0].mxu0 %v138
    %v326 = vpop.f32.mrb[0].mxu0
    %v327 = vadd.f32 %v63, %v326
    %v328 = vpop.f32.mrb[0].mxu0
    %329 = vdwg.mxu0
    %v330 = vxor.u32 %v207, 2147483648
    %v331 = vxor.u32 %v212, 2147483648
    %v332 = vxor.u32 %v217, 2147483648
    %v333 = vxor.u32 %v222, 2147483648
    %v334 = vxor.u32 %v227, 2147483648
    %v335 = vxor.u32 %v232, 2147483648
    %v336 = vxor.u32 %v237, 2147483648
    %v337 = vxor.u32 %v242, 2147483648
    %v338 = vxor.u32 %v247, 2147483648
    %v339 = vxor.u32 %v252, 2147483648
    %v340 = vxor.u32 %v257, 2147483648
    %v341 = vxor.u32 %v262, 2147483648
    %v342 = vxor.u32 %v267, 2147483648
    %v343 = vxor.u32 %v272, 2147483648
    %v344 = vxor.u32 %v277, 2147483648
    %v345 = vxor.u32 %v282, 2147483648
    %v346 = vxor.u32 %v287, 2147483648
    %v347 = vxor.u32 %v292, 2147483648
    %v348 = vxor.u32 %v297, 2147483648
    %v349 = vxor.u32 %v302, 2147483648
    %v350 = vxor.u32 %v307, 2147483648
    %v351 = vxor.u32 %v312, 2147483648
    %v352 = vxor.u32 %v317, 2147483648
    %v353 = vxor.u32 %v322, 2147483648
    %v354 = vxor.u32 %v327, 2147483648
    %v355 = vmul.f32 %v330, 1.442695
    %v356 = vpow.pop %v355
    %v357 = vmul.f32 %v331, 1.442695
    %v358 = vpow.pop %v357
    %v359 = vmul.f32 %v332, 1.442695
    %v360 = vpow.pop %v359
    %v361 = vmul.f32 %v333, 1.442695
    %v362 = vpow.pop %v361
    %v363 = vmul.f32 %v334, 1.442695
    %v364 = vpow.pop %v363
    %v365 = vmul.f32 %v335, 1.442695
    %v366 = vpow.pop %v365
    %v367 = vmul.f32 %v336, 1.442695
    %v368 = vpow.pop %v367
    %v369 = vmul.f32 %v337, 1.442695
    %v370 = vpow.pop %v369
    %v371 = vmul.f32 %v338, 1.442695
    %v372 = vpow.pop %v371
    %v373 = vmul.f32 %v339, 1.442695
    %v374 = vpow.pop %v373
    %v375 = vmul.f32 %v340, 1.442695
    %v376 = vpow.pop %v375
    %v377 = vmul.f32 %v341, 1.442695
    %v378 = vpow.pop %v377
    %v379 = vmul.f32 %v342, 1.442695
    %v380 = vpow.pop %v379
    %v381 = vmul.f32 %v343, 1.442695
    %v382 = vpow.pop %v381
    %v383 = vmul.f32 %v344, 1.442695
    %v384 = vpow.pop %v383
    %v385 = vmul.f32 %v345, 1.442695
    %v386 = vpow.pop %v385
    %v387 = vmul.f32 %v346, 1.442695
    %v388 = vpow.pop %v387
    %v389 = vmul.f32 %v347, 1.442695
    %v390 = vpow.pop %v389
    %v391 = vmul.f32 %v348, 1.442695
    %v392 = vpow.pop %v391
    %v393 = vmul.f32 %v349, 1.442695
    %v394 = vpow.pop %v393
    %v395 = vmul.f32 %v350, 1.442695
    %v396 = vpow.pop %v395
    %v397 = vmul.f32 %v351, 1.442695
    %v398 = vpow.pop %v397
    %v399 = vmul.f32 %v352, 1.442695
    %v400 = vpow.pop %v399
    %v401 = vmul.f32 %v353, 1.442695
    %v402 = vpow.pop %v401
    %v403 = vmul.f32 %v354, 1.442695
    %v404 = vpow.pop %v403
    %v405 = vadd.f32 %v356, 1.0
    %v406 = vadd.f32 %v358, 1.0
    %v407 = vadd.f32 %v360, 1.0
    %v408 = vadd.f32 %v362, 1.0
    %v409 = vadd.f32 %v364, 1.0
    %v410 = vadd.f32 %v366, 1.0
    %v411 = vadd.f32 %v368, 1.0
    %v412 = vadd.f32 %v370, 1.0
    %v413 = vadd.f32 %v372, 1.0
    %v414 = vadd.f32 %v374, 1.0
    %v415 = vadd.f32 %v376, 1.0
    %v416 = vadd.f32 %v378, 1.0
    %v417 = vadd.f32 %v380, 1.0
    %v418 = vadd.f32 %v382, 1.0
    %v419 = vadd.f32 %v384, 1.0
    %v420 = vadd.f32 %v386, 1.0
    %v421 = vadd.f32 %v388, 1.0
    %v422 = vadd.f32 %v390, 1.0
    %v423 = vadd.f32 %v392, 1.0
    %v424 = vadd.f32 %v394, 1.0
    %v425 = vadd.f32 %v396, 1.0
    %v426 = vadd.f32 %v398, 1.0
    %v427 = vadd.f32 %v400, 1.0
    %v428 = vadd.f32 %v402, 1.0
    %v429 = vadd.f32 %v404, 1.0
    %v430 = vrcp.pop %v405
    %v431 = vmul.f32 1.0, %v430
    %v432 = vrcp.pop %v406
    %v433 = vmul.f32 1.0, %v432
    %v434 = vrcp.pop %v407
    %v435 = vmul.f32 1.0, %v434
    %v436 = vrcp.pop %v408
    %v437 = vmul.f32 1.0, %v436
    %v438 = vrcp.pop %v409
    %v439 = vmul.f32 1.0, %v438
    %v440 = vrcp.pop %v410
    %v441 = vmul.f32 1.0, %v440
    %v442 = vrcp.pop %v411
    %v443 = vmul.f32 1.0, %v442
    %v444 = vrcp.pop %v412
    %v445 = vmul.f32 1.0, %v444
    %v446 = vrcp.pop %v413
    %v447 = vmul.f32 1.0, %v446
    %v448 = vrcp.pop %v414
    %v449 = vmul.f32 1.0, %v448
    %v450 = vrcp.pop %v415
    %v451 = vmul.f32 1.0, %v450
    %v452 = vrcp.pop %v416
    %v453 = vmul.f32 1.0, %v452
    %v454 = vrcp.pop %v417
    %v455 = vmul.f32 1.0, %v454
    %v456 = vrcp.pop %v418
    %v457 = vmul.f32 1.0, %v456
    %v458 = vrcp.pop %v419
    %v459 = vmul.f32 1.0, %v458
    %v460 = vrcp.pop %v420
    %v461 = vmul.f32 1.0, %v460
    %v462 = vrcp.pop %v421
    %v463 = vmul.f32 1.0, %v462
    %v464 = vrcp.pop %v422
    %v465 = vmul.f32 1.0, %v464
    %v466 = vrcp.pop %v423
    %v467 = vmul.f32 1.0, %v466
    %v468 = vrcp.pop %v424
    %v469 = vmul.f32 1.0, %v468
    %v470 = vrcp.pop %v425
    %v471 = vmul.f32 1.0, %v470
    %v472 = vrcp.pop %v426
    %v473 = vmul.f32 1.0, %v472
    %v474 = vrcp.pop %v427
    %v475 = vmul.f32 1.0, %v474
    %v476 = vrcp.pop %v428
    %v477 = vmul.f32 1.0, %v476
    %v478 = vrcp.pop %v429
    %v479 = vmul.f32 1.0, %v478
    %v480 = vmul.f32 %v207, %v431
    %v481 = vmul.f32 %v212, %v433
    %v482 = vmul.f32 %v217, %v435
    %v483 = vmul.f32 %v222, %v437
    %v484 = vmul.f32 %v227, %v439
    %v485 = vmul.f32 %v232, %v441
    %v486 = vmul.f32 %v237, %v443
    %v487 = vmul.f32 %v242, %v445
    %v488 = vmul.f32 %v247, %v447
    %v489 = vmul.f32 %v252, %v449
    %v490 = vmul.f32 %v257, %v451
    %v491 = vmul.f32 %v262, %v453
    %v492 = vmul.f32 %v267, %v455
    %v493 = vmul.f32 %v272, %v457
    %v494 = vmul.f32 %v277, %v459
    %v495 = vmul.f32 %v282, %v461
    %v496 = vmul.f32 %v287, %v463
    %v497 = vmul.f32 %v292, %v465
    %v498 = vmul.f32 %v297, %v467
    %v499 = vmul.f32 %v302, %v469
    %v500 = vmul.f32 %v307, %v471
    %v501 = vmul.f32 %v312, %v473
    %v502 = vmul.f32 %v317, %v475
    %v503 = vmul.f32 %v322, %v477
    %v504 = vmul.f32 %v327, %v479
    %v505 = vld [vmem:[#allocation2] sm:$0xff]
    %v506 = vld [vmem:[#allocation2 + $0x8] sm:$0xff]
    %v507 = vld [vmem:[#allocation2 + $0x10] sm:$0xff]
    %v508 = vld [vmem:[#allocation2 + $0x18] sm:$0xff]
    %v509 = vld [vmem:[#allocation2 + $0x20] sm:$0xff]
    %v510 = vld [vmem:[#allocation2 + $0x28] sm:$0xff]
    %v511 = vld [vmem:[#allocation2 + $0x30] sm:$0xff]
    %v512 = vld [vmem:[#allocation2 + $0x38] sm:$0xff]
    %v513 = vld [vmem:[#allocation2 + $0x40] sm:$0xff]
    %v514 = vld [vmem:[#allocation2 + $0x48] sm:$0xff]
    %v515 = vld [vmem:[#allocation2 + $0x50] sm:$0xff]
    %v516 = vld [vmem:[#allocation2 + $0x58] sm:$0xff]
    %v517 = vld [vmem:[#allocation2 + $0x60] sm:$0xff]
    %v518 = vld [vmem:[#allocation2 + $0x68] sm:$0xff]
    %v519 = vld [vmem:[#allocation2 + $0x70] sm:$0xff]
    %v520 = vld [vmem:[#allocation2 + $0x78] sm:$0xff]
    %v521 = vld [vmem:[#allocation2 + $0x80] sm:$0x1]
    %v522 = vlaneseq
    %v523 = vshrl.u32 %v522, 7
    %v524 = vsub.s32 0, %v523
    %v525 = vrot.slane %v521, %v524
    %526 = vmatprep.subr.mxu0 0.0
    %527 = vmatpush1.msra.mxu0 %v505
    %528 = vmatprep.subr.mxu0 0.0
    %529 = vmatpush1.msra.mxu0 %v506
    %530 = vmatprep.subr.mxu0 0.0
    %531 = vmatpush1.msra.mxu0 %v507
    %532 = vmatprep.subr.mxu0 0.0
    %533 = vmatpush1.msra.mxu0 %v508
    %534 = vmatprep.subr.mxu0 0.0
    %535 = vmatpush1.msra.mxu0 %v509
    %536 = vmatprep.subr.mxu0 0.0
    %537 = vmatpush1.msra.mxu0 %v510
    %538 = vmatprep.subr.mxu0 0.0
    %539 = vmatpush1.msra.mxu0 %v511
    %540 = vmatprep.subr.mxu0 0.0
    %541 = vmatpush1.msra.mxu0 %v512
    %542 = vmatprep.subr.mxu0 0.0
    %543 = vmatpush1.msra.mxu0 %v513
    %544 = vmatprep.subr.mxu0 0.0
    %545 = vmatpush1.msra.mxu0 %v514
    %546 = vmatprep.subr.mxu0 0.0
    %547 = vmatpush1.msra.mxu0 %v515
    %548 = vmatprep.subr.mxu0 0.0
    %549 = vmatpush1.msra.mxu0 %v516
    %550 = vmatprep.subr.mxu0 0.0
    %551 = vmatpush1.msra.mxu0 %v517
    %552 = vmatprep.subr.mxu0 0.0
    %553 = vmatpush1.msra.mxu0 %v518
    %554 = vmatprep.subr.mxu0 0.0
    %555 = vmatpush1.msra.mxu0 %v519
    %556 = vmatprep.subr.mxu0 0.0
    %557 = vmatpush1.msra.mxu0 %v520
    %558 = vmatprep.subr.mxu0 0.0
    %559 = vmatpush1.msra.mxu0 0.0
    %560 = vmatprep.subr.mxu0 0.0
    %561 = vmatpush1.msra.mxu0 0.0
    %562 = vmatprep.subr.mxu0 0.0
    %563 = vmatpush1.msra.mxu0 0.0
    %564 = vmatprep.subr.mxu0 0.0
    %565 = vmatpush1.msra.mxu0 0.0
    %566 = vmatprep.subr.mxu0 0.0
    %567 = vmatpush1.msra.mxu0 0.0
    %568 = vmatprep.subr.mxu0 0.0
    %569 = vmatpush1.msra.mxu0 0.0
    %570 = vmatprep.subr.mxu0 0.0
    %571 = vmatpush1.msra.mxu0 0.0
    %572 = vmatprep.subr.mxu0 0.0
    %573 = vmatpush1.msra.mxu0 0.0
    %574 = vmatprep.subr.mxu0 0.0
    %575 = vmatpush1.msra.mxu0 0.0
    %576 = vmatprep.subr.mxu0 0.0
    %577 = vmatpush1.msra.mxu0 0.0
    %578 = vmatprep.subr.mxu0 0.0
    %579 = vmatpush1.msra.mxu0 0.0
    %580 = vmatprep.subr.mxu0 0.0
    %581 = vmatpush1.msra.mxu0 0.0
    %582 = vmatprep.subr.mxu0 0.0
    %583 = vmatpush1.msra.mxu0 0.0
    %584 = vmatprep.subr.mxu0 0.0
    %585 = vmatpush1.msra.mxu0 0.0
    %586 = vmatprep.subr.mxu0 0.0
    %587 = vmatpush1.msra.mxu0 0.0
    %588 = vmatprep.subr.mxu0 0.0
    %589 = vmatpush1.msra.mxu0 0.0
    %590 = vmatprep.mubr.f32.mxu0 0.0
    %591 = vmatmul.mubr.f32.gmra.mrb[0].mxu0 %v480
    %v592 = vpop.f32.mrb[0].mxu0
    %v593 = vadd.f32 %v525, %v592
    %v594 = vpop.f32.mrb[0].mxu0
    %595 = vmatprep.mubr.f32.mxu0 0.0
    %596 = vmatmul.mubr.f32.gmra.mrb[0].mxu0 %v481
    %v597 = vpop.f32.mrb[0].mxu0
    %v598 = vadd.f32 %v525, %v597
    %v599 = vpop.f32.mrb[0].mxu0
    %600 = vmatprep.mubr.f32.mxu0 0.0
    %601 = vmatmul.mubr.f32.gmra.mrb[0].mxu0 %v482
    %v602 = vpop.f32.mrb[0].mxu0
    %v603 = vadd.f32 %v525, %v602
    %v604 = vpop.f32.mrb[0].mxu0
    %605 = vmatprep.mubr.f32.mxu0 0.0
    %606 = vmatmul.mubr.f32.gmra.mrb[0].mxu0 %v483
    %v607 = vpop.f32.mrb[0].mxu0
    %v608 = vadd.f32 %v525, %v607
    %v609 = vpop.f32.mrb[0].mxu0
    %610 = vmatprep.mubr.f32.mxu0 0.0
    %611 = vmatmul.mubr.f32.gmra.mrb[0].mxu0 %v484
    %v612 = vpop.f32.mrb[0].mxu0
    %v613 = vadd.f32 %v525, %v612
    %v614 = vpop.f32.mrb[0].mxu0
    %615 = vmatprep.mubr.f32.mxu0 0.0
    %616 = vmatmul.mubr.f32.gmra.mrb[0].mxu0 %v485
    %v617 = vpop.f32.mrb[0].mxu0
    %v618 = vadd.f32 %v525, %v617
    %v619 = vpop.f32.mrb[0].mxu0
    %620 = vmatprep.mubr.f32.mxu0 0.0
    %621 = vmatmul.mubr.f32.gmra.mrb[0].mxu0 %v486
    %v622 = vpop.f32.mrb[0].mxu0
    %v623 = vadd.f32 %v525, %v622
    %v624 = vpop.f32.mrb[0].mxu0
    %625 = vmatprep.mubr.f32.mxu0 0.0
    %626 = vmatmul.mubr.f32.gmra.mrb[0].mxu0 %v487
    %v627 = vpop.f32.mrb[0].mxu0
    %v628 = vadd.f32 %v525, %v627
    %v629 = vpop.f32.mrb[0].mxu0
    %630 = vmatprep.mubr.f32.mxu0 0.0
    %631 = vmatmul.mubr.f32.gmra.mrb[0].mxu0 %v488
    %v632 = vpop.f32.mrb[0].mxu0
    %v633 = vadd.f32 %v525, %v632
    %v634 = vpop.f32.mrb[0].mxu0
    %635 = vmatprep.mubr.f32.mxu0 0.0
    %636 = vmatmul.mubr.f32.gmra.mrb[0].mxu0 %v489
    %v637 = vpop.f32.mrb[0].mxu0
    %v638 = vadd.f32 %v525, %v637
    %v639 = vpop.f32.mrb[0].mxu0
    %640 = vmatprep.mubr.f32.mxu0 0.0
    %641 = vmatmul.mubr.f32.gmra.mrb[0].mxu0 %v490
    %v642 = vpop.f32.mrb[0].mxu0
    %v643 = vadd.f32 %v525, %v642
    %v644 = vpop.f32.mrb[0].mxu0
    %645 = vmatprep.mubr.f32.mxu0 0.0
    %646 = vmatmul.mubr.f32.gmra.mrb[0].mxu0 %v491
    %v647 = vpop.f32.mrb[0].mxu0
    %v648 = vadd.f32 %v525, %v647
    %v649 = vpop.f32.mrb[0].mxu0
    %650 = vmatprep.mubr.f32.mxu0 0.0
    %651 = vmatmul.mubr.f32.gmra.mrb[0].mxu0 %v492
    %v652 = vpop.f32.mrb[0].mxu0
    %v653 = vadd.f32 %v525, %v652
    %v654 = vpop.f32.mrb[0].mxu0
    %655 = vmatprep.mubr.f32.mxu0 0.0
    %656 = vmatmul.mubr.f32.gmra.mrb[0].mxu0 %v493
    %v657 = vpop.f32.mrb[0].mxu0
    %v658 = vadd.f32 %v525, %v657
    %v659 = vpop.f32.mrb[0].mxu0
    %660 = vmatprep.mubr.f32.mxu0 0.0
    %661 = vmatmul.mubr.f32.gmra.mrb[0].mxu0 %v494
    %v662 = vpop.f32.mrb[0].mxu0
    %v663 = vadd.f32 %v525, %v662
    %v664 = vpop.f32.mrb[0].mxu0
    %665 = vmatprep.mubr.f32.mxu0 0.0
    %666 = vmatmul.mubr.f32.gmra.mrb[0].mxu0 %v495
    %v667 = vpop.f32.mrb[0].mxu0
    %v668 = vadd.f32 %v525, %v667
    %v669 = vpop.f32.mrb[0].mxu0
    %670 = vmatprep.mubr.f32.mxu0 0.0
    %671 = vmatmul.mubr.f32.gmra.mrb[0].mxu0 %v496
    %v672 = vpop.f32.mrb[0].mxu0
    %v673 = vadd.f32 %v525, %v672
    %v674 = vpop.f32.mrb[0].mxu0
    %675 = vmatprep.mubr.f32.mxu0 0.0
    %676 = vmatmul.mubr.f32.gmra.mrb[0].mxu0 %v497
    %v677 = vpop.f32.mrb[0].mxu0
    %v678 = vadd.f32 %v525, %v677
    %v679 = vpop.f32.mrb[0].mxu0
    %680 = vmatprep.mubr.f32.mxu0 0.0
    %681 = vmatmul.mubr.f32.gmra.mrb[0].mxu0 %v498
    %v682 = vpop.f32.mrb[0].mxu0
    %v683 = vadd.f32 %v525, %v682
    %v684 = vpop.f32.mrb[0].mxu0
    %685 = vmatprep.mubr.f32.mxu0 0.0
    %686 = vmatmul.mubr.f32.gmra.mrb[0].mxu0 %v499
    %v687 = vpop.f32.mrb[0].mxu0
    %v688 = vadd.f32 %v525, %v687
    %v689 = vpop.f32.mrb[0].mxu0
    %690 = vmatprep.mubr.f32.mxu0 0.0
    %691 = vmatmul.mubr.f32.gmra.mrb[0].mxu0 %v500
    %v692 = vpop.f32.mrb[0].mxu0
    %v693 = vadd.f32 %v525, %v692
    %v694 = vpop.f32.mrb[0].mxu0
    %695 = vmatprep.mubr.f32.mxu0 0.0
    %696 = vmatmul.mubr.f32.gmra.mrb[0].mxu0 %v501
    %v697 = vpop.f32.mrb[0].mxu0
    %v698 = vadd.f32 %v525, %v697
    %v699 = vpop.f32.mrb[0].mxu0
    %700 = vmatprep.mubr.f32.mxu0 0.0
    %701 = vmatmul.mubr.f32.gmra.mrb[0].mxu0 %v502
    %v702 = vpop.f32.mrb[0].mxu0
    %v703 = vadd.f32 %v525, %v702
    %v704 = vpop.f32.mrb[0].mxu0
    %705 = vmatprep.mubr.f32.mxu0 0.0
    %706 = vmatmul.mubr.f32.gmra.mrb[0].mxu0 %v503
    %v707 = vpop.f32.mrb[0].mxu0
    %v708 = vadd.f32 %v525, %v707
    %v709 = vpop.f32.mrb[0].mxu0
    %710 = vmatprep.mubr.f32.mxu0 0.0
    %711 = vmatmul.mubr.f32.gmra.mrb[0].mxu0 %v504
    %v712 = vpop.f32.mrb[0].mxu0
    %v713 = vadd.f32 %v525, %v712
    %v714 = vpop.f32.mrb[0].mxu0
    %715 = vdwg.mxu0
    %v716 = vxor.u32 %v593, 2147483648
    %v717 = vxor.u32 %v598, 2147483648
    %v718 = vxor.u32 %v603, 2147483648
    %v719 = vxor.u32 %v608, 2147483648
    %v720 = vxor.u32 %v613, 2147483648
    %v721 = vxor.u32 %v618, 2147483648
    %v722 = vxor.u32 %v623, 2147483648
    %v723 = vxor.u32 %v628, 2147483648
    %v724 = vxor.u32 %v633, 2147483648
    %v725 = vxor.u32 %v638, 2147483648
    %v726 = vxor.u32 %v643, 2147483648
    %v727 = vxor.u32 %v648, 2147483648
    %v728 = vxor.u32 %v653, 2147483648
    %v729 = vxor.u32 %v658, 2147483648
    %v730 = vxor.u32 %v663, 2147483648
    %v731 = vxor.u32 %v668, 2147483648
    %v732 = vxor.u32 %v673, 2147483648
    %v733 = vxor.u32 %v678, 2147483648
    %v734 = vxor.u32 %v683, 2147483648
    %v735 = vxor.u32 %v688, 2147483648
    %v736 = vxor.u32 %v693, 2147483648
    %v737 = vxor.u32 %v698, 2147483648
    %v738 = vxor.u32 %v703, 2147483648
    %v739 = vxor.u32 %v708, 2147483648
    %v740 = vxor.u32 %v713, 2147483648
    %v741 = vmul.f32 %v716, 1.442695
    %v742 = vpow.pop %v741
    %v743 = vmul.f32 %v717, 1.442695
    %v744 = vpow.pop %v743
    %v745 = vmul.f32 %v718, 1.442695
    %v746 = vpow.pop %v745
    %v747 = vmul.f32 %v719, 1.442695
    %v748 = vpow.pop %v747
    %v749 = vmul.f32 %v720, 1.442695
    %v750 = vpow.pop %v749
    %v751 = vmul.f32 %v721, 1.442695
    %v752 = vpow.pop %v751
    %v753 = vmul.f32 %v722, 1.442695
    %v754 = vpow.pop %v753
    %v755 = vmul.f32 %v723, 1.442695
    %v756 = vpow.pop %v755
    %v757 = vmul.f32 %v724, 1.442695
    %v758 = vpow.pop %v757
    %v759 = vmul.f32 %v725, 1.442695
    %v760 = vpow.pop %v759
    %v761 = vmul.f32 %v726, 1.442695
    %v762 = vpow.pop %v761
    %v763 = vmul.f32 %v727, 1.442695
    %v764 = vpow.pop %v763
    %v765 = vmul.f32 %v728, 1.442695
    %v766 = vpow.pop %v765
    %v767 = vmul.f32 %v729, 1.442695
    %v768 = vpow.pop %v767
    %v769 = vmul.f32 %v730, 1.442695
    %v770 = vpow.pop %v769
    %v771 = vmul.f32 %v731, 1.442695
    %v772 = vpow.pop %v771
    %v773 = vmul.f32 %v732, 1.442695
    %v774 = vpow.pop %v773
    %v775 = vmul.f32 %v733, 1.442695
    %v776 = vpow.pop %v775
    %v777 = vmul.f32 %v734, 1.442695
    %v778 = vpow.pop %v777
    %v779 = vmul.f32 %v735, 1.442695
    %v780 = vpow.pop %v779
    %v781 = vmul.f32 %v736, 1.442695
    %v782 = vpow.pop %v781
    %v783 = vmul.f32 %v737, 1.442695
    %v784 = vpow.pop %v783
    %v785 = vmul.f32 %v738, 1.442695
    %v786 = vpow.pop %v785
    %v787 = vmul.f32 %v739, 1.442695
    %v788 = vpow.pop %v787
    %v789 = vmul.f32 %v740, 1.442695
    %v790 = vpow.pop %v789
    %v791 = vadd.f32 %v742, 1.0
    %v792 = vadd.f32 %v744, 1.0
    %v793 = vadd.f32 %v746, 1.0
    %v794 = vadd.f32 %v748, 1.0
    %v795 = vadd.f32 %v750, 1.0
    %v796 = vadd.f32 %v752, 1.0
    %v797 = vadd.f32 %v754, 1.0
    %v798 = vadd.f32 %v756, 1.0
    %v799 = vadd.f32 %v758, 1.0
    %v800 = vadd.f32 %v760, 1.0
    %v801 = vadd.f32 %v762, 1.0
    %v802 = vadd.f32 %v764, 1.0
    %v803 = vadd.f32 %v766, 1.0
    %v804 = vadd.f32 %v768, 1.0
    %v805 = vadd.f32 %v770, 1.0
    %v806 = vadd.f32 %v772, 1.0
    %v807 = vadd.f32 %v774, 1.0
    %v808 = vadd.f32 %v776, 1.0
    %v809 = vadd.f32 %v778, 1.0
    %v810 = vadd.f32 %v780, 1.0
    %v811 = vadd.f32 %v782, 1.0
    %v812 = vadd.f32 %v784, 1.0
    %v813 = vadd.f32 %v786, 1.0
    %v814 = vadd.f32 %v788, 1.0
    %v815 = vadd.f32 %v790, 1.0
    %v816 = vrcp.pop %v791
    %v817 = vmul.f32 1.0, %v816
    %v818 = vrcp.pop %v792
    %v819 = vmul.f32 1.0, %v818
    %v820 = vrcp.pop %v793
    %v821 = vmul.f32 1.0, %v820
    %v822 = vrcp.pop %v794
    %v823 = vmul.f32 1.0, %v822
    %v824 = vrcp.pop %v795
    %v825 = vmul.f32 1.0, %v824
    %v826 = vrcp.pop %v796
    %v827 = vmul.f32 1.0, %v826
    %v828 = vrcp.pop %v797
    %v829 = vmul.f32 1.0, %v828
    %v830 = vrcp.pop %v798
    %v831 = vmul.f32 1.0, %v830
    %v832 = vrcp.pop %v799
    %v833 = vmul.f32 1.0, %v832
    %v834 = vrcp.pop %v800
    %v835 = vmul.f32 1.0, %v834
    %v836 = vrcp.pop %v801
    %v837 = vmul.f32 1.0, %v836
    %v838 = vrcp.pop %v802
    %v839 = vmul.f32 1.0, %v838
    %v840 = vrcp.pop %v803
    %v841 = vmul.f32 1.0, %v840
    %v842 = vrcp.pop %v804
    %v843 = vmul.f32 1.0, %v842
    %v844 = vrcp.pop %v805
    %v845 = vmul.f32 1.0, %v844
    %v846 = vrcp.pop %v806
    %v847 = vmul.f32 1.0, %v846
    %v848 = vrcp.pop %v807
    %v849 = vmul.f32 1.0, %v848
    %v850 = vrcp.pop %v808
    %v851 = vmul.f32 1.0, %v850
    %v852 = vrcp.pop %v809
    %v853 = vmul.f32 1.0, %v852
    %v854 = vrcp.pop %v810
    %v855 = vmul.f32 1.0, %v854
    %v856 = vrcp.pop %v811
    %v857 = vmul.f32 1.0, %v856
    %v858 = vrcp.pop %v812
    %v859 = vmul.f32 1.0, %v858
    %v860 = vrcp.pop %v813
    %v861 = vmul.f32 1.0, %v860
    %v862 = vrcp.pop %v814
    %v863 = vmul.f32 1.0, %v862
    %v864 = vrcp.pop %v815
    %v865 = vmul.f32 1.0, %v864
    %v866 = vmul.f32 %v593, %v817
    %v867 = vmul.f32 %v598, %v819
    %v868 = vmul.f32 %v603, %v821
    %v869 = vmul.f32 %v608, %v823
    %v870 = vmul.f32 %v613, %v825
    %v871 = vmul.f32 %v618, %v827
    %v872 = vmul.f32 %v623, %v829
    %v873 = vmul.f32 %v628, %v831
    %v874 = vmul.f32 %v633, %v833
    %v875 = vmul.f32 %v638, %v835
    %v876 = vmul.f32 %v643, %v837
    %v877 = vmul.f32 %v648, %v839
    %v878 = vmul.f32 %v653, %v841
    %v879 = vmul.f32 %v658, %v843
    %v880 = vmul.f32 %v663, %v845
    %v881 = vmul.f32 %v668, %v847
    %v882 = vmul.f32 %v673, %v849
    %v883 = vmul.f32 %v678, %v851
    %v884 = vmul.f32 %v683, %v853
    %v885 = vmul.f32 %v688, %v855
    %v886 = vmul.f32 %v693, %v857
    %v887 = vmul.f32 %v698, %v859
    %v888 = vmul.f32 %v703, %v861
    %v889 = vmul.f32 %v708, %v863
    %v890 = vmul.f32 %v713, %v865
    %v891 = vld [vmem:[#allocation2 + $0x88] sm:$0xff]
    %v892 = vld [vmem:[#allocation2 + $0x90] sm:$0xff]
    %v893 = vld [vmem:[#allocation2 + $0x98] sm:$0xff]
    %v894 = vld [vmem:[#allocation2 + $0xa0] sm:$0xff]
    %v895 = vld [vmem:[#allocation2 + $0xa8] sm:$0xff]
    %v896 = vld [vmem:[#allocation2 + $0xb0] sm:$0xff]
    %v897 = vld [vmem:[#allocation2 + $0xb8] sm:$0xff]
    %v898 = vld [vmem:[#allocation2 + $0xc0] sm:$0xff]
    %v899 = vld [vmem:[#allocation2 + $0xc8] sm:$0xff]
    %v900 = vld [vmem:[#allocation2 + $0xd0] sm:$0xff]
    %v901 = vld [vmem:[#allocation2 + $0xd8] sm:$0xff]
    %v902 = vld [vmem:[#allocation2 + $0xe0] sm:$0xff]
    %v903 = vld [vmem:[#allocation2 + $0xe8] sm:$0xff]
    %v904 = vld [vmem:[#allocation2 + $0xf0] sm:$0xff]
    %v905 = vld [vmem:[#allocation2 + $0xf8] sm:$0xff]
    %v906 = vld [vmem:[#allocation2 + $0x100] sm:$0xff]
    %v907 = vld [vmem:[#allocation2 + $0x108] sm:$0x1]
    %v908 = vlaneseq
    %v909 = vshrl.u32 %v908, 7
    %v910 = vsub.s32 0, %v909
    %v911 = vrot.slane %v907, %v910
    %912 = vmatprep.subr.mxu0 0.0
    %913 = vmatpush1.msra.mxu0 %v891
    %914 = vmatprep.subr.mxu0 0.0
    %915 = vmatpush1.msra.mxu0 %v892
    %916 = vmatprep.subr.mxu0 0.0
    %917 = vmatpush1.msra.mxu0 %v893
    %918 = vmatprep.subr.mxu0 0.0
    %919 = vmatpush1.msra.mxu0 %v894
    %920 = vmatprep.subr.mxu0 0.0
    %921 = vmatpush1.msra.mxu0 %v895
    %922 = vmatprep.subr.mxu0 0.0
    %923 = vmatpush1.msra.mxu0 %v896
    %924 = vmatprep.subr.mxu0 0.0
    %925 = vmatpush1.msra.mxu0 %v897
    %926 = vmatprep.subr.mxu0 0.0
    %927 = vmatpush1.msra.mxu0 %v898
    %928 = vmatprep.subr.mxu0 0.0
    %929 = vmatpush1.msra.mxu0 %v899
    %930 = vmatprep.subr.mxu0 0.0
    %931 = vmatpush1.msra.mxu0 %v900
    %932 = vmatprep.subr.mxu0 0.0
    %933 = vmatpush1.msra.mxu0 %v901
    %934 = vmatprep.subr.mxu0 0.0
    %935 = vmatpush1.msra.mxu0 %v902
    %936 = vmatprep.subr.mxu0 0.0
    %937 = vmatpush1.msra.mxu0 %v903
    %938 = vmatprep.subr.mxu0 0.0
    %939 = vmatpush1.msra.mxu0 %v904
    %940 = vmatprep.subr.mxu0 0.0
    %941 = vmatpush1.msra.mxu0 %v905
    %942 = vmatprep.subr.mxu0 0.0
    %943 = vmatpush1.msra.mxu0 %v906
    %944 = vmatprep.subr.mxu0 0.0
    %945 = vmatpush1.msra.mxu0 0.0
    %946 = vmatprep.subr.mxu0 0.0
    %947 = vmatpush1.msra.mxu0 0.0
    %948 = vmatprep.subr.mxu0 0.0
    %949 = vmatpush1.msra.mxu0 0.0
    %950 = vmatprep.subr.mxu0 0.0
    %951 = vmatpush1.msra.mxu0 0.0
    %952 = vmatprep.subr.mxu0 0.0
    %953 = vmatpush1.msra.mxu0 0.0
    %954 = vmatprep.subr.mxu0 0.0
    %955 = vmatpush1.msra.mxu0 0.0
    %956 = vmatprep.subr.mxu0 0.0
    %957 = vmatpush1.msra.mxu0 0.0
    %958 = vmatprep.subr.mxu0 0.0
    %959 = vmatpush1.msra.mxu0 0.0
    %960 = vmatprep.subr.mxu0 0.0
    %961 = vmatpush1.msra.mxu0 0.0
    %962 = vmatprep.subr.mxu0 0.0
    %963 = vmatpush1.msra.mxu0 0.0
    %964 = vmatprep.subr.mxu0 0.0
    %965 = vmatpush1.msra.mxu0 0.0
    %966 = vmatprep.subr.mxu0 0.0
    %967 = vmatpush1.msra.mxu0 0.0
    %968 = vmatprep.subr.mxu0 0.0
    %969 = vmatpush1.msra.mxu0 0.0
    %970 = vmatprep.subr.mxu0 0.0
    %971 = vmatpush1.msra.mxu0 0.0
    %972 = vmatprep.subr.mxu0 0.0
    %973 = vmatpush1.msra.mxu0 0.0
    %974 = vmatprep.subr.mxu0 0.0
    %975 = vmatpush1.msra.mxu0 0.0
    %976 = vmatprep.mubr.f32.mxu0 0.0
    %977 = vmatmul.mubr.f32.gmra.mrb[0].mxu0 %v866
    %v978 = vpop.f32.mrb[0].mxu0
    %v979 = vadd.f32 %v911, %v978
    %v980 = vpop.f32.mrb[0].mxu0
    %981 = vmatprep.mubr.f32.mxu0 0.0
    %982 = vmatmul.mubr.f32.gmra.mrb[0].mxu0 %v867
    %v983 = vpop.f32.mrb[0].mxu0
    %v984 = vadd.f32 %v911, %v983
    %v985 = vpop.f32.mrb[0].mxu0
    %986 = vmatprep.mubr.f32.mxu0 0.0
    %987 = vmatmul.mubr.f32.gmra.mrb[0].mxu0 %v868
    %v988 = vpop.f32.mrb[0].mxu0
    %v989 = vadd.f32 %v911, %v988
    %v990 = vpop.f32.mrb[0].mxu0
    %991 = vmatprep.mubr.f32.mxu0 0.0
    %992 = vmatmul.mubr.f32.gmra.mrb[0].mxu0 %v869
    %v993 = vpop.f32.mrb[0].mxu0
    %v994 = vadd.f32 %v911, %v993
    %v995 = vpop.f32.mrb[0].mxu0
    %996 = vmatprep.mubr.f32.mxu0 0.0
    %997 = vmatmul.mubr.f32.gmra.mrb[0].mxu0 %v870
    %v998 = vpop.f32.mrb[0].mxu0
    %v999 = vadd.f32 %v911, %v998
    %v1000 = vpop.f32.mrb[0].mxu0
    %1001 = vmatprep.mubr.f32.mxu0 0.0
    %1002 = vmatmul.mubr.f32.gmra.mrb[0].mxu0 %v871
    %v1003 = vpop.f32.mrb[0].mxu0
    %v1004 = vadd.f32 %v911, %v1003
    %v1005 = vpop.f32.mrb[0].mxu0
    %1006 = vmatprep.mubr.f32.mxu0 0.0
    %1007 = vmatmul.mubr.f32.gmra.mrb[0].mxu0 %v872
    %v1008 = vpop.f32.mrb[0].mxu0
    %v1009 = vadd.f32 %v911, %v1008
    %v1010 = vpop.f32.mrb[0].mxu0
    %1011 = vmatprep.mubr.f32.mxu0 0.0
    %1012 = vmatmul.mubr.f32.gmra.mrb[0].mxu0 %v873
    %v1013 = vpop.f32.mrb[0].mxu0
    %v1014 = vadd.f32 %v911, %v1013
    %v1015 = vpop.f32.mrb[0].mxu0
    %1016 = vmatprep.mubr.f32.mxu0 0.0
    %1017 = vmatmul.mubr.f32.gmra.mrb[0].mxu0 %v874
    %v1018 = vpop.f32.mrb[0].mxu0
    %v1019 = vadd.f32 %v911, %v1018
    %v1020 = vpop.f32.mrb[0].mxu0
    %1021 = vmatprep.mubr.f32.mxu0 0.0
    %1022 = vmatmul.mubr.f32.gmra.mrb[0].mxu0 %v875
    %v1023 = vpop.f32.mrb[0].mxu0
    %v1024 = vadd.f32 %v911, %v1023
    %v1025 = vpop.f32.mrb[0].mxu0
    %1026 = vmatprep.mubr.f32.mxu0 0.0
    %1027 = vmatmul.mubr.f32.gmra.mrb[0].mxu0 %v876
    %v1028 = vpop.f32.mrb[0].mxu0
    %v1029 = vadd.f32 %v911, %v1028
    %v1030 = vpop.f32.mrb[0].mxu0
    %1031 = vmatprep.mubr.f32.mxu0 0.0
    %1032 = vmatmul.mubr.f32.gmra.mrb[0].mxu0 %v877
    %v1033 = vpop.f32.mrb[0].mxu0
    %v1034 = vadd.f32 %v911, %v1033
    %v1035 = vpop.f32.mrb[0].mxu0
    %1036 = vmatprep.mubr.f32.mxu0 0.0
    %1037 = vmatmul.mubr.f32.gmra.mrb[0].mxu0 %v878
    %v1038 = vpop.f32.mrb[0].mxu0
    %v1039 = vadd.f32 %v911, %v1038
    %v1040 = vpop.f32.mrb[0].mxu0
    %1041 = vmatprep.mubr.f32.mxu0 0.0
    %1042 = vmatmul.mubr.f32.gmra.mrb[0].mxu0 %v879
    %v1043 = vpop.f32.mrb[0].mxu0
    %v1044 = vadd.f32 %v911, %v1043
    %v1045 = vpop.f32.mrb[0].mxu0
    %1046 = vmatprep.mubr.f32.mxu0 0.0
    %1047 = vmatmul.mubr.f32.gmra.mrb[0].mxu0 %v880
    %v1048 = vpop.f32.mrb[0].mxu0
    %v1049 = vadd.f32 %v911, %v1048
    %v1050 = vpop.f32.mrb[0].mxu0
    %1051 = vmatprep.mubr.f32.mxu0 0.0
    %1052 = vmatmul.mubr.f32.gmra.mrb[0].mxu0 %v881
    %v1053 = vpop.f32.mrb[0].mxu0
    %v1054 = vadd.f32 %v911, %v1053
    %v1055 = vpop.f32.mrb[0].mxu0
    %1056 = vmatprep.mubr.f32.mxu0 0.0
    %1057 = vmatmul.mubr.f32.gmra.mrb[0].mxu0 %v882
    %v1058 = vpop.f32.mrb[0].mxu0
    %v1059 = vadd.f32 %v911, %v1058
    %v1060 = vpop.f32.mrb[0].mxu0
    %1061 = vmatprep.mubr.f32.mxu0 0.0
    %1062 = vmatmul.mubr.f32.gmra.mrb[0].mxu0 %v883
    %v1063 = vpop.f32.mrb[0].mxu0
    %v1064 = vadd.f32 %v911, %v1063
    %v1065 = vpop.f32.mrb[0].mxu0
    %1066 = vmatprep.mubr.f32.mxu0 0.0
    %1067 = vmatmul.mubr.f32.gmra.mrb[0].mxu0 %v884
    %v1068 = vpop.f32.mrb[0].mxu0
    %v1069 = vadd.f32 %v911, %v1068
    %v1070 = vpop.f32.mrb[0].mxu0
    %1071 = vmatprep.mubr.f32.mxu0 0.0
    %1072 = vmatmul.mubr.f32.gmra.mrb[0].mxu0 %v885
    %v1073 = vpop.f32.mrb[0].mxu0
    %v1074 = vadd.f32 %v911, %v1073
    %v1075 = vpop.f32.mrb[0].mxu0
    %1076 = vmatprep.mubr.f32.mxu0 0.0
    %1077 = vmatmul.mubr.f32.gmra.mrb[0].mxu0 %v886
    %v1078 = vpop.f32.mrb[0].mxu0
    %v1079 = vadd.f32 %v911, %v1078
    %v1080 = vpop.f32.mrb[0].mxu0
    %1081 = vmatprep.mubr.f32.mxu0 0.0
    %1082 = vmatmul.mubr.f32.gmra.mrb[0].mxu0 %v887
    %v1083 = vpop.f32.mrb[0].mxu0
    %v1084 = vadd.f32 %v911, %v1083
    %v1085 = vpop.f32.mrb[0].mxu0
    %1086 = vmatprep.mubr.f32.mxu0 0.0
    %1087 = vmatmul.mubr.f32.gmra.mrb[0].mxu0 %v888
    %v1088 = vpop.f32.mrb[0].mxu0
    %v1089 = vadd.f32 %v911, %v1088
    %v1090 = vpop.f32.mrb[0].mxu0
    %1091 = vmatprep.mubr.f32.mxu0 0.0
    %1092 = vmatmul.mubr.f32.gmra.mrb[0].mxu0 %v889
    %v1093 = vpop.f32.mrb[0].mxu0
    %v1094 = vadd.f32 %v911, %v1093
    %v1095 = vpop.f32.mrb[0].mxu0
    %1096 = vmatprep.mubr.f32.mxu0 0.0
    %1097 = vmatmul.mubr.f32.gmra.mrb[0].mxu0 %v890
    %v1098 = vpop.f32.mrb[0].mxu0
    %v1099 = vadd.f32 %v911, %v1098
    %v1100 = vpop.f32.mrb[0].mxu0
    %1101 = vdwg.mxu0
    %v1102 = vxor.u32 %v979, 2147483648
    %v1103 = vxor.u32 %v984, 2147483648
    %v1104 = vxor.u32 %v989, 2147483648
    %v1105 = vxor.u32 %v994, 2147483648
    %v1106 = vxor.u32 %v999, 2147483648
    %v1107 = vxor.u32 %v1004, 2147483648
    %v1108 = vxor.u32 %v1009, 2147483648
    %v1109 = vxor.u32 %v1014, 2147483648
    %v1110 = vxor.u32 %v1019, 2147483648
    %v1111 = vxor.u32 %v1024, 2147483648
    %v1112 = vxor.u32 %v1029, 2147483648
    %v1113 = vxor.u32 %v1034, 2147483648
    %v1114 = vxor.u32 %v1039, 2147483648
    %v1115 = vxor.u32 %v1044, 2147483648
    %v1116 = vxor.u32 %v1049, 2147483648
    %v1117 = vxor.u32 %v1054, 2147483648
    %v1118 = vxor.u32 %v1059, 2147483648
    %v1119 = vxor.u32 %v1064, 2147483648
    %v1120 = vxor.u32 %v1069, 2147483648
    %v1121 = vxor.u32 %v1074, 2147483648
    %v1122 = vxor.u32 %v1079, 2147483648
    %v1123 = vxor.u32 %v1084, 2147483648
    %v1124 = vxor.u32 %v1089, 2147483648
    %v1125 = vxor.u32 %v1094, 2147483648
    %v1126 = vxor.u32 %v1099, 2147483648
    %v1127 = vmul.f32 %v1102, 1.442695
    %v1128 = vpow.pop %v1127
    %v1129 = vmul.f32 %v1103, 1.442695
    %v1130 = vpow.pop %v1129
    %v1131 = vmul.f32 %v1104, 1.442695
    %v1132 = vpow.pop %v1131
    %v1133 = vmul.f32 %v1105, 1.442695
    %v1134 = vpow.pop %v1133
    %v1135 = vmul.f32 %v1106, 1.442695
    %v1136 = vpow.pop %v1135
    %v1137 = vmul.f32 %v1107, 1.442695
    %v1138 = vpow.pop %v1137
    %v1139 = vmul.f32 %v1108, 1.442695
    %v1140 = vpow.pop %v1139
    %v1141 = vmul.f32 %v1109, 1.442695
    %v1142 = vpow.pop %v1141
    %v1143 = vmul.f32 %v1110, 1.442695
    %v1144 = vpow.pop %v1143
    %v1145 = vmul.f32 %v1111, 1.442695
    %v1146 = vpow.pop %v1145
    %v1147 = vmul.f32 %v1112, 1.442695
    %v1148 = vpow.pop %v1147
    %v1149 = vmul.f32 %v1113, 1.442695
    %v1150 = vpow.pop %v1149
    %v1151 = vmul.f32 %v1114, 1.442695
    %v1152 = vpow.pop %v1151
    %v1153 = vmul.f32 %v1115, 1.442695
    %v1154 = vpow.pop %v1153
    %v1155 = vmul.f32 %v1116, 1.442695
    %v1156 = vpow.pop %v1155
    %v1157 = vmul.f32 %v1117, 1.442695
    %v1158 = vpow.pop %v1157
    %v1159 = vmul.f32 %v1118, 1.442695
    %v1160 = vpow.pop %v1159
    %v1161 = vmul.f32 %v1119, 1.442695
    %v1162 = vpow.pop %v1161
    %v1163 = vmul.f32 %v1120, 1.442695
    %v1164 = vpow.pop %v1163
    %v1165 = vmul.f32 %v1121, 1.442695
    %v1166 = vpow.pop %v1165
    %v1167 = vmul.f32 %v1122, 1.442695
    %v1168 = vpow.pop %v1167
    %v1169 = vmul.f32 %v1123, 1.442695
    %v1170 = vpow.pop %v1169
    %v1171 = vmul.f32 %v1124, 1.442695
    %v1172 = vpow.pop %v1171
    %v1173 = vmul.f32 %v1125, 1.442695
    %v1174 = vpow.pop %v1173
    %v1175 = vmul.f32 %v1126, 1.442695
    %v1176 = vpow.pop %v1175
    %v1177 = vadd.f32 %v1128, 1.0
    %v1178 = vadd.f32 %v1130, 1.0
    %v1179 = vadd.f32 %v1132, 1.0
    %v1180 = vadd.f32 %v1134, 1.0
    %v1181 = vadd.f32 %v1136, 1.0
    %v1182 = vadd.f32 %v1138, 1.0
    %v1183 = vadd.f32 %v1140, 1.0
    %v1184 = vadd.f32 %v1142, 1.0
    %v1185 = vadd.f32 %v1144, 1.0
    %v1186 = vadd.f32 %v1146, 1.0
    %v1187 = vadd.f32 %v1148, 1.0
    %v1188 = vadd.f32 %v1150, 1.0
    %v1189 = vadd.f32 %v1152, 1.0
    %v1190 = vadd.f32 %v1154, 1.0
    %v1191 = vadd.f32 %v1156, 1.0
    %v1192 = vadd.f32 %v1158, 1.0
    %v1193 = vadd.f32 %v1160, 1.0
    %v1194 = vadd.f32 %v1162, 1.0
    %v1195 = vadd.f32 %v1164, 1.0
    %v1196 = vadd.f32 %v1166, 1.0
    %v1197 = vadd.f32 %v1168, 1.0
    %v1198 = vadd.f32 %v1170, 1.0
    %v1199 = vadd.f32 %v1172, 1.0
    %v1200 = vadd.f32 %v1174, 1.0
    %v1201 = vadd.f32 %v1176, 1.0
    %v1202 = vrcp.pop %v1177
    %v1203 = vmul.f32 1.0, %v1202
    %v1204 = vrcp.pop %v1178
    %v1205 = vmul.f32 1.0, %v1204
    %v1206 = vrcp.pop %v1179
    %v1207 = vmul.f32 1.0, %v1206
    %v1208 = vrcp.pop %v1180
    %v1209 = vmul.f32 1.0, %v1208
    %v1210 = vrcp.pop %v1181
    %v1211 = vmul.f32 1.0, %v1210
    %v1212 = vrcp.pop %v1182
    %v1213 = vmul.f32 1.0, %v1212
    %v1214 = vrcp.pop %v1183
    %v1215 = vmul.f32 1.0, %v1214
    %v1216 = vrcp.pop %v1184
    %v1217 = vmul.f32 1.0, %v1216
    %v1218 = vrcp.pop %v1185
    %v1219 = vmul.f32 1.0, %v1218
    %v1220 = vrcp.pop %v1186
    %v1221 = vmul.f32 1.0, %v1220
    %v1222 = vrcp.pop %v1187
    %v1223 = vmul.f32 1.0, %v1222
    %v1224 = vrcp.pop %v1188
    %v1225 = vmul.f32 1.0, %v1224
    %v1226 = vrcp.pop %v1189
    %v1227 = vmul.f32 1.0, %v1226
    %v1228 = vrcp.pop %v1190
    %v1229 = vmul.f32 1.0, %v1228
    %v1230 = vrcp.pop %v1191
    %v1231 = vmul.f32 1.0, %v1230
    %v1232 = vrcp.pop %v1192
    %v1233 = vmul.f32 1.0, %v1232
    %v1234 = vrcp.pop %v1193
    %v1235 = vmul.f32 1.0, %v1234
    %v1236 = vrcp.pop %v1194
    %v1237 = vmul.f32 1.0, %v1236
    %v1238 = vrcp.pop %v1195
    %v1239 = vmul.f32 1.0, %v1238
    %v1240 = vrcp.pop %v1196
    %v1241 = vmul.f32 1.0, %v1240
    %v1242 = vrcp.pop %v1197
    %v1243 = vmul.f32 1.0, %v1242
    %v1244 = vrcp.pop %v1198
    %v1245 = vmul.f32 1.0, %v1244
    %v1246 = vrcp.pop %v1199
    %v1247 = vmul.f32 1.0, %v1246
    %v1248 = vrcp.pop %v1200
    %v1249 = vmul.f32 1.0, %v1248
    %v1250 = vrcp.pop %v1201
    %v1251 = vmul.f32 1.0, %v1250
    %v1252 = vmul.f32 %v979, %v1203
    %v1253 = vmul.f32 %v984, %v1205
    %v1254 = vmul.f32 %v989, %v1207
    %v1255 = vmul.f32 %v994, %v1209
    %v1256 = vmul.f32 %v999, %v1211
    %v1257 = vmul.f32 %v1004, %v1213
    %v1258 = vmul.f32 %v1009, %v1215
    %v1259 = vmul.f32 %v1014, %v1217
    %v1260 = vmul.f32 %v1019, %v1219
    %v1261 = vmul.f32 %v1024, %v1221
    %v1262 = vmul.f32 %v1029, %v1223
    %v1263 = vmul.f32 %v1034, %v1225
    %v1264 = vmul.f32 %v1039, %v1227
    %v1265 = vmul.f32 %v1044, %v1229
    %v1266 = vmul.f32 %v1049, %v1231
    %v1267 = vmul.f32 %v1054, %v1233
    %v1268 = vmul.f32 %v1059, %v1235
    %v1269 = vmul.f32 %v1064, %v1237
    %v1270 = vmul.f32 %v1069, %v1239
    %v1271 = vmul.f32 %v1074, %v1241
    %v1272 = vmul.f32 %v1079, %v1243
    %v1273 = vmul.f32 %v1084, %v1245
    %v1274 = vmul.f32 %v1089, %v1247
    %v1275 = vmul.f32 %v1094, %v1249
    %v1276 = vmul.f32 %v1099, %v1251
    %v1277 = vld [vmem:[#allocation2 + $0x110] sm:$0xff]
    %v1278 = vld [vmem:[#allocation2 + $0x118] sm:$0xff]
    %v1279 = vld [vmem:[#allocation2 + $0x120] sm:$0xff]
    %v1280 = vld [vmem:[#allocation2 + $0x128] sm:$0xff]
    %v1281 = vld [vmem:[#allocation2 + $0x130] sm:$0xff]
    %v1282 = vld [vmem:[#allocation2 + $0x138] sm:$0xff]
    %v1283 = vld [vmem:[#allocation2 + $0x140] sm:$0xff]
    %v1284 = vld [vmem:[#allocation2 + $0x148] sm:$0xff]
    %v1285 = vld [vmem:[#allocation2 + $0x150] sm:$0xff]
    %v1286 = vld [vmem:[#allocation2 + $0x158] sm:$0xff]
    %v1287 = vld [vmem:[#allocation2 + $0x160] sm:$0xff]
    %v1288 = vld [vmem:[#allocation2 + $0x168] sm:$0xff]
    %v1289 = vld [vmem:[#allocation2 + $0x170] sm:$0xff]
    %v1290 = vld [vmem:[#allocation2 + $0x178] sm:$0xff]
    %v1291 = vld [vmem:[#allocation2 + $0x180] sm:$0xff]
    %v1292 = vld [vmem:[#allocation2 + $0x188] sm:$0xff]
    %v1293 = vld [vmem:[#allocation2 + $0x190] sm:$0x1]
    %v1294 = vlaneseq
    %v1295 = vshrl.u32 %v1294, 7
    %v1296 = vsub.s32 0, %v1295
    %v1297 = vrot.slane %v1293, %v1296
    %1298 = vmatprep.subr.mxu0 0.0
    %1299 = vmatpush1.msra.mxu0 %v1277
    %1300 = vmatprep.subr.mxu0 0.0
    %1301 = vmatpush1.msra.mxu0 %v1278
    %1302 = vmatprep.subr.mxu0 0.0
    %1303 = vmatpush1.msra.mxu0 %v1279
    %1304 = vmatprep.subr.mxu0 0.0
    %1305 = vmatpush1.msra.mxu0 %v1280
    %1306 = vmatprep.subr.mxu0 0.0
    %1307 = vmatpush1.msra.mxu0 %v1281
    %1308 = vmatprep.subr.mxu0 0.0
    %1309 = vmatpush1.msra.mxu0 %v1282
    %1310 = vmatprep.subr.mxu0 0.0
    %1311 = vmatpush1.msra.mxu0 %v1283
    %1312 = vmatprep.subr.mxu0 0.0
    %1313 = vmatpush1.msra.mxu0 %v1284
    %1314 = vmatprep.subr.mxu0 0.0
    %1315 = vmatpush1.msra.mxu0 %v1285
    %1316 = vmatprep.subr.mxu0 0.0
    %1317 = vmatpush1.msra.mxu0 %v1286
    %1318 = vmatprep.subr.mxu0 0.0
    %1319 = vmatpush1.msra.mxu0 %v1287
    %1320 = vmatprep.subr.mxu0 0.0
    %1321 = vmatpush1.msra.mxu0 %v1288
    %1322 = vmatprep.subr.mxu0 0.0
    %1323 = vmatpush1.msra.mxu0 %v1289
    %1324 = vmatprep.subr.mxu0 0.0
    %1325 = vmatpush1.msra.mxu0 %v1290
    %1326 = vmatprep.subr.mxu0 0.0
    %1327 = vmatpush1.msra.mxu0 %v1291
    %1328 = vmatprep.subr.mxu0 0.0
    %1329 = vmatpush1.msra.mxu0 %v1292
    %1330 = vmatprep.subr.mxu0 0.0
    %1331 = vmatpush1.msra.mxu0 0.0
    %1332 = vmatprep.subr.mxu0 0.0
    %1333 = vmatpush1.msra.mxu0 0.0
    %1334 = vmatprep.subr.mxu0 0.0
    %1335 = vmatpush1.msra.mxu0 0.0
    %1336 = vmatprep.subr.mxu0 0.0
    %1337 = vmatpush1.msra.mxu0 0.0
    %1338 = vmatprep.subr.mxu0 0.0
    %1339 = vmatpush1.msra.mxu0 0.0
    %1340 = vmatprep.subr.mxu0 0.0
    %1341 = vmatpush1.msra.mxu0 0.0
    %1342 = vmatprep.subr.mxu0 0.0
    %1343 = vmatpush1.msra.mxu0 0.0
    %1344 = vmatprep.subr.mxu0 0.0
    %1345 = vmatpush1.msra.mxu0 0.0
    %1346 = vmatprep.subr.mxu0 0.0
    %1347 = vmatpush1.msra.mxu0 0.0
    %1348 = vmatprep.subr.mxu0 0.0
    %1349 = vmatpush1.msra.mxu0 0.0
    %1350 = vmatprep.subr.mxu0 0.0
    %1351 = vmatpush1.msra.mxu0 0.0
    %1352 = vmatprep.subr.mxu0 0.0
    %1353 = vmatpush1.msra.mxu0 0.0
    %1354 = vmatprep.subr.mxu0 0.0
    %1355 = vmatpush1.msra.mxu0 0.0
    %1356 = vmatprep.subr.mxu0 0.0
    %1357 = vmatpush1.msra.mxu0 0.0
    %1358 = vmatprep.subr.mxu0 0.0
    %1359 = vmatpush1.msra.mxu0 0.0
    %1360 = vmatprep.subr.mxu0 0.0
    %1361 = vmatpush1.msra.mxu0 0.0
    %1362 = vmatprep.mubr.f32.mxu0 0.0
    %1363 = vmatmul.mubr.f32.gmra.mrb[0].mxu0 %v1252
    %v1364 = vpop.f32.mrb[0].mxu0
    %v1365 = vadd.f32 %v1297, %v1364
    %v1366 = vpop.f32.mrb[0].mxu0
    %1367 = vmatprep.mubr.f32.mxu0 0.0
    %1368 = vmatmul.mubr.f32.gmra.mrb[0].mxu0 %v1253
    %v1369 = vpop.f32.mrb[0].mxu0
    %v1370 = vadd.f32 %v1297, %v1369
    %v1371 = vpop.f32.mrb[0].mxu0
    %1372 = vmatprep.mubr.f32.mxu0 0.0
    %1373 = vmatmul.mubr.f32.gmra.mrb[0].mxu0 %v1254
    %v1374 = vpop.f32.mrb[0].mxu0
    %v1375 = vadd.f32 %v1297, %v1374
    %v1376 = vpop.f32.mrb[0].mxu0
    %1377 = vmatprep.mubr.f32.mxu0 0.0
    %1378 = vmatmul.mubr.f32.gmra.mrb[0].mxu0 %v1255
    %v1379 = vpop.f32.mrb[0].mxu0
    %v1380 = vadd.f32 %v1297, %v1379
    %v1381 = vpop.f32.mrb[0].mxu0
    %1382 = vmatprep.mubr.f32.mxu0 0.0
    %1383 = vmatmul.mubr.f32.gmra.mrb[0].mxu0 %v1256
    %v1384 = vpop.f32.mrb[0].mxu0
    %v1385 = vadd.f32 %v1297, %v1384
    %v1386 = vpop.f32.mrb[0].mxu0
    %1387 = vmatprep.mubr.f32.mxu0 0.0
    %1388 = vmatmul.mubr.f32.gmra.mrb[0].mxu0 %v1257
    %v1389 = vpop.f32.mrb[0].mxu0
    %v1390 = vadd.f32 %v1297, %v1389
    %v1391 = vpop.f32.mrb[0].mxu0
    %1392 = vmatprep.mubr.f32.mxu0 0.0
    %1393 = vmatmul.mubr.f32.gmra.mrb[0].mxu0 %v1258
    %v1394 = vpop.f32.mrb[0].mxu0
    %v1395 = vadd.f32 %v1297, %v1394
    %v1396 = vpop.f32.mrb[0].mxu0
    %1397 = vmatprep.mubr.f32.mxu0 0.0
    %1398 = vmatmul.mubr.f32.gmra.mrb[0].mxu0 %v1259
    %v1399 = vpop.f32.mrb[0].mxu0
    %v1400 = vadd.f32 %v1297, %v1399
    %v1401 = vpop.f32.mrb[0].mxu0
    %1402 = vmatprep.mubr.f32.mxu0 0.0
    %1403 = vmatmul.mubr.f32.gmra.mrb[0].mxu0 %v1260
    %v1404 = vpop.f32.mrb[0].mxu0
    %v1405 = vadd.f32 %v1297, %v1404
    %v1406 = vpop.f32.mrb[0].mxu0
    %1407 = vmatprep.mubr.f32.mxu0 0.0
    %1408 = vmatmul.mubr.f32.gmra.mrb[0].mxu0 %v1261
    %v1409 = vpop.f32.mrb[0].mxu0
    %v1410 = vadd.f32 %v1297, %v1409
    %v1411 = vpop.f32.mrb[0].mxu0
    %1412 = vmatprep.mubr.f32.mxu0 0.0
    %1413 = vmatmul.mubr.f32.gmra.mrb[0].mxu0 %v1262
    %v1414 = vpop.f32.mrb[0].mxu0
    %v1415 = vadd.f32 %v1297, %v1414
    %v1416 = vpop.f32.mrb[0].mxu0
    %1417 = vmatprep.mubr.f32.mxu0 0.0
    %1418 = vmatmul.mubr.f32.gmra.mrb[0].mxu0 %v1263
    %v1419 = vpop.f32.mrb[0].mxu0
    %v1420 = vadd.f32 %v1297, %v1419
    %v1421 = vpop.f32.mrb[0].mxu0
    %1422 = vmatprep.mubr.f32.mxu0 0.0
    %1423 = vmatmul.mubr.f32.gmra.mrb[0].mxu0 %v1264
    %v1424 = vpop.f32.mrb[0].mxu0
    %v1425 = vadd.f32 %v1297, %v1424
    %v1426 = vpop.f32.mrb[0].mxu0
    %1427 = vmatprep.mubr.f32.mxu0 0.0
    %1428 = vmatmul.mubr.f32.gmra.mrb[0].mxu0 %v1265
    %v1429 = vpop.f32.mrb[0].mxu0
    %v1430 = vadd.f32 %v1297, %v1429
    %v1431 = vpop.f32.mrb[0].mxu0
    %1432 = vmatprep.mubr.f32.mxu0 0.0
    %1433 = vmatmul.mubr.f32.gmra.mrb[0].mxu0 %v1266
    %v1434 = vpop.f32.mrb[0].mxu0
    %v1435 = vadd.f32 %v1297, %v1434
    %v1436 = vpop.f32.mrb[0].mxu0
    %1437 = vmatprep.mubr.f32.mxu0 0.0
    %1438 = vmatmul.mubr.f32.gmra.mrb[0].mxu0 %v1267
    %v1439 = vpop.f32.mrb[0].mxu0
    %v1440 = vadd.f32 %v1297, %v1439
    %v1441 = vpop.f32.mrb[0].mxu0
    %1442 = vmatprep.mubr.f32.mxu0 0.0
    %1443 = vmatmul.mubr.f32.gmra.mrb[0].mxu0 %v1268
    %v1444 = vpop.f32.mrb[0].mxu0
    %v1445 = vadd.f32 %v1297, %v1444
    %v1446 = vpop.f32.mrb[0].mxu0
    %1447 = vmatprep.mubr.f32.mxu0 0.0
    %1448 = vmatmul.mubr.f32.gmra.mrb[0].mxu0 %v1269
    %v1449 = vpop.f32.mrb[0].mxu0
    %v1450 = vadd.f32 %v1297, %v1449
    %v1451 = vpop.f32.mrb[0].mxu0
    %1452 = vmatprep.mubr.f32.mxu0 0.0
    %1453 = vmatmul.mubr.f32.gmra.mrb[0].mxu0 %v1270
    %v1454 = vpop.f32.mrb[0].mxu0
    %v1455 = vadd.f32 %v1297, %v1454
    %v1456 = vpop.f32.mrb[0].mxu0
    %1457 = vmatprep.mubr.f32.mxu0 0.0
    %1458 = vmatmul.mubr.f32.gmra.mrb[0].mxu0 %v1271
    %v1459 = vpop.f32.mrb[0].mxu0
    %v1460 = vadd.f32 %v1297, %v1459
    %v1461 = vpop.f32.mrb[0].mxu0
    %1462 = vmatprep.mubr.f32.mxu0 0.0
    %1463 = vmatmul.mubr.f32.gmra.mrb[0].mxu0 %v1272
    %v1464 = vpop.f32.mrb[0].mxu0
    %v1465 = vadd.f32 %v1297, %v1464
    %v1466 = vpop.f32.mrb[0].mxu0
    %1467 = vmatprep.mubr.f32.mxu0 0.0
    %1468 = vmatmul.mubr.f32.gmra.mrb[0].mxu0 %v1273
    %v1469 = vpop.f32.mrb[0].mxu0
    %v1470 = vadd.f32 %v1297, %v1469
    %v1471 = vpop.f32.mrb[0].mxu0
    %1472 = vmatprep.mubr.f32.mxu0 0.0
    %1473 = vmatmul.mubr.f32.gmra.mrb[0].mxu0 %v1274
    %v1474 = vpop.f32.mrb[0].mxu0
    %v1475 = vadd.f32 %v1297, %v1474
    %v1476 = vpop.f32.mrb[0].mxu0
    %1477 = vmatprep.mubr.f32.mxu0 0.0
    %1478 = vmatmul.mubr.f32.gmra.mrb[0].mxu0 %v1275
    %v1479 = vpop.f32.mrb[0].mxu0
    %v1480 = vadd.f32 %v1297, %v1479
    %v1481 = vpop.f32.mrb[0].mxu0
    %1482 = vmatprep.mubr.f32.mxu0 0.0
    %1483 = vmatmul.mubr.f32.gmra.mrb[0].mxu0 %v1276
    %v1484 = vpop.f32.mrb[0].mxu0
    %v1485 = vadd.f32 %v1297, %v1484
    %v1486 = vpop.f32.mrb[0].mxu0
    %1487 = vdwg.mxu0
    %1488 = vst [vmem:[#allocation5] sm:$0xff] %v1365
    %1489 = vst [vmem:[#allocation5 + $0x8] sm:$0xff] %v1370
    %1490 = vst [vmem:[#allocation5 + $0x10] sm:$0xff] %v1375
    %1491 = vst [vmem:[#allocation5 + $0x18] sm:$0xff] %v1380
    %1492 = vst [vmem:[#allocation5 + $0x20] sm:$0xff] %v1385
    %1493 = vst [vmem:[#allocation5 + $0x28] sm:$0xff] %v1390
    %1494 = vst [vmem:[#allocation5 + $0x30] sm:$0xff] %v1395
    %1495 = vst [vmem:[#allocation5 + $0x38] sm:$0xff] %v1400
    %1496 = vst [vmem:[#allocation5 + $0x40] sm:$0xff] %v1405
    %1497 = vst [vmem:[#allocation5 + $0x48] sm:$0xff] %v1410
    %1498 = vst [vmem:[#allocation5 + $0x50] sm:$0xff] %v1415
    %1499 = vst [vmem:[#allocation5 + $0x58] sm:$0xff] %v1420
    %1500 = vst [vmem:[#allocation5 + $0x60] sm:$0xff] %v1425
    %1501 = vst [vmem:[#allocation5 + $0x68] sm:$0xff] %v1430
    %1502 = vst [vmem:[#allocation5 + $0x70] sm:$0xff] %v1435
    %1503 = vst [vmem:[#allocation5 + $0x78] sm:$0xff] %v1440
    %1504 = vst [vmem:[#allocation5 + $0x80] sm:$0xff] %v1445
    %1505 = vst [vmem:[#allocation5 + $0x88] sm:$0xff] %v1450
    %1506 = vst [vmem:[#allocation5 + $0x90] sm:$0xff] %v1455
    %1507 = vst [vmem:[#allocation5 + $0x98] sm:$0xff] %v1460
    %1508 = vst [vmem:[#allocation5 + $0xa0] sm:$0xff] %v1465
    %1509 = vst [vmem:[#allocation5 + $0xa8] sm:$0xff] %v1470
    %1510 = vst [vmem:[#allocation5 + $0xb0] sm:$0xff] %v1475
    %1511 = vst [vmem:[#allocation5 + $0xb8] sm:$0xff] %v1480
    %1512 = vst [vmem:[#allocation5 + $0xc0] sm:$0xff] %v1485
    // Predicated region
    $region18: #{tpu_custom_call.1} parent=1 // pred_check
      _
    $region19: #{tpu_custom_call.1} parent=1 // pred_check_branch
      %1514 = sbr.rel (0) target = $region21
    $region20: #{tpu_custom_call.1} parent=1 // pred_region
      %s1516 = ssub.s32 3200, 3200
      %1517 = vsyncadd [#allocation4], %s1516
      %s1518 = sshll.u32 [#allocation5], 4
      %s1519 = int_to_ptr.vmem [resolvable:$true] %s1518
      %1524 = dma.vmem_to_hbm [thread:$0]  %s1519, 3200, %s3, [#allocation4], 128, 128, 8
    $region21: #{tpu_custom_call.1} parent=1 // pred_fallthru
      _
    // Predicated region
    $region22: #{tpu_custom_call.1} parent=1 // pred_check
      _
    $region23: #{tpu_custom_call.1} parent=1 // pred_check_branch
      %1526 = sbr.rel (0) target = $region25
    $region24: #{tpu_custom_call.1} parent=1 // pred_region
      %1527 = dma.done [#allocation4], 3200
    $region25: #{tpu_custom_call.1} parent=1 // pred_fallthru
      _
    %1528 = vsyncpa [#allocation3], 1
    %1529 = vsyncpa [#allocation4], 1

// kernel: tpu_custom_call.1
$region0: #{tpu_custom_call.1}
  #allocation0 [shape = 'u32[]', space=smem, size = 0x4, offset = 0x4, fixed_abs, tag = 'smem constant byte address 0x4 - core index']
  #allocation1 [shape = 'u32[144,128]{1,0:T(1,128)}', space=vmem, size = 0x12000, scoped, tag = 'internal scratch']
  %s0 = inlined_call_operand.vmem [shape: f32[200,40], index: 0, kind: input, shape index: {}]
  %s1 = inlined_call_operand.vmem [shape: f32[48,128], index: 1, kind: input, shape index: {}]
  %s2 = inlined_call_operand.hbm [shape: f32[408,128], index: 2, kind: input, shape index: {}]
  %s3 = inlined_call_operand.hbm [shape: f32[200,128], index: 3, kind: output, shape index: {}]
  %s4 = sld [smem:[#allocation0]]
  $region26: #{tpu_custom_call.1} parent=0
    _
  %s6 = ssub.s32 1, %s4
  %s7 = scalar_select 0, %s6, %s4
  $region1: #{tpu_custom_call.1} parent=0
    #allocation2 [shape = 'u8[208896]{0}', space=vmem, size = 0x33000, scoped, tag = 'input window, operand 2, single buffered']
    #allocation3 [shape = 's32[1]{0}', space=sflag, size = 0x4, scoped, tag = 'scoped memory for tpu_custom_call.1']
    #allocation4 [shape = 's32[1]{0}', space=sflag, size = 0x4, scoped, tag = 'scoped memory for tpu_custom_call.1']
    #allocation5 [shape = 'u8[102400]{0}', space=vmem, size = 0x19000, scoped, tag = 'output window, operand 0, single buffered']
    %8 = vsyncpa [#allocation3], 0
    %9 = vsyncpa [#allocation4], 0
    // Predicated region
    $region2: #{tpu_custom_call.1} parent=1 // pred_check
      _
    $region3: #{tpu_custom_call.1} parent=1 // pred_check_branch
      %11 = sbr.rel (0) target = $region5
    $region4: #{tpu_custom_call.1} parent=1 // pred_region
      _
    $region5: #{tpu_custom_call.1} parent=1 // pred_fallthru
      _
    // Predicated region
    $region6: #{tpu_custom_call.1} parent=1 // pred_check
      _
    $region7: #{tpu_custom_call.1} parent=1 // pred_check_branch
      %13 = sbr.rel (0) target = $region9
    $region8: #{tpu_custom_call.1} parent=1 // pred_region
      _
    $region9: #{tpu_custom_call.1} parent=1 // pred_fallthru
      _
    // Predicated region
    $region10: #{tpu_custom_call.1} parent=1 // pred_check
      _
    $region11: #{tpu_custom_call.1} parent=1 // pred_check_branch
      %15 = sbr.rel (0) target = $region13
    $region12: #{tpu_custom_call.1} parent=1 // pred_region
      %s17 = ssub.s32 6528, 6528
      %18 = vsyncadd [#allocation3], %s17
      %s19 = sshll.u32 [#allocation2], 4
      %s20 = int_to_ptr.vmem [resolvable:$true] %s19
      %25 = dma.hbm_to_vmem [thread:$0]  %s2, 6528, %s20, [#allocation3], 128, 128, 8
    $region13: #{tpu_custom_call.1} parent=1 // pred_fallthru
      _
    // Predicated region
    $region14: #{tpu_custom_call.1} parent=1 // pred_check
      _
    $region15: #{tpu_custom_call.1} parent=1 // pred_check_branch
      %27 = sbr.rel (0) target = $region17
    $region16: #{tpu_custom_call.1} parent=1 // pred_region
      %28 = dma.done [#allocation3], 6528
    $region17: #{tpu_custom_call.1} parent=1 // pred_fallthru
      _
    %v29 = vld [vmem:[%s0] sm:$0xff]
    %v30 = vld [vmem:[%s0 + $0x8] sm:$0xff]
    %v31 = vld [vmem:[%s0 + $0x10] sm:$0xff]
    %v32 = vld [vmem:[%s0 + $0x18] sm:$0xff]
    %v33 = vld [vmem:[%s0 + $0x20] sm:$0xff]
    %v34 = vld [vmem:[%s0 + $0x28] sm:$0xff]
    %v35 = vld [vmem:[%s0 + $0x30] sm:$0xff]
    %v36 = vld [vmem:[%s0 + $0x38] sm:$0xff]
    %v37 = vld [vmem:[%s0 + $0x40] sm:$0xff]
    %v38 = vld [vmem:[%s0 + $0x48] sm:$0xff]
    %v39 = vld [vmem:[%s0 + $0x50] sm:$0xff]
    %v40 = vld [vmem:[%s0 + $0x58] sm:$0xff]
    %v41 = vld [vmem:[%s0 + $0x60] sm:$0xff]
    %v42 = vld [vmem:[%s0 + $0x68] sm:$0xff]
    %v43 = vld [vmem:[%s0 + $0x70] sm:$0xff]
    %v44 = vld [vmem:[%s0 + $0x78] sm:$0xff]
    %v45 = vld [vmem:[%s0 + $0x80] sm:$0xff]
    %v46 = vld [vmem:[%s0 + $0x88] sm:$0xff]
    %v47 = vld [vmem:[%s0 + $0x90] sm:$0xff]
    %v48 = vld [vmem:[%s0 + $0x98] sm:$0xff]
    %v49 = vld [vmem:[%s0 + $0xa0] sm:$0xff]
    %v50 = vld [vmem:[%s0 + $0xa8] sm:$0xff]
    %v51 = vld [vmem:[%s0 + $0xb0] sm:$0xff]
    %v52 = vld [vmem:[%s0 + $0xb8] sm:$0xff]
    %v53 = vld [vmem:[%s0 + $0xc0] sm:$0xff]
    %v54 = vld [vmem:[%s1] sm:$0xff]
    %v55 = vld [vmem:[%s1 + $0x8] sm:$0xff]
    %v56 = vld [vmem:[%s1 + $0x10] sm:$0xff]
    %v57 = vld [vmem:[%s1 + $0x18] sm:$0xff]
    %v58 = vld [vmem:[%s1 + $0x20] sm:$0xff]
    %v59 = vld [vmem:[%s1 + $0x28] sm:$0x1]
    %v60 = vlaneseq
    %v61 = vshrl.u32 %v60, 7
    %v62 = vsub.s32 0, %v61
    %v63 = vrot.slane %v59, %v62
    %vm64 = vcmask 326656
    %v66 = vsel %vm64, %v29, 0
    %v69 = vsel %vm64, %v30, 0
    %v72 = vsel %vm64, %v31, 0
    %v75 = vsel %vm64, %v32, 0
    %v78 = vsel %vm64, %v33, 0
    %v81 = vsel %vm64, %v34, 0
    %v84 = vsel %vm64, %v35, 0
    %v87 = vsel %vm64, %v36, 0
    %v90 = vsel %vm64, %v37, 0
    %v93 = vsel %vm64, %v38, 0
    %v96 = vsel %vm64, %v39, 0
    %v99 = vsel %vm64, %v40, 0
    %v102 = vsel %vm64, %v41, 0
    %v105 = vsel %vm64, %v42, 0
    %v108 = vsel %vm64, %v43, 0
    %v111 = vsel %vm64, %v44, 0
    %v114 = vsel %vm64, %v45, 0
    %v117 = vsel %vm64, %v46, 0
    %v120 = vsel %vm64, %v47, 0
    %v123 = vsel %vm64, %v48, 0
    %v126 = vsel %vm64, %v49, 0
    %v129 = vsel %vm64, %v50, 0
    %v132 = vsel %vm64, %v51, 0
    %v135 = vsel %vm64, %v52, 0
    %v138 = vsel %vm64, %v53, 0
    %140 = vmatprep.subr.mxu0 0.0
    %141 = vmatpush1.msra.mxu0 %v54
    %142 = vmatprep.subr.mxu0 0.0
    %143 = vmatpush1.msra.mxu0 %v55
    %144 = vmatprep.subr.mxu0 0.0
    %145 = vmatpush1.msra.mxu0 %v56
    %146 = vmatprep.subr.mxu0 0.0
    %147 = vmatpush1.msra.mxu0 %v57
    %148 = vmatprep.subr.mxu0 0.0
    %149 = vmatpush1.msra.mxu0 %v58
    %150 = vmatprep.subr.mxu0 0.0
    %151 = vmatpush1.msra.mxu0 0.0
    %152 = vmatprep.subr.mxu0 0.0
    %153 = vmatpush1.msra.mxu0 0.0
    %154 = vmatprep.subr.mxu0 0.0
    %155 = vmatpush1.msra.mxu0 0.0
    %156 = vmatprep.subr.mxu0 0.0
    %157 = vmatpush1.msra.mxu0 0.0
    %158 = vmatprep.subr.mxu0 0.0
    %159 = vmatpush1.msra.mxu0 0.0
    %160 = vmatprep.subr.mxu0 0.0
    %161 = vmatpush1.msra.mxu0 0.0
    %162 = vmatprep.subr.mxu0 0.0
    %163 = vmatpush1.msra.mxu0 0.0
    %164 = vmatprep.subr.mxu0 0.0
    %165 = vmatpush1.msra.mxu0 0.0
    %166 = vmatprep.subr.mxu0 0.0
    %167 = vmatpush1.msra.mxu0 0.0
    %168 = vmatprep.subr.mxu0 0.0
    %169 = vmatpush1.msra.mxu0 0.0
    %170 = vmatprep.subr.mxu0 0.0
    %171 = vmatpush1.msra.mxu0 0.0
    %172 = vmatprep.subr.mxu0 0.0
    %173 = vmatpush1.msra.mxu0 0.0
    %174 = vmatprep.subr.mxu0 0.0
    %175 = vmatpush1.msra.mxu0 0.0
    %176 = vmatprep.subr.mxu0 0.0
    %177 = vmatpush1.msra.mxu0 0.0
    %178 = vmatprep.subr.mxu0 0.0
    %179 = vmatpush1.msra.mxu0 0.0
    %180 = vmatprep.subr.mxu0 0.0
    %181 = vmatpush1.msra.mxu0 0.0
    %182 = vmatprep.subr.mxu0 0.0
    %183 = vmatpush1.msra.mxu0 0.0
    %184 = vmatprep.subr.mxu0 0.0
    %185 = vmatpush1.msra.mxu0 0.0
    %186 = vmatprep.subr.mxu0 0.0
    %187 = vmatpush1.msra.mxu0 0.0
    %188 = vmatprep.subr.mxu0 0.0
    %189 = vmatpush1.msra.mxu0 0.0
    %190 = vmatprep.subr.mxu0 0.0
    %191 = vmatpush1.msra.mxu0 0.0
    %192 = vmatprep.subr.mxu0 0.0
    %193 = vmatpush1.msra.mxu0 0.0
    %194 = vmatprep.subr.mxu0 0.0
    %195 = vmatpush1.msra.mxu0 0.0
    %196 = vmatprep.subr.mxu0 0.0
    %197 = vmatpush1.msra.mxu0 0.0
    %198 = vmatprep.subr.mxu0 0.0
    %199 = vmatpush1.msra.mxu0 0.0
    %200 = vmatprep.subr.mxu0 0.0
    %201 = vmatpush1.msra.mxu0 0.0
    %202 = vmatprep.subr.mxu0 0.0
    %203 = vmatpush1.msra.mxu0 0.0
    %204 = vmatprep.mubr.f32.mxu0 0.0
    %205 = vmatmul.mubr.f32.gmra.mrb[0].mxu0 %v66
    %v206 = vpop.f32.mrb[0].mxu0
    %v207 = vadd.f32 %v63, %v206
    %v208 = vpop.f32.mrb[0].mxu0
    %209 = vmatprep.mubr.f32.mxu0 0.0
    %210 = vmatmul.mubr.f32.gmra.mrb[0].mxu0 %v69
    %v211 = vpop.f32.mrb[0].mxu0
    %v212 = vadd.f32 %v63, %v211
    %v213 = vpop.f32.mrb[0].mxu0
    %214 = vmatprep.mubr.f32.mxu0 0.0
    %215 = vmatmul.mubr.f32.gmra.mrb[0].mxu0 %v72
    %v216 = vpop.f32.mrb[0].mxu0
    %v217 = vadd.f32 %v63, %v216
    %v218 = vpop.f32.mrb[0].mxu0
    %219 = vmatprep.mubr.f32.mxu0 0.0
    %220 = vmatmul.mubr.f32.gmra.mrb[0].mxu0 %v75
    %v221 = vpop.f32.mrb[0].mxu0
    %v222 = vadd.f32 %v63, %v221
    %v223 = vpop.f32.mrb[0].mxu0
    %224 = vmatprep.mubr.f32.mxu0 0.0
    %225 = vmatmul.mubr.f32.gmra.mrb[0].mxu0 %v78
    %v226 = vpop.f32.mrb[0].mxu0
    %v227 = vadd.f32 %v63, %v226
    %v228 = vpop.f32.mrb[0].mxu0
    %229 = vmatprep.mubr.f32.mxu0 0.0
    %230 = vmatmul.mubr.f32.gmra.mrb[0].mxu0 %v81
    %v231 = vpop.f32.mrb[0].mxu0
    %v232 = vadd.f32 %v63, %v231
    %v233 = vpop.f32.mrb[0].mxu0
    %234 = vmatprep.mubr.f32.mxu0 0.0
    %235 = vmatmul.mubr.f32.gmra.mrb[0].mxu0 %v84
    %v236 = vpop.f32.mrb[0].mxu0
    %v237 = vadd.f32 %v63, %v236
    %v238 = vpop.f32.mrb[0].mxu0
    %239 = vmatprep.mubr.f32.mxu0 0.0
    %240 = vmatmul.mubr.f32.gmra.mrb[0].mxu0 %v87
    %v241 = vpop.f32.mrb[0].mxu0
    %v242 = vadd.f32 %v63, %v241
    %v243 = vpop.f32.mrb[0].mxu0
    %244 = vmatprep.mubr.f32.mxu0 0.0
    %245 = vmatmul.mubr.f32.gmra.mrb[0].mxu0 %v90
    %v246 = vpop.f32.mrb[0].mxu0
    %v247 = vadd.f32 %v63, %v246
    %v248 = vpop.f32.mrb[0].mxu0
    %249 = vmatprep.mubr.f32.mxu0 0.0
    %250 = vmatmul.mubr.f32.gmra.mrb[0].mxu0 %v93
    %v251 = vpop.f32.mrb[0].mxu0
    %v252 = vadd.f32 %v63, %v251
    %v253 = vpop.f32.mrb[0].mxu0
    %254 = vmatprep.mubr.f32.mxu0 0.0
    %255 = vmatmul.mubr.f32.gmra.mrb[0].mxu0 %v96
    %v256 = vpop.f32.mrb[0].mxu0
    %v257 = vadd.f32 %v63, %v256
    %v258 = vpop.f32.mrb[0].mxu0
    %259 = vmatprep.mubr.f32.mxu0 0.0
    %260 = vmatmul.mubr.f32.gmra.mrb[0].mxu0 %v99
    %v261 = vpop.f32.mrb[0].mxu0
    %v262 = vadd.f32 %v63, %v261
    %v263 = vpop.f32.mrb[0].mxu0
    %264 = vmatprep.mubr.f32.mxu0 0.0
    %265 = vmatmul.mubr.f32.gmra.mrb[0].mxu0 %v102
    %v266 = vpop.f32.mrb[0].mxu0
    %v267 = vadd.f32 %v63, %v266
    %v268 = vpop.f32.mrb[0].mxu0
    %269 = vmatprep.mubr.f32.mxu0 0.0
    %270 = vmatmul.mubr.f32.gmra.mrb[0].mxu0 %v105
    %v271 = vpop.f32.mrb[0].mxu0
    %v272 = vadd.f32 %v63, %v271
    %v273 = vpop.f32.mrb[0].mxu0
    %274 = vmatprep.mubr.f32.mxu0 0.0
    %275 = vmatmul.mubr.f32.gmra.mrb[0].mxu0 %v108
    %v276 = vpop.f32.mrb[0].mxu0
    %v277 = vadd.f32 %v63, %v276
    %v278 = vpop.f32.mrb[0].mxu0
    %279 = vmatprep.mubr.f32.mxu0 0.0
    %280 = vmatmul.mubr.f32.gmra.mrb[0].mxu0 %v111
    %v281 = vpop.f32.mrb[0].mxu0
    %v282 = vadd.f32 %v63, %v281
    %v283 = vpop.f32.mrb[0].mxu0
    %284 = vmatprep.mubr.f32.mxu0 0.0
    %285 = vmatmul.mubr.f32.gmra.mrb[0].mxu0 %v114
    %v286 = vpop.f32.mrb[0].mxu0
    %v287 = vadd.f32 %v63, %v286
    %v288 = vpop.f32.mrb[0].mxu0
    %289 = vmatprep.mubr.f32.mxu0 0.0
    %290 = vmatmul.mubr.f32.gmra.mrb[0].mxu0 %v117
    %v291 = vpop.f32.mrb[0].mxu0
    %v292 = vadd.f32 %v63, %v291
    %v293 = vpop.f32.mrb[0].mxu0
    %294 = vmatprep.mubr.f32.mxu0 0.0
    %295 = vmatmul.mubr.f32.gmra.mrb[0].mxu0 %v120
    %v296 = vpop.f32.mrb[0].mxu0
    %v297 = vadd.f32 %v63, %v296
    %v298 = vpop.f32.mrb[0].mxu0
    %299 = vmatprep.mubr.f32.mxu0 0.0
    %300 = vmatmul.mubr.f32.gmra.mrb[0].mxu0 %v123
    %v301 = vpop.f32.mrb[0].mxu0
    %v302 = vadd.f32 %v63, %v301
    %v303 = vpop.f32.mrb[0].mxu0
    %304 = vmatprep.mubr.f32.mxu0 0.0
    %305 = vmatmul.mubr.f32.gmra.mrb[0].mxu0 %v126
    %v306 = vpop.f32.mrb[0].mxu0
    %v307 = vadd.f32 %v63, %v306
    %v308 = vpop.f32.mrb[0].mxu0
    %309 = vmatprep.mubr.f32.mxu0 0.0
    %310 = vmatmul.mubr.f32.gmra.mrb[0].mxu0 %v129
    %v311 = vpop.f32.mrb[0].mxu0
    %v312 = vadd.f32 %v63, %v311
    %v313 = vpop.f32.mrb[0].mxu0
    %314 = vmatprep.mubr.f32.mxu0 0.0
    %315 = vmatmul.mubr.f32.gmra.mrb[0].mxu0 %v132
    %v316 = vpop.f32.mrb[0].mxu0
    %v317 = vadd.f32 %v63, %v316
    %v318 = vpop.f32.mrb[0].mxu0
    %319 = vmatprep.mubr.f32.mxu0 0.0
    %320 = vmatmul.mubr.f32.gmra.mrb[0].mxu0 %v135
    %v321 = vpop.f32.mrb[0].mxu0
    %v322 = vadd.f32 %v63, %v321
    %v323 = vpop.f32.mrb[0].mxu0
    %324 = vmatprep.mubr.f32.mxu0 0.0
    %325 = vmatmul.mubr.f32.gmra.mrb[0].mxu0 %v138
    %v326 = vpop.f32.mrb[0].mxu0
    %v327 = vadd.f32 %v63, %v326
    %v328 = vpop.f32.mrb[0].mxu0
    %329 = vdwg.mxu0
    %v330 = vxor.u32 %v207, 2147483648
    %v331 = vxor.u32 %v212, 2147483648
    %v332 = vxor.u32 %v217, 2147483648
    %v333 = vxor.u32 %v222, 2147483648
    %v334 = vxor.u32 %v227, 2147483648
    %v335 = vxor.u32 %v232, 2147483648
    %v336 = vxor.u32 %v237, 2147483648
    %v337 = vxor.u32 %v242, 2147483648
    %v338 = vxor.u32 %v247, 2147483648
    %v339 = vxor.u32 %v252, 2147483648
    %v340 = vxor.u32 %v257, 2147483648
    %v341 = vxor.u32 %v262, 2147483648
    %v342 = vxor.u32 %v267, 2147483648
    %v343 = vxor.u32 %v272, 2147483648
    %v344 = vxor.u32 %v277, 2147483648
    %v345 = vxor.u32 %v282, 2147483648
    %v346 = vxor.u32 %v287, 2147483648
    %v347 = vxor.u32 %v292, 2147483648
    %v348 = vxor.u32 %v297, 2147483648
    %v349 = vxor.u32 %v302, 2147483648
    %v350 = vxor.u32 %v307, 2147483648
    %v351 = vxor.u32 %v312, 2147483648
    %v352 = vxor.u32 %v317, 2147483648
    %v353 = vxor.u32 %v322, 2147483648
    %v354 = vxor.u32 %v327, 2147483648
    %v355 = vmul.f32 %v330, 1.442695
    %v356 = vpow.pop %v355
    %v357 = vmul.f32 %v331, 1.442695
    %v358 = vpow.pop %v357
    %v359 = vmul.f32 %v332, 1.442695
    %v360 = vpow.pop %v359
    %v361 = vmul.f32 %v333, 1.442695
    %v362 = vpow.pop %v361
    %v363 = vmul.f32 %v334, 1.442695
    %v364 = vpow.pop %v363
    %v365 = vmul.f32 %v335, 1.442695
    %v366 = vpow.pop %v365
    %v367 = vmul.f32 %v336, 1.442695
    %v368 = vpow.pop %v367
    %v369 = vmul.f32 %v337, 1.442695
    %v370 = vpow.pop %v369
    %v371 = vmul.f32 %v338, 1.442695
    %v372 = vpow.pop %v371
    %v373 = vmul.f32 %v339, 1.442695
    %v374 = vpow.pop %v373
    %v375 = vmul.f32 %v340, 1.442695
    %v376 = vpow.pop %v375
    %v377 = vmul.f32 %v341, 1.442695
    %v378 = vpow.pop %v377
    %v379 = vmul.f32 %v342, 1.442695
    %v380 = vpow.pop %v379
    %v381 = vmul.f32 %v343, 1.442695
    %v382 = vpow.pop %v381
    %v383 = vmul.f32 %v344, 1.442695
    %v384 = vpow.pop %v383
    %v385 = vmul.f32 %v345, 1.442695
    %v386 = vpow.pop %v385
    %v387 = vmul.f32 %v346, 1.442695
    %v388 = vpow.pop %v387
    %v389 = vmul.f32 %v347, 1.442695
    %v390 = vpow.pop %v389
    %v391 = vmul.f32 %v348, 1.442695
    %v392 = vpow.pop %v391
    %v393 = vmul.f32 %v349, 1.442695
    %v394 = vpow.pop %v393
    %v395 = vmul.f32 %v350, 1.442695
    %v396 = vpow.pop %v395
    %v397 = vmul.f32 %v351, 1.442695
    %v398 = vpow.pop %v397
    %v399 = vmul.f32 %v352, 1.442695
    %v400 = vpow.pop %v399
    %v401 = vmul.f32 %v353, 1.442695
    %v402 = vpow.pop %v401
    %v403 = vmul.f32 %v354, 1.442695
    %v404 = vpow.pop %v403
    %v405 = vadd.f32 %v356, 1.0
    %v406 = vadd.f32 %v358, 1.0
    %v407 = vadd.f32 %v360, 1.0
    %v408 = vadd.f32 %v362, 1.0
    %v409 = vadd.f32 %v364, 1.0
    %v410 = vadd.f32 %v366, 1.0
    %v411 = vadd.f32 %v368, 1.0
    %v412 = vadd.f32 %v370, 1.0
    %v413 = vadd.f32 %v372, 1.0
    %v414 = vadd.f32 %v374, 1.0
    %v415 = vadd.f32 %v376, 1.0
    %v416 = vadd.f32 %v378, 1.0
    %v417 = vadd.f32 %v380, 1.0
    %v418 = vadd.f32 %v382, 1.0
    %v419 = vadd.f32 %v384, 1.0
    %v420 = vadd.f32 %v386, 1.0
    %v421 = vadd.f32 %v388, 1.0
    %v422 = vadd.f32 %v390, 1.0
    %v423 = vadd.f32 %v392, 1.0
    %v424 = vadd.f32 %v394, 1.0
    %v425 = vadd.f32 %v396, 1.0
    %v426 = vadd.f32 %v398, 1.0
    %v427 = vadd.f32 %v400, 1.0
    %v428 = vadd.f32 %v402, 1.0
    %v429 = vadd.f32 %v404, 1.0
    %v430 = vrcp.pop %v405
    %v431 = vmul.f32 1.0, %v430
    %v432 = vrcp.pop %v406
    %v433 = vmul.f32 1.0, %v432
    %v434 = vrcp.pop %v407
    %v435 = vmul.f32 1.0, %v434
    %v436 = vrcp.pop %v408
    %v437 = vmul.f32 1.0, %v436
    %v438 = vrcp.pop %v409
    %v439 = vmul.f32 1.0, %v438
    %v440 = vrcp.pop %v410
    %v441 = vmul.f32 1.0, %v440
    %v442 = vrcp.pop %v411
    %v443 = vmul.f32 1.0, %v442
    %v444 = vrcp.pop %v412
    %v445 = vmul.f32 1.0, %v444
    %v446 = vrcp.pop %v413
    %v447 = vmul.f32 1.0, %v446
    %v448 = vrcp.pop %v414
    %v449 = vmul.f32 1.0, %v448
    %v450 = vrcp.pop %v415
    %v451 = vmul.f32 1.0, %v450
    %v452 = vrcp.pop %v416
    %v453 = vmul.f32 1.0, %v452
    %v454 = vrcp.pop %v417
    %v455 = vmul.f32 1.0, %v454
    %v456 = vrcp.pop %v418
    %v457 = vmul.f32 1.0, %v456
    %v458 = vrcp.pop %v419
    %v459 = vmul.f32 1.0, %v458
    %v460 = vrcp.pop %v420
    %v461 = vmul.f32 1.0, %v460
    %v462 = vrcp.pop %v421
    %v463 = vmul.f32 1.0, %v462
    %v464 = vrcp.pop %v422
    %v465 = vmul.f32 1.0, %v464
    %v466 = vrcp.pop %v423
    %v467 = vmul.f32 1.0, %v466
    %v468 = vrcp.pop %v424
    %v469 = vmul.f32 1.0, %v468
    %v470 = vrcp.pop %v425
    %v471 = vmul.f32 1.0, %v470
    %v472 = vrcp.pop %v426
    %v473 = vmul.f32 1.0, %v472
    %v474 = vrcp.pop %v427
    %v475 = vmul.f32 1.0, %v474
    %v476 = vrcp.pop %v428
    %v477 = vmul.f32 1.0, %v476
    %v478 = vrcp.pop %v429
    %v479 = vmul.f32 1.0, %v478
    %v480 = vmul.f32 %v207, %v431
    %v481 = vmul.f32 %v212, %v433
    %v482 = vmul.f32 %v217, %v435
    %v483 = vmul.f32 %v222, %v437
    %v484 = vmul.f32 %v227, %v439
    %v485 = vmul.f32 %v232, %v441
    %v486 = vmul.f32 %v237, %v443
    %v487 = vmul.f32 %v242, %v445
    %v488 = vmul.f32 %v247, %v447
    %v489 = vmul.f32 %v252, %v449
    %v490 = vmul.f32 %v257, %v451
    %v491 = vmul.f32 %v262, %v453
    %v492 = vmul.f32 %v267, %v455
    %v493 = vmul.f32 %v272, %v457
    %v494 = vmul.f32 %v277, %v459
    %v495 = vmul.f32 %v282, %v461
    %v496 = vmul.f32 %v287, %v463
    %v497 = vmul.f32 %v292, %v465
    %v498 = vmul.f32 %v297, %v467
    %v499 = vmul.f32 %v302, %v469
    %v500 = vmul.f32 %v307, %v471
    %v501 = vmul.f32 %v312, %v473
    %v502 = vmul.f32 %v317, %v475
    %v503 = vmul.f32 %v322, %v477
    %v504 = vmul.f32 %v327, %v479
    %v505 = vld [vmem:[#allocation2] sm:$0xff]
    %v506 = vld [vmem:[#allocation2 + $0x8] sm:$0xff]
    %v507 = vld [vmem:[#allocation2 + $0x10] sm:$0xff]
    %v508 = vld [vmem:[#allocation2 + $0x18] sm:$0xff]
    %v509 = vld [vmem:[#allocation2 + $0x20] sm:$0xff]
    %v510 = vld [vmem:[#allocation2 + $0x28] sm:$0xff]
    %v511 = vld [vmem:[#allocation2 + $0x30] sm:$0xff]
    %v512 = vld [vmem:[#allocation2 + $0x38] sm:$0xff]
    %v513 = vld [vmem:[#allocation2 + $0x40] sm:$0xff]
    %v514 = vld [vmem:[#allocation2 + $0x48] sm:$0xff]
    %v515 = vld [vmem:[#allocation2 + $0x50] sm:$0xff]
    %v516 = vld [vmem:[#allocation2 + $0x58] sm:$0xff]
    %v517 = vld [vmem:[#allocation2 + $0x60] sm:$0xff]
    %v518 = vld [vmem:[#allocation2 + $0x68] sm:$0xff]
    %v519 = vld [vmem:[#allocation2 + $0x70] sm:$0xff]
    %v520 = vld [vmem:[#allocation2 + $0x78] sm:$0xff]
    %v521 = vld [vmem:[#allocation2 + $0x80] sm:$0x1]
    %v522 = vlaneseq
    %v523 = vshrl.u32 %v522, 7
    %v524 = vsub.s32 0, %v523
    %v525 = vrot.slane %v521, %v524
    %526 = vmatprep.subr.mxu0 0.0
    %527 = vmatpush1.msra.mxu0 %v505
    %528 = vmatprep.subr.mxu0 0.0
    %529 = vmatpush1.msra.mxu0 %v506
    %530 = vmatprep.subr.mxu0 0.0
    %531 = vmatpush1.msra.mxu0 %v507
    %532 = vmatprep.subr.mxu0 0.0
    %533 = vmatpush1.msra.mxu0 %v508
    %534 = vmatprep.subr.mxu0 0.0
    %535 = vmatpush1.msra.mxu0 %v509
    %536 = vmatprep.subr.mxu0 0.0
    %537 = vmatpush1.msra.mxu0 %v510
    %538 = vmatprep.subr.mxu0 0.0
    %539 = vmatpush1.msra.mxu0 %v511
    %540 = vmatprep.subr.mxu0 0.0
    %541 = vmatpush1.msra.mxu0 %v512
    %542 = vmatprep.subr.mxu0 0.0
    %543 = vmatpush1.msra.mxu0 %v513
    %544 = vmatprep.subr.mxu0 0.0
    %545 = vmatpush1.msra.mxu0 %v514
    %546 = vmatprep.subr.mxu0 0.0
    %547 = vmatpush1.msra.mxu0 %v515
    %548 = vmatprep.subr.mxu0 0.0
    %549 = vmatpush1.msra.mxu0 %v516
    %550 = vmatprep.subr.mxu0 0.0
    %551 = vmatpush1.msra.mxu0 %v517
    %552 = vmatprep.subr.mxu0 0.0
    %553 = vmatpush1.msra.mxu0 %v518
    %554 = vmatprep.subr.mxu0 0.0
    %555 = vmatpush1.msra.mxu0 %v519
    %556 = vmatprep.subr.mxu0 0.0
    %557 = vmatpush1.msra.mxu0 %v520
    %558 = vmatprep.subr.mxu0 0.0
    %559 = vmatpush1.msra.mxu0 0.0
    %560 = vmatprep.subr.mxu0 0.0
    %561 = vmatpush1.msra.mxu0 0.0
    %562 = vmatprep.subr.mxu0 0.0
    %563 = vmatpush1.msra.mxu0 0.0
    %564 = vmatprep.subr.mxu0 0.0
    %565 = vmatpush1.msra.mxu0 0.0
    %566 = vmatprep.subr.mxu0 0.0
    %567 = vmatpush1.msra.mxu0 0.0
    %568 = vmatprep.subr.mxu0 0.0
    %569 = vmatpush1.msra.mxu0 0.0
    %570 = vmatprep.subr.mxu0 0.0
    %571 = vmatpush1.msra.mxu0 0.0
    %572 = vmatprep.subr.mxu0 0.0
    %573 = vmatpush1.msra.mxu0 0.0
    %574 = vmatprep.subr.mxu0 0.0
    %575 = vmatpush1.msra.mxu0 0.0
    %576 = vmatprep.subr.mxu0 0.0
    %577 = vmatpush1.msra.mxu0 0.0
    %578 = vmatprep.subr.mxu0 0.0
    %579 = vmatpush1.msra.mxu0 0.0
    %580 = vmatprep.subr.mxu0 0.0
    %581 = vmatpush1.msra.mxu0 0.0
    %582 = vmatprep.subr.mxu0 0.0
    %583 = vmatpush1.msra.mxu0 0.0
    %584 = vmatprep.subr.mxu0 0.0
    %585 = vmatpush1.msra.mxu0 0.0
    %586 = vmatprep.subr.mxu0 0.0
    %587 = vmatpush1.msra.mxu0 0.0
    %588 = vmatprep.subr.mxu0 0.0
    %589 = vmatpush1.msra.mxu0 0.0
    %590 = vmatprep.mubr.f32.mxu0 0.0
    %591 = vmatmul.mubr.f32.gmra.mrb[0].mxu0 %v480
    %v592 = vpop.f32.mrb[0].mxu0
    %v593 = vadd.f32 %v525, %v592
    %v594 = vpop.f32.mrb[0].mxu0
    %595 = vmatprep.mubr.f32.mxu0 0.0
    %596 = vmatmul.mubr.f32.gmra.mrb[0].mxu0 %v481
    %v597 = vpop.f32.mrb[0].mxu0
    %v598 = vadd.f32 %v525, %v597
    %v599 = vpop.f32.mrb[0].mxu0
    %600 = vmatprep.mubr.f32.mxu0 0.0
    %601 = vmatmul.mubr.f32.gmra.mrb[0].mxu0 %v482
    %v602 = vpop.f32.mrb[0].mxu0
    %v603 = vadd.f32 %v525, %v602
    %v604 = vpop.f32.mrb[0].mxu0
    %605 = vmatprep.mubr.f32.mxu0 0.0
    %606 = vmatmul.mubr.f32.gmra.mrb[0].mxu0 %v483
    %v607 = vpop.f32.mrb[0].mxu0
    %v608 = vadd.f32 %v525, %v607
    %v609 = vpop.f32.mrb[0].mxu0
    %610 = vmatprep.mubr.f32.mxu0 0.0
    %611 = vmatmul.mubr.f32.gmra.mrb[0].mxu0 %v484
    %v612 = vpop.f32.mrb[0].mxu0
    %v613 = vadd.f32 %v525, %v612
    %v614 = vpop.f32.mrb[0].mxu0
    %615 = vmatprep.mubr.f32.mxu0 0.0
    %616 = vmatmul.mubr.f32.gmra.mrb[0].mxu0 %v485
    %v617 = vpop.f32.mrb[0].mxu0
    %v618 = vadd.f32 %v525, %v617
    %v619 = vpop.f32.mrb[0].mxu0
    %620 = vmatprep.mubr.f32.mxu0 0.0
    %621 = vmatmul.mubr.f32.gmra.mrb[0].mxu0 %v486
    %v622 = vpop.f32.mrb[0].mxu0
    %v623 = vadd.f32 %v525, %v622
    %v624 = vpop.f32.mrb[0].mxu0
    %625 = vmatprep.mubr.f32.mxu0 0.0
    %626 = vmatmul.mubr.f32.gmra.mrb[0].mxu0 %v487
    %v627 = vpop.f32.mrb[0].mxu0
    %v628 = vadd.f32 %v525, %v627
    %v629 = vpop.f32.mrb[0].mxu0
    %630 = vmatprep.mubr.f32.mxu0 0.0
    %631 = vmatmul.mubr.f32.gmra.mrb[0].mxu0 %v488
    %v632 = vpop.f32.mrb[0].mxu0
    %v633 = vadd.f32 %v525, %v632
    %v634 = vpop.f32.mrb[0].mxu0
    %635 = vmatprep.mubr.f32.mxu0 0.0
    %636 = vmatmul.mubr.f32.gmra.mrb[0].mxu0 %v489
    %v637 = vpop.f32.mrb[0].mxu0
    %v638 = vadd.f32 %v525, %v637
    %v639 = vpop.f32.mrb[0].mxu0
    %640 = vmatprep.mubr.f32.mxu0 0.0
    %641 = vmatmul.mubr.f32.gmra.mrb[0].mxu0 %v490
    %v642 = vpop.f32.mrb[0].mxu0
    %v643 = vadd.f32 %v525, %v642
    %v644 = vpop.f32.mrb[0].mxu0
    %645 = vmatprep.mubr.f32.mxu0 0.0
    %646 = vmatmul.mubr.f32.gmra.mrb[0].mxu0 %v491
    %v647 = vpop.f32.mrb[0].mxu0
    %v648 = vadd.f32 %v525, %v647
    %v649 = vpop.f32.mrb[0].mxu0
    %650 = vmatprep.mubr.f32.mxu0 0.0
    %651 = vmatmul.mubr.f32.gmra.mrb[0].mxu0 %v492
    %v652 = vpop.f32.mrb[0].mxu0
    %v653 = vadd.f32 %v525, %v652
    %v654 = vpop.f32.mrb[0].mxu0
    %655 = vmatprep.mubr.f32.mxu0 0.0
    %656 = vmatmul.mubr.f32.gmra.mrb[0].mxu0 %v493
    %v657 = vpop.f32.mrb[0].mxu0
    %v658 = vadd.f32 %v525, %v657
    %v659 = vpop.f32.mrb[0].mxu0
    %660 = vmatprep.mubr.f32.mxu0 0.0
    %661 = vmatmul.mubr.f32.gmra.mrb[0].mxu0 %v494
    %v662 = vpop.f32.mrb[0].mxu0
    %v663 = vadd.f32 %v525, %v662
    %v664 = vpop.f32.mrb[0].mxu0
    %665 = vmatprep.mubr.f32.mxu0 0.0
    %666 = vmatmul.mubr.f32.gmra.mrb[0].mxu0 %v495
    %v667 = vpop.f32.mrb[0].mxu0
    %v668 = vadd.f32 %v525, %v667
    %v669 = vpop.f32.mrb[0].mxu0
    %670 = vmatprep.mubr.f32.mxu0 0.0
    %671 = vmatmul.mubr.f32.gmra.mrb[0].mxu0 %v496
    %v672 = vpop.f32.mrb[0].mxu0
    %v673 = vadd.f32 %v525, %v672
    %v674 = vpop.f32.mrb[0].mxu0
    %675 = vmatprep.mubr.f32.mxu0 0.0
    %676 = vmatmul.mubr.f32.gmra.mrb[0].mxu0 %v497
    %v677 = vpop.f32.mrb[0].mxu0
    %v678 = vadd.f32 %v525, %v677
    %v679 = vpop.f32.mrb[0].mxu0
    %680 = vmatprep.mubr.f32.mxu0 0.0
    %681 = vmatmul.mubr.f32.gmra.mrb[0].mxu0 %v498
    %v682 = vpop.f32.mrb[0].mxu0
    %v683 = vadd.f32 %v525, %v682
    %v684 = vpop.f32.mrb[0].mxu0
    %685 = vmatprep.mubr.f32.mxu0 0.0
    %686 = vmatmul.mubr.f32.gmra.mrb[0].mxu0 %v499
    %v687 = vpop.f32.mrb[0].mxu0
    %v688 = vadd.f32 %v525, %v687
    %v689 = vpop.f32.mrb[0].mxu0
    %690 = vmatprep.mubr.f32.mxu0 0.0
    %691 = vmatmul.mubr.f32.gmra.mrb[0].mxu0 %v500
    %v692 = vpop.f32.mrb[0].mxu0
    %v693 = vadd.f32 %v525, %v692
    %v694 = vpop.f32.mrb[0].mxu0
    %695 = vmatprep.mubr.f32.mxu0 0.0
    %696 = vmatmul.mubr.f32.gmra.mrb[0].mxu0 %v501
    %v697 = vpop.f32.mrb[0].mxu0
    %v698 = vadd.f32 %v525, %v697
    %v699 = vpop.f32.mrb[0].mxu0
    %700 = vmatprep.mubr.f32.mxu0 0.0
    %701 = vmatmul.mubr.f32.gmra.mrb[0].mxu0 %v502
    %v702 = vpop.f32.mrb[0].mxu0
    %v703 = vadd.f32 %v525, %v702
    %v704 = vpop.f32.mrb[0].mxu0
    %705 = vmatprep.mubr.f32.mxu0 0.0
    %706 = vmatmul.mubr.f32.gmra.mrb[0].mxu0 %v503
    %v707 = vpop.f32.mrb[0].mxu0
    %v708 = vadd.f32 %v525, %v707
    %v709 = vpop.f32.mrb[0].mxu0
    %710 = vmatprep.mubr.f32.mxu0 0.0
    %711 = vmatmul.mubr.f32.gmra.mrb[0].mxu0 %v504
    %v712 = vpop.f32.mrb[0].mxu0
    %v713 = vadd.f32 %v525, %v712
    %v714 = vpop.f32.mrb[0].mxu0
    %715 = vdwg.mxu0
    %v716 = vxor.u32 %v593, 2147483648
    %v717 = vxor.u32 %v598, 2147483648
    %v718 = vxor.u32 %v603, 2147483648
    %v719 = vxor.u32 %v608, 2147483648
    %v720 = vxor.u32 %v613, 2147483648
    %v721 = vxor.u32 %v618, 2147483648
    %v722 = vxor.u32 %v623, 2147483648
    %v723 = vxor.u32 %v628, 2147483648
    %v724 = vxor.u32 %v633, 2147483648
    %v725 = vxor.u32 %v638, 2147483648
    %v726 = vxor.u32 %v643, 2147483648
    %v727 = vxor.u32 %v648, 2147483648
    %v728 = vxor.u32 %v653, 2147483648
    %v729 = vxor.u32 %v658, 2147483648
    %v730 = vxor.u32 %v663, 2147483648
    %v731 = vxor.u32 %v668, 2147483648
    %v732 = vxor.u32 %v673, 2147483648
    %v733 = vxor.u32 %v678, 2147483648
    %v734 = vxor.u32 %v683, 2147483648
    %v735 = vxor.u32 %v688, 2147483648
    %v736 = vxor.u32 %v693, 2147483648
    %v737 = vxor.u32 %v698, 2147483648
    %v738 = vxor.u32 %v703, 2147483648
    %v739 = vxor.u32 %v708, 2147483648
    %v740 = vxor.u32 %v713, 2147483648
    %v741 = vmul.f32 %v716, 1.442695
    %v742 = vpow.pop %v741
    %v743 = vmul.f32 %v717, 1.442695
    %v744 = vpow.pop %v743
    %v745 = vmul.f32 %v718, 1.442695
    %v746 = vpow.pop %v745
    %v747 = vmul.f32 %v719, 1.442695
    %v748 = vpow.pop %v747
    %v749 = vmul.f32 %v720, 1.442695
    %v750 = vpow.pop %v749
    %v751 = vmul.f32 %v721, 1.442695
    %v752 = vpow.pop %v751
    %v753 = vmul.f32 %v722, 1.442695
    %v754 = vpow.pop %v753
    %v755 = vmul.f32 %v723, 1.442695
    %v756 = vpow.pop %v755
    %v757 = vmul.f32 %v724, 1.442695
    %v758 = vpow.pop %v757
    %v759 = vmul.f32 %v725, 1.442695
    %v760 = vpow.pop %v759
    %v761 = vmul.f32 %v726, 1.442695
    %v762 = vpow.pop %v761
    %v763 = vmul.f32 %v727, 1.442695
    %v764 = vpow.pop %v763
    %v765 = vmul.f32 %v728, 1.442695
    %v766 = vpow.pop %v765
    %v767 = vmul.f32 %v729, 1.442695
    %v768 = vpow.pop %v767
    %v769 = vmul.f32 %v730, 1.442695
    %v770 = vpow.pop %v769
    %v771 = vmul.f32 %v731, 1.442695
    %v772 = vpow.pop %v771
    %v773 = vmul.f32 %v732, 1.442695
    %v774 = vpow.pop %v773
    %v775 = vmul.f32 %v733, 1.442695
    %v776 = vpow.pop %v775
    %v777 = vmul.f32 %v734, 1.442695
    %v778 = vpow.pop %v777
    %v779 = vmul.f32 %v735, 1.442695
    %v780 = vpow.pop %v779
    %v781 = vmul.f32 %v736, 1.442695
    %v782 = vpow.pop %v781
    %v783 = vmul.f32 %v737, 1.442695
    %v784 = vpow.pop %v783
    %v785 = vmul.f32 %v738, 1.442695
    %v786 = vpow.pop %v785
    %v787 = vmul.f32 %v739, 1.442695
    %v788 = vpow.pop %v787
    %v789 = vmul.f32 %v740, 1.442695
    %v790 = vpow.pop %v789
    %v791 = vadd.f32 %v742, 1.0
    %v792 = vadd.f32 %v744, 1.0
    %v793 = vadd.f32 %v746, 1.0
    %v794 = vadd.f32 %v748, 1.0
    %v795 = vadd.f32 %v750, 1.0
    %v796 = vadd.f32 %v752, 1.0
    %v797 = vadd.f32 %v754, 1.0
    %v798 = vadd.f32 %v756, 1.0
    %v799 = vadd.f32 %v758, 1.0
    %v800 = vadd.f32 %v760, 1.0
    %v801 = vadd.f32 %v762, 1.0
    %v802 = vadd.f32 %v764, 1.0
    %v803 = vadd.f32 %v766, 1.0
    %v804 = vadd.f32 %v768, 1.0
    %v805 = vadd.f32 %v770, 1.0
    %v806 = vadd.f32 %v772, 1.0
    %v807 = vadd.f32 %v774, 1.0
    %v808 = vadd.f32 %v776, 1.0
    %v809 = vadd.f32 %v778, 1.0
    %v810 = vadd.f32 %v780, 1.0
    %v811 = vadd.f32 %v782, 1.0
    %v812 = vadd.f32 %v784, 1.0
    %v813 = vadd.f32 %v786, 1.0
    %v814 = vadd.f32 %v788, 1.0
    %v815 = vadd.f32 %v790, 1.0
    %v816 = vrcp.pop %v791
    %v817 = vmul.f32 1.0, %v816
    %v818 = vrcp.pop %v792
    %v819 = vmul.f32 1.0, %v818
    %v820 = vrcp.pop %v793
    %v821 = vmul.f32 1.0, %v820
    %v822 = vrcp.pop %v794
    %v823 = vmul.f32 1.0, %v822
    %v824 = vrcp.pop %v795
    %v825 = vmul.f32 1.0, %v824
    %v826 = vrcp.pop %v796
    %v827 = vmul.f32 1.0, %v826
    %v828 = vrcp.pop %v797
    %v829 = vmul.f32 1.0, %v828
    %v830 = vrcp.pop %v798
    %v831 = vmul.f32 1.0, %v830
    %v832 = vrcp.pop %v799
    %v833 = vmul.f32 1.0, %v832
    %v834 = vrcp.pop %v800
    %v835 = vmul.f32 1.0, %v834
    %v836 = vrcp.pop %v801
    %v837 = vmul.f32 1.0, %v836
    %v838 = vrcp.pop %v802
    %v839 = vmul.f32 1.0, %v838
    %v840 = vrcp.pop %v803
    %v841 = vmul.f32 1.0, %v840
    %v842 = vrcp.pop %v804
    %v843 = vmul.f32 1.0, %v842
    %v844 = vrcp.pop %v805
    %v845 = vmul.f32 1.0, %v844
    %v846 = vrcp.pop %v806
    %v847 = vmul.f32 1.0, %v846
    %v848 = vrcp.pop %v807
    %v849 = vmul.f32 1.0, %v848
    %v850 = vrcp.pop %v808
    %v851 = vmul.f32 1.0, %v850
    %v852 = vrcp.pop %v809
    %v853 = vmul.f32 1.0, %v852
    %v854 = vrcp.pop %v810
    %v855 = vmul.f32 1.0, %v854
    %v856 = vrcp.pop %v811
    %v857 = vmul.f32 1.0, %v856
    %v858 = vrcp.pop %v812
    %v859 = vmul.f32 1.0, %v858
    %v860 = vrcp.pop %v813
    %v861 = vmul.f32 1.0, %v860
    %v862 = vrcp.pop %v814
    %v863 = vmul.f32 1.0, %v862
    %v864 = vrcp.pop %v815
    %v865 = vmul.f32 1.0, %v864
    %v866 = vmul.f32 %v593, %v817
    %v867 = vmul.f32 %v598, %v819
    %v868 = vmul.f32 %v603, %v821
    %v869 = vmul.f32 %v608, %v823
    %v870 = vmul.f32 %v613, %v825
    %v871 = vmul.f32 %v618, %v827
    %v872 = vmul.f32 %v623, %v829
    %v873 = vmul.f32 %v628, %v831
    %v874 = vmul.f32 %v633, %v833
    %v875 = vmul.f32 %v638, %v835
    %v876 = vmul.f32 %v643, %v837
    %v877 = vmul.f32 %v648, %v839
    %v878 = vmul.f32 %v653, %v841
    %v879 = vmul.f32 %v658, %v843
    %v880 = vmul.f32 %v663, %v845
    %v881 = vmul.f32 %v668, %v847
    %v882 = vmul.f32 %v673, %v849
    %v883 = vmul.f32 %v678, %v851
    %v884 = vmul.f32 %v683, %v853
    %v885 = vmul.f32 %v688, %v855
    %v886 = vmul.f32 %v693, %v857
    %v887 = vmul.f32 %v698, %v859
    %v888 = vmul.f32 %v703, %v861
    %v889 = vmul.f32 %v708, %v863
    %v890 = vmul.f32 %v713, %v865
    %v891 = vld [vmem:[#allocation2 + $0x88] sm:$0xff]
    %v892 = vld [vmem:[#allocation2 + $0x90] sm:$0xff]
    %v893 = vld [vmem:[#allocation2 + $0x98] sm:$0xff]
    %v894 = vld [vmem:[#allocation2 + $0xa0] sm:$0xff]
    %v895 = vld [vmem:[#allocation2 + $0xa8] sm:$0xff]
    %v896 = vld [vmem:[#allocation2 + $0xb0] sm:$0xff]
    %v897 = vld [vmem:[#allocation2 + $0xb8] sm:$0xff]
    %v898 = vld [vmem:[#allocation2 + $0xc0] sm:$0xff]
    %v899 = vld [vmem:[#allocation2 + $0xc8] sm:$0xff]
    %v900 = vld [vmem:[#allocation2 + $0xd0] sm:$0xff]
    %v901 = vld [vmem:[#allocation2 + $0xd8] sm:$0xff]
    %v902 = vld [vmem:[#allocation2 + $0xe0] sm:$0xff]
    %v903 = vld [vmem:[#allocation2 + $0xe8] sm:$0xff]
    %v904 = vld [vmem:[#allocation2 + $0xf0] sm:$0xff]
    %v905 = vld [vmem:[#allocation2 + $0xf8] sm:$0xff]
    %v906 = vld [vmem:[#allocation2 + $0x100] sm:$0xff]
    %v907 = vld [vmem:[#allocation2 + $0x108] sm:$0x1]
    %v908 = vlaneseq
    %v909 = vshrl.u32 %v908, 7
    %v910 = vsub.s32 0, %v909
    %v911 = vrot.slane %v907, %v910
    %912 = vmatprep.subr.mxu0 0.0
    %913 = vmatpush1.msra.mxu0 %v891
    %914 = vmatprep.subr.mxu0 0.0
    %915 = vmatpush1.msra.mxu0 %v892
    %916 = vmatprep.subr.mxu0 0.0
    %917 = vmatpush1.msra.mxu0 %v893
    %918 = vmatprep.subr.mxu0 0.0
    %919 = vmatpush1.msra.mxu0 %v894
    %920 = vmatprep.subr.mxu0 0.0
    %921 = vmatpush1.msra.mxu0 %v895
    %922 = vmatprep.subr.mxu0 0.0
    %923 = vmatpush1.msra.mxu0 %v896
    %924 = vmatprep.subr.mxu0 0.0
    %925 = vmatpush1.msra.mxu0 %v897
    %926 = vmatprep.subr.mxu0 0.0
    %927 = vmatpush1.msra.mxu0 %v898
    %928 = vmatprep.subr.mxu0 0.0
    %929 = vmatpush1.msra.mxu0 %v899
    %930 = vmatprep.subr.mxu0 0.0
    %931 = vmatpush1.msra.mxu0 %v900
    %932 = vmatprep.subr.mxu0 0.0
    %933 = vmatpush1.msra.mxu0 %v901
    %934 = vmatprep.subr.mxu0 0.0
    %935 = vmatpush1.msra.mxu0 %v902
    %936 = vmatprep.subr.mxu0 0.0
    %937 = vmatpush1.msra.mxu0 %v903
    %938 = vmatprep.subr.mxu0 0.0
    %939 = vmatpush1.msra.mxu0 %v904
    %940 = vmatprep.subr.mxu0 0.0
    %941 = vmatpush1.msra.mxu0 %v905
    %942 = vmatprep.subr.mxu0 0.0
    %943 = vmatpush1.msra.mxu0 %v906
    %944 = vmatprep.subr.mxu0 0.0
    %945 = vmatpush1.msra.mxu0 0.0
    %946 = vmatprep.subr.mxu0 0.0
    %947 = vmatpush1.msra.mxu0 0.0
    %948 = vmatprep.subr.mxu0 0.0
    %949 = vmatpush1.msra.mxu0 0.0
    %950 = vmatprep.subr.mxu0 0.0
    %951 = vmatpush1.msra.mxu0 0.0
    %952 = vmatprep.subr.mxu0 0.0
    %953 = vmatpush1.msra.mxu0 0.0
    %954 = vmatprep.subr.mxu0 0.0
    %955 = vmatpush1.msra.mxu0 0.0
    %956 = vmatprep.subr.mxu0 0.0
    %957 = vmatpush1.msra.mxu0 0.0
    %958 = vmatprep.subr.mxu0 0.0
    %959 = vmatpush1.msra.mxu0 0.0
    %960 = vmatprep.subr.mxu0 0.0
    %961 = vmatpush1.msra.mxu0 0.0
    %962 = vmatprep.subr.mxu0 0.0
    %963 = vmatpush1.msra.mxu0 0.0
    %964 = vmatprep.subr.mxu0 0.0
    %965 = vmatpush1.msra.mxu0 0.0
    %966 = vmatprep.subr.mxu0 0.0
    %967 = vmatpush1.msra.mxu0 0.0
    %968 = vmatprep.subr.mxu0 0.0
    %969 = vmatpush1.msra.mxu0 0.0
    %970 = vmatprep.subr.mxu0 0.0
    %971 = vmatpush1.msra.mxu0 0.0
    %972 = vmatprep.subr.mxu0 0.0
    %973 = vmatpush1.msra.mxu0 0.0
    %974 = vmatprep.subr.mxu0 0.0
    %975 = vmatpush1.msra.mxu0 0.0
    %976 = vmatprep.mubr.f32.mxu0 0.0
    %977 = vmatmul.mubr.f32.gmra.mrb[0].mxu0 %v866
    %v978 = vpop.f32.mrb[0].mxu0
    %v979 = vadd.f32 %v911, %v978
    %v980 = vpop.f32.mrb[0].mxu0
    %981 = vmatprep.mubr.f32.mxu0 0.0
    %982 = vmatmul.mubr.f32.gmra.mrb[0].mxu0 %v867
    %v983 = vpop.f32.mrb[0].mxu0
    %v984 = vadd.f32 %v911, %v983
    %v985 = vpop.f32.mrb[0].mxu0
    %986 = vmatprep.mubr.f32.mxu0 0.0
    %987 = vmatmul.mubr.f32.gmra.mrb[0].mxu0 %v868
    %v988 = vpop.f32.mrb[0].mxu0
    %v989 = vadd.f32 %v911, %v988
    %v990 = vpop.f32.mrb[0].mxu0
    %991 = vmatprep.mubr.f32.mxu0 0.0
    %992 = vmatmul.mubr.f32.gmra.mrb[0].mxu0 %v869
    %v993 = vpop.f32.mrb[0].mxu0
    %v994 = vadd.f32 %v911, %v993
    %v995 = vpop.f32.mrb[0].mxu0
    %996 = vmatprep.mubr.f32.mxu0 0.0
    %997 = vmatmul.mubr.f32.gmra.mrb[0].mxu0 %v870
    %v998 = vpop.f32.mrb[0].mxu0
    %v999 = vadd.f32 %v911, %v998
    %v1000 = vpop.f32.mrb[0].mxu0
    %1001 = vmatprep.mubr.f32.mxu0 0.0
    %1002 = vmatmul.mubr.f32.gmra.mrb[0].mxu0 %v871
    %v1003 = vpop.f32.mrb[0].mxu0
    %v1004 = vadd.f32 %v911, %v1003
    %v1005 = vpop.f32.mrb[0].mxu0
    %1006 = vmatprep.mubr.f32.mxu0 0.0
    %1007 = vmatmul.mubr.f32.gmra.mrb[0].mxu0 %v872
    %v1008 = vpop.f32.mrb[0].mxu0
    %v1009 = vadd.f32 %v911, %v1008
    %v1010 = vpop.f32.mrb[0].mxu0
    %1011 = vmatprep.mubr.f32.mxu0 0.0
    %1012 = vmatmul.mubr.f32.gmra.mrb[0].mxu0 %v873
    %v1013 = vpop.f32.mrb[0].mxu0
    %v1014 = vadd.f32 %v911, %v1013
    %v1015 = vpop.f32.mrb[0].mxu0
    %1016 = vmatprep.mubr.f32.mxu0 0.0
    %1017 = vmatmul.mubr.f32.gmra.mrb[0].mxu0 %v874
    %v1018 = vpop.f32.mrb[0].mxu0
    %v1019 = vadd.f32 %v911, %v1018
    %v1020 = vpop.f32.mrb[0].mxu0
    %1021 = vmatprep.mubr.f32.mxu0 0.0
    %1022 = vmatmul.mubr.f32.gmra.mrb[0].mxu0 %v875
    %v1023 = vpop.f32.mrb[0].mxu0
    %v1024 = vadd.f32 %v911, %v1023
    %v1025 = vpop.f32.mrb[0].mxu0
    %1026 = vmatprep.mubr.f32.mxu0 0.0
    %1027 = vmatmul.mubr.f32.gmra.mrb[0].mxu0 %v876
    %v1028 = vpop.f32.mrb[0].mxu0
    %v1029 = vadd.f32 %v911, %v1028
    %v1030 = vpop.f32.mrb[0].mxu0
    %1031 = vmatprep.mubr.f32.mxu0 0.0
    %1032 = vmatmul.mubr.f32.gmra.mrb[0].mxu0 %v877
    %v1033 = vpop.f32.mrb[0].mxu0
    %v1034 = vadd.f32 %v911, %v1033
    %v1035 = vpop.f32.mrb[0].mxu0
    %1036 = vmatprep.mubr.f32.mxu0 0.0
    %1037 = vmatmul.mubr.f32.gmra.mrb[0].mxu0 %v878
    %v1038 = vpop.f32.mrb[0].mxu0
    %v1039 = vadd.f32 %v911, %v1038
    %v1040 = vpop.f32.mrb[0].mxu0
    %1041 = vmatprep.mubr.f32.mxu0 0.0
    %1042 = vmatmul.mubr.f32.gmra.mrb[0].mxu0 %v879
    %v1043 = vpop.f32.mrb[0].mxu0
    %v1044 = vadd.f32 %v911, %v1043
    %v1045 = vpop.f32.mrb[0].mxu0
    %1046 = vmatprep.mubr.f32.mxu0 0.0
    %1047 = vmatmul.mubr.f32.gmra.mrb[0].mxu0 %v880
    %v1048 = vpop.f32.mrb[0].mxu0
    %v1049 = vadd.f32 %v911, %v1048
    %v1050 = vpop.f32.mrb[0].mxu0
    %1051 = vmatprep.mubr.f32.mxu0 0.0
    %1052 = vmatmul.mubr.f32.gmra.mrb[0].mxu0 %v881
    %v1053 = vpop.f32.mrb[0].mxu0
    %v1054 = vadd.f32 %v911, %v1053
    %v1055 = vpop.f32.mrb[0].mxu0
    %1056 = vmatprep.mubr.f32.mxu0 0.0
    %1057 = vmatmul.mubr.f32.gmra.mrb[0].mxu0 %v882
    %v1058 = vpop.f32.mrb[0].mxu0
    %v1059 = vadd.f32 %v911, %v1058
    %v1060 = vpop.f32.mrb[0].mxu0
    %1061 = vmatprep.mubr.f32.mxu0 0.0
    %1062 = vmatmul.mubr.f32.gmra.mrb[0].mxu0 %v883
    %v1063 = vpop.f32.mrb[0].mxu0
    %v1064 = vadd.f32 %v911, %v1063
    %v1065 = vpop.f32.mrb[0].mxu0
    %1066 = vmatprep.mubr.f32.mxu0 0.0
    %1067 = vmatmul.mubr.f32.gmra.mrb[0].mxu0 %v884
    %v1068 = vpop.f32.mrb[0].mxu0
    %v1069 = vadd.f32 %v911, %v1068
    %v1070 = vpop.f32.mrb[0].mxu0
    %1071 = vmatprep.mubr.f32.mxu0 0.0
    %1072 = vmatmul.mubr.f32.gmra.mrb[0].mxu0 %v885
    %v1073 = vpop.f32.mrb[0].mxu0
    %v1074 = vadd.f32 %v911, %v1073
    %v1075 = vpop.f32.mrb[0].mxu0
    %1076 = vmatprep.mubr.f32.mxu0 0.0
    %1077 = vmatmul.mubr.f32.gmra.mrb[0].mxu0 %v886
    %v1078 = vpop.f32.mrb[0].mxu0
    %v1079 = vadd.f32 %v911, %v1078
    %v1080 = vpop.f32.mrb[0].mxu0
    %1081 = vmatprep.mubr.f32.mxu0 0.0
    %1082 = vmatmul.mubr.f32.gmra.mrb[0].mxu0 %v887
    %v1083 = vpop.f32.mrb[0].mxu0
    %v1084 = vadd.f32 %v911, %v1083
    %v1085 = vpop.f32.mrb[0].mxu0
    %1086 = vmatprep.mubr.f32.mxu0 0.0
    %1087 = vmatmul.mubr.f32.gmra.mrb[0].mxu0 %v888
    %v1088 = vpop.f32.mrb[0].mxu0
    %v1089 = vadd.f32 %v911, %v1088
    %v1090 = vpop.f32.mrb[0].mxu0
    %1091 = vmatprep.mubr.f32.mxu0 0.0
    %1092 = vmatmul.mubr.f32.gmra.mrb[0].mxu0 %v889
    %v1093 = vpop.f32.mrb[0].mxu0
    %v1094 = vadd.f32 %v911, %v1093
    %v1095 = vpop.f32.mrb[0].mxu0
    %1096 = vmatprep.mubr.f32.mxu0 0.0
    %1097 = vmatmul.mubr.f32.gmra.mrb[0].mxu0 %v890
    %v1098 = vpop.f32.mrb[0].mxu0
    %v1099 = vadd.f32 %v911, %v1098
    %v1100 = vpop.f32.mrb[0].mxu0
    %1101 = vdwg.mxu0
    %v1102 = vxor.u32 %v979, 2147483648
    %v1103 = vxor.u32 %v984, 2147483648
    %v1104 = vxor.u32 %v989, 2147483648
    %v1105 = vxor.u32 %v994, 2147483648
    %v1106 = vxor.u32 %v999, 2147483648
    %v1107 = vxor.u32 %v1004, 2147483648
    %v1108 = vxor.u32 %v1009, 2147483648
    %v1109 = vxor.u32 %v1014, 2147483648
    %v1110 = vxor.u32 %v1019, 2147483648
    %v1111 = vxor.u32 %v1024, 2147483648
    %v1112 = vxor.u32 %v1029, 2147483648
    %v1113 = vxor.u32 %v1034, 2147483648
    %v1114 = vxor.u32 %v1039, 2147483648
    %v1115 = vxor.u32 %v1044, 2147483648
    %v1116 = vxor.u32 %v1049, 2147483648
    %v1117 = vxor.u32 %v1054, 2147483648
    %v1118 = vxor.u32 %v1059, 2147483648
    %v1119 = vxor.u32 %v1064, 2147483648
    %v1120 = vxor.u32 %v1069, 2147483648
    %v1121 = vxor.u32 %v1074, 2147483648
    %v1122 = vxor.u32 %v1079, 2147483648
    %v1123 = vxor.u32 %v1084, 2147483648
    %v1124 = vxor.u32 %v1089, 2147483648
    %v1125 = vxor.u32 %v1094, 2147483648
    %v1126 = vxor.u32 %v1099, 2147483648
    %v1127 = vmul.f32 %v1102, 1.442695
    %v1128 = vpow.pop %v1127
    %v1129 = vmul.f32 %v1103, 1.442695
    %v1130 = vpow.pop %v1129
    %v1131 = vmul.f32 %v1104, 1.442695
    %v1132 = vpow.pop %v1131
    %v1133 = vmul.f32 %v1105, 1.442695
    %v1134 = vpow.pop %v1133
    %v1135 = vmul.f32 %v1106, 1.442695
    %v1136 = vpow.pop %v1135
    %v1137 = vmul.f32 %v1107, 1.442695
    %v1138 = vpow.pop %v1137
    %v1139 = vmul.f32 %v1108, 1.442695
    %v1140 = vpow.pop %v1139
    %v1141 = vmul.f32 %v1109, 1.442695
    %v1142 = vpow.pop %v1141
    %v1143 = vmul.f32 %v1110, 1.442695
    %v1144 = vpow.pop %v1143
    %v1145 = vmul.f32 %v1111, 1.442695
    %v1146 = vpow.pop %v1145
    %v1147 = vmul.f32 %v1112, 1.442695
    %v1148 = vpow.pop %v1147
    %v1149 = vmul.f32 %v1113, 1.442695
    %v1150 = vpow.pop %v1149
    %v1151 = vmul.f32 %v1114, 1.442695
    %v1152 = vpow.pop %v1151
    %v1153 = vmul.f32 %v1115, 1.442695
    %v1154 = vpow.pop %v1153
    %v1155 = vmul.f32 %v1116, 1.442695
    %v1156 = vpow.pop %v1155
    %v1157 = vmul.f32 %v1117, 1.442695
    %v1158 = vpow.pop %v1157
    %v1159 = vmul.f32 %v1118, 1.442695
    %v1160 = vpow.pop %v1159
    %v1161 = vmul.f32 %v1119, 1.442695
    %v1162 = vpow.pop %v1161
    %v1163 = vmul.f32 %v1120, 1.442695
    %v1164 = vpow.pop %v1163
    %v1165 = vmul.f32 %v1121, 1.442695
    %v1166 = vpow.pop %v1165
    %v1167 = vmul.f32 %v1122, 1.442695
    %v1168 = vpow.pop %v1167
    %v1169 = vmul.f32 %v1123, 1.442695
    %v1170 = vpow.pop %v1169
    %v1171 = vmul.f32 %v1124, 1.442695
    %v1172 = vpow.pop %v1171
    %v1173 = vmul.f32 %v1125, 1.442695
    %v1174 = vpow.pop %v1173
    %v1175 = vmul.f32 %v1126, 1.442695
    %v1176 = vpow.pop %v1175
    %v1177 = vadd.f32 %v1128, 1.0
    %v1178 = vadd.f32 %v1130, 1.0
    %v1179 = vadd.f32 %v1132, 1.0
    %v1180 = vadd.f32 %v1134, 1.0
    %v1181 = vadd.f32 %v1136, 1.0
    %v1182 = vadd.f32 %v1138, 1.0
    %v1183 = vadd.f32 %v1140, 1.0
    %v1184 = vadd.f32 %v1142, 1.0
    %v1185 = vadd.f32 %v1144, 1.0
    %v1186 = vadd.f32 %v1146, 1.0
    %v1187 = vadd.f32 %v1148, 1.0
    %v1188 = vadd.f32 %v1150, 1.0
    %v1189 = vadd.f32 %v1152, 1.0
    %v1190 = vadd.f32 %v1154, 1.0
    %v1191 = vadd.f32 %v1156, 1.0
    %v1192 = vadd.f32 %v1158, 1.0
    %v1193 = vadd.f32 %v1160, 1.0
    %v1194 = vadd.f32 %v1162, 1.0
    %v1195 = vadd.f32 %v1164, 1.0
    %v1196 = vadd.f32 %v1166, 1.0
    %v1197 = vadd.f32 %v1168, 1.0
    %v1198 = vadd.f32 %v1170, 1.0
    %v1199 = vadd.f32 %v1172, 1.0
    %v1200 = vadd.f32 %v1174, 1.0
    %v1201 = vadd.f32 %v1176, 1.0
    %v1202 = vrcp.pop %v1177
    %v1203 = vmul.f32 1.0, %v1202
    %v1204 = vrcp.pop %v1178
    %v1205 = vmul.f32 1.0, %v1204
    %v1206 = vrcp.pop %v1179
    %v1207 = vmul.f32 1.0, %v1206
    %v1208 = vrcp.pop %v1180
    %v1209 = vmul.f32 1.0, %v1208
    %v1210 = vrcp.pop %v1181
    %v1211 = vmul.f32 1.0, %v1210
    %v1212 = vrcp.pop %v1182
    %v1213 = vmul.f32 1.0, %v1212
    %v1214 = vrcp.pop %v1183
    %v1215 = vmul.f32 1.0, %v1214
    %v1216 = vrcp.pop %v1184
    %v1217 = vmul.f32 1.0, %v1216
    %v1218 = vrcp.pop %v1185
    %v1219 = vmul.f32 1.0, %v1218
    %v1220 = vrcp.pop %v1186
    %v1221 = vmul.f32 1.0, %v1220
    %v1222 = vrcp.pop %v1187
    %v1223 = vmul.f32 1.0, %v1222
    %v1224 = vrcp.pop %v1188
    %v1225 = vmul.f32 1.0, %v1224
    %v1226 = vrcp.pop %v1189
    %v1227 = vmul.f32 1.0, %v1226
    %v1228 = vrcp.pop %v1190
    %v1229 = vmul.f32 1.0, %v1228
    %v1230 = vrcp.pop %v1191
    %v1231 = vmul.f32 1.0, %v1230
    %v1232 = vrcp.pop %v1192
    %v1233 = vmul.f32 1.0, %v1232
    %v1234 = vrcp.pop %v1193
    %v1235 = vmul.f32 1.0, %v1234
    %v1236 = vrcp.pop %v1194
    %v1237 = vmul.f32 1.0, %v1236
    %v1238 = vrcp.pop %v1195
    %v1239 = vmul.f32 1.0, %v1238
    %v1240 = vrcp.pop %v1196
    %v1241 = vmul.f32 1.0, %v1240
    %v1242 = vrcp.pop %v1197
    %v1243 = vmul.f32 1.0, %v1242
    %v1244 = vrcp.pop %v1198
    %v1245 = vmul.f32 1.0, %v1244
    %v1246 = vrcp.pop %v1199
    %v1247 = vmul.f32 1.0, %v1246
    %v1248 = vrcp.pop %v1200
    %v1249 = vmul.f32 1.0, %v1248
    %v1250 = vrcp.pop %v1201
    %v1251 = vmul.f32 1.0, %v1250
    %v1252 = vmul.f32 %v979, %v1203
    %v1253 = vmul.f32 %v984, %v1205
    %v1254 = vmul.f32 %v989, %v1207
    %v1255 = vmul.f32 %v994, %v1209
    %v1256 = vmul.f32 %v999, %v1211
    %v1257 = vmul.f32 %v1004, %v1213
    %v1258 = vmul.f32 %v1009, %v1215
    %v1259 = vmul.f32 %v1014, %v1217
    %v1260 = vmul.f32 %v1019, %v1219
    %v1261 = vmul.f32 %v1024, %v1221
    %v1262 = vmul.f32 %v1029, %v1223
    %v1263 = vmul.f32 %v1034, %v1225
    %v1264 = vmul.f32 %v1039, %v1227
    %v1265 = vmul.f32 %v1044, %v1229
    %v1266 = vmul.f32 %v1049, %v1231
    %v1267 = vmul.f32 %v1054, %v1233
    %v1268 = vmul.f32 %v1059, %v1235
    %v1269 = vmul.f32 %v1064, %v1237
    %v1270 = vmul.f32 %v1069, %v1239
    %v1271 = vmul.f32 %v1074, %v1241
    %v1272 = vmul.f32 %v1079, %v1243
    %v1273 = vmul.f32 %v1084, %v1245
    %v1274 = vmul.f32 %v1089, %v1247
    %v1275 = vmul.f32 %v1094, %v1249
    %v1276 = vmul.f32 %v1099, %v1251
    %v1277 = vld [vmem:[#allocation2 + $0x110] sm:$0xff]
    %v1278 = vld [vmem:[#allocation2 + $0x118] sm:$0xff]
    %v1279 = vld [vmem:[#allocation2 + $0x120] sm:$0xff]
    %v1280 = vld [vmem:[#allocation2 + $0x128] sm:$0xff]
    %v1281 = vld [vmem:[#allocation2 + $0x130] sm:$0xff]
    %v1282 = vld [vmem:[#allocation2 + $0x138] sm:$0xff]
    %v1283 = vld [vmem:[#allocation2 + $0x140] sm:$0xff]
    %v1284 = vld [vmem:[#allocation2 + $0x148] sm:$0xff]
    %v1285 = vld [vmem:[#allocation2 + $0x150] sm:$0xff]
    %v1286 = vld [vmem:[#allocation2 + $0x158] sm:$0xff]
    %v1287 = vld [vmem:[#allocation2 + $0x160] sm:$0xff]
    %v1288 = vld [vmem:[#allocation2 + $0x168] sm:$0xff]
    %v1289 = vld [vmem:[#allocation2 + $0x170] sm:$0xff]
    %v1290 = vld [vmem:[#allocation2 + $0x178] sm:$0xff]
    %v1291 = vld [vmem:[#allocation2 + $0x180] sm:$0xff]
    %v1292 = vld [vmem:[#allocation2 + $0x188] sm:$0xff]
    %v1293 = vld [vmem:[#allocation2 + $0x190] sm:$0x1]
    %v1294 = vlaneseq
    %v1295 = vshrl.u32 %v1294, 7
    %v1296 = vsub.s32 0, %v1295
    %v1297 = vrot.slane %v1293, %v1296
    %1298 = vmatprep.subr.mxu0 0.0
    %1299 = vmatpush1.msra.mxu0 %v1277
    %1300 = vmatprep.subr.mxu0 0.0
    %1301 = vmatpush1.msra.mxu0 %v1278
    %1302 = vmatprep.subr.mxu0 0.0
    %1303 = vmatpush1.msra.mxu0 %v1279
    %1304 = vmatprep.subr.mxu0 0.0
    %1305 = vmatpush1.msra.mxu0 %v1280
    %1306 = vmatprep.subr.mxu0 0.0
    %1307 = vmatpush1.msra.mxu0 %v1281
    %1308 = vmatprep.subr.mxu0 0.0
    %1309 = vmatpush1.msra.mxu0 %v1282
    %1310 = vmatprep.subr.mxu0 0.0
    %1311 = vmatpush1.msra.mxu0 %v1283
    %1312 = vmatprep.subr.mxu0 0.0
    %1313 = vmatpush1.msra.mxu0 %v1284
    %1314 = vmatprep.subr.mxu0 0.0
    %1315 = vmatpush1.msra.mxu0 %v1285
    %1316 = vmatprep.subr.mxu0 0.0
    %1317 = vmatpush1.msra.mxu0 %v1286
    %1318 = vmatprep.subr.mxu0 0.0
    %1319 = vmatpush1.msra.mxu0 %v1287
    %1320 = vmatprep.subr.mxu0 0.0
    %1321 = vmatpush1.msra.mxu0 %v1288
    %1322 = vmatprep.subr.mxu0 0.0
    %1323 = vmatpush1.msra.mxu0 %v1289
    %1324 = vmatprep.subr.mxu0 0.0
    %1325 = vmatpush1.msra.mxu0 %v1290
    %1326 = vmatprep.subr.mxu0 0.0
    %1327 = vmatpush1.msra.mxu0 %v1291
    %1328 = vmatprep.subr.mxu0 0.0
    %1329 = vmatpush1.msra.mxu0 %v1292
    %1330 = vmatprep.subr.mxu0 0.0
    %1331 = vmatpush1.msra.mxu0 0.0
    %1332 = vmatprep.subr.mxu0 0.0
    %1333 = vmatpush1.msra.mxu0 0.0
    %1334 = vmatprep.subr.mxu0 0.0
    %1335 = vmatpush1.msra.mxu0 0.0
    %1336 = vmatprep.subr.mxu0 0.0
    %1337 = vmatpush1.msra.mxu0 0.0
    %1338 = vmatprep.subr.mxu0 0.0
    %1339 = vmatpush1.msra.mxu0 0.0
    %1340 = vmatprep.subr.mxu0 0.0
    %1341 = vmatpush1.msra.mxu0 0.0
    %1342 = vmatprep.subr.mxu0 0.0
    %1343 = vmatpush1.msra.mxu0 0.0
    %1344 = vmatprep.subr.mxu0 0.0
    %1345 = vmatpush1.msra.mxu0 0.0
    %1346 = vmatprep.subr.mxu0 0.0
    %1347 = vmatpush1.msra.mxu0 0.0
    %1348 = vmatprep.subr.mxu0 0.0
    %1349 = vmatpush1.msra.mxu0 0.0
    %1350 = vmatprep.subr.mxu0 0.0
    %1351 = vmatpush1.msra.mxu0 0.0
    %1352 = vmatprep.subr.mxu0 0.0
    %1353 = vmatpush1.msra.mxu0 0.0
    %1354 = vmatprep.subr.mxu0 0.0
    %1355 = vmatpush1.msra.mxu0 0.0
    %1356 = vmatprep.subr.mxu0 0.0
    %1357 = vmatpush1.msra.mxu0 0.0
    %1358 = vmatprep.subr.mxu0 0.0
    %1359 = vmatpush1.msra.mxu0 0.0
    %1360 = vmatprep.subr.mxu0 0.0
    %1361 = vmatpush1.msra.mxu0 0.0
    %1362 = vmatprep.mubr.f32.mxu0 0.0
    %1363 = vmatmul.mubr.f32.gmra.mrb[0].mxu0 %v1252
    %v1364 = vpop.f32.mrb[0].mxu0
    %v1365 = vadd.f32 %v1297, %v1364
    %v1366 = vpop.f32.mrb[0].mxu0
    %1367 = vmatprep.mubr.f32.mxu0 0.0
    %1368 = vmatmul.mubr.f32.gmra.mrb[0].mxu0 %v1253
    %v1369 = vpop.f32.mrb[0].mxu0
    %v1370 = vadd.f32 %v1297, %v1369
    %v1371 = vpop.f32.mrb[0].mxu0
    %1372 = vmatprep.mubr.f32.mxu0 0.0
    %1373 = vmatmul.mubr.f32.gmra.mrb[0].mxu0 %v1254
    %v1374 = vpop.f32.mrb[0].mxu0
    %v1375 = vadd.f32 %v1297, %v1374
    %v1376 = vpop.f32.mrb[0].mxu0
    %1377 = vmatprep.mubr.f32.mxu0 0.0
    %1378 = vmatmul.mubr.f32.gmra.mrb[0].mxu0 %v1255
    %v1379 = vpop.f32.mrb[0].mxu0
    %v1380 = vadd.f32 %v1297, %v1379
    %v1381 = vpop.f32.mrb[0].mxu0
    %1382 = vmatprep.mubr.f32.mxu0 0.0
    %1383 = vmatmul.mubr.f32.gmra.mrb[0].mxu0 %v1256
    %v1384 = vpop.f32.mrb[0].mxu0
    %v1385 = vadd.f32 %v1297, %v1384
    %v1386 = vpop.f32.mrb[0].mxu0
    %1387 = vmatprep.mubr.f32.mxu0 0.0
    %1388 = vmatmul.mubr.f32.gmra.mrb[0].mxu0 %v1257
    %v1389 = vpop.f32.mrb[0].mxu0
    %v1390 = vadd.f32 %v1297, %v1389
    %v1391 = vpop.f32.mrb[0].mxu0
    %1392 = vmatprep.mubr.f32.mxu0 0.0
    %1393 = vmatmul.mubr.f32.gmra.mrb[0].mxu0 %v1258
    %v1394 = vpop.f32.mrb[0].mxu0
    %v1395 = vadd.f32 %v1297, %v1394
    %v1396 = vpop.f32.mrb[0].mxu0
    %1397 = vmatprep.mubr.f32.mxu0 0.0
    %1398 = vmatmul.mubr.f32.gmra.mrb[0].mxu0 %v1259
    %v1399 = vpop.f32.mrb[0].mxu0
    %v1400 = vadd.f32 %v1297, %v1399
    %v1401 = vpop.f32.mrb[0].mxu0
    %1402 = vmatprep.mubr.f32.mxu0 0.0
    %1403 = vmatmul.mubr.f32.gmra.mrb[0].mxu0 %v1260
    %v1404 = vpop.f32.mrb[0].mxu0
    %v1405 = vadd.f32 %v1297, %v1404
    %v1406 = vpop.f32.mrb[0].mxu0
    %1407 = vmatprep.mubr.f32.mxu0 0.0
    %1408 = vmatmul.mubr.f32.gmra.mrb[0].mxu0 %v1261
    %v1409 = vpop.f32.mrb[0].mxu0
    %v1410 = vadd.f32 %v1297, %v1409
    %v1411 = vpop.f32.mrb[0].mxu0
    %1412 = vmatprep.mubr.f32.mxu0 0.0
    %1413 = vmatmul.mubr.f32.gmra.mrb[0].mxu0 %v1262
    %v1414 = vpop.f32.mrb[0].mxu0
    %v1415 = vadd.f32 %v1297, %v1414
    %v1416 = vpop.f32.mrb[0].mxu0
    %1417 = vmatprep.mubr.f32.mxu0 0.0
    %1418 = vmatmul.mubr.f32.gmra.mrb[0].mxu0 %v1263
    %v1419 = vpop.f32.mrb[0].mxu0
    %v1420 = vadd.f32 %v1297, %v1419
    %v1421 = vpop.f32.mrb[0].mxu0
    %1422 = vmatprep.mubr.f32.mxu0 0.0
    %1423 = vmatmul.mubr.f32.gmra.mrb[0].mxu0 %v1264
    %v1424 = vpop.f32.mrb[0].mxu0
    %v1425 = vadd.f32 %v1297, %v1424
    %v1426 = vpop.f32.mrb[0].mxu0
    %1427 = vmatprep.mubr.f32.mxu0 0.0
    %1428 = vmatmul.mubr.f32.gmra.mrb[0].mxu0 %v1265
    %v1429 = vpop.f32.mrb[0].mxu0
    %v1430 = vadd.f32 %v1297, %v1429
    %v1431 = vpop.f32.mrb[0].mxu0
    %1432 = vmatprep.mubr.f32.mxu0 0.0
    %1433 = vmatmul.mubr.f32.gmra.mrb[0].mxu0 %v1266
    %v1434 = vpop.f32.mrb[0].mxu0
    %v1435 = vadd.f32 %v1297, %v1434
    %v1436 = vpop.f32.mrb[0].mxu0
    %1437 = vmatprep.mubr.f32.mxu0 0.0
    %1438 = vmatmul.mubr.f32.gmra.mrb[0].mxu0 %v1267
    %v1439 = vpop.f32.mrb[0].mxu0
    %v1440 = vadd.f32 %v1297, %v1439
    %v1441 = vpop.f32.mrb[0].mxu0
    %1442 = vmatprep.mubr.f32.mxu0 0.0
    %1443 = vmatmul.mubr.f32.gmra.mrb[0].mxu0 %v1268
    %v1444 = vpop.f32.mrb[0].mxu0
    %v1445 = vadd.f32 %v1297, %v1444
    %v1446 = vpop.f32.mrb[0].mxu0
    %1447 = vmatprep.mubr.f32.mxu0 0.0
    %1448 = vmatmul.mubr.f32.gmra.mrb[0].mxu0 %v1269
    %v1449 = vpop.f32.mrb[0].mxu0
    %v1450 = vadd.f32 %v1297, %v1449
    %v1451 = vpop.f32.mrb[0].mxu0
    %1452 = vmatprep.mubr.f32.mxu0 0.0
    %1453 = vmatmul.mubr.f32.gmra.mrb[0].mxu0 %v1270
    %v1454 = vpop.f32.mrb[0].mxu0
    %v1455 = vadd.f32 %v1297, %v1454
    %v1456 = vpop.f32.mrb[0].mxu0
    %1457 = vmatprep.mubr.f32.mxu0 0.0
    %1458 = vmatmul.mubr.f32.gmra.mrb[0].mxu0 %v1271
    %v1459 = vpop.f32.mrb[0].mxu0
    %v1460 = vadd.f32 %v1297, %v1459
    %v1461 = vpop.f32.mrb[0].mxu0
    %1462 = vmatprep.mubr.f32.mxu0 0.0
    %1463 = vmatmul.mubr.f32.gmra.mrb[0].mxu0 %v1272
    %v1464 = vpop.f32.mrb[0].mxu0
    %v1465 = vadd.f32 %v1297, %v1464
    %v1466 = vpop.f32.mrb[0].mxu0
    %1467 = vmatprep.mubr.f32.mxu0 0.0
    %1468 = vmatmul.mubr.f32.gmra.mrb[0].mxu0 %v1273
    %v1469 = vpop.f32.mrb[0].mxu0
    %v1470 = vadd.f32 %v1297, %v1469
    %v1471 = vpop.f32.mrb[0].mxu0
    %1472 = vmatprep.mubr.f32.mxu0 0.0
    %1473 = vmatmul.mubr.f32.gmra.mrb[0].mxu0 %v1274
    %v1474 = vpop.f32.mrb[0].mxu0
    %v1475 = vadd.f32 %v1297, %v1474
    %v1476 = vpop.f32.mrb[0].mxu0
    %1477 = vmatprep.mubr.f32.mxu0 0.0
    %1478 = vmatmul.mubr.f32.gmra.mrb[0].mxu0 %v1275
    %v1479 = vpop.f32.mrb[0].mxu0
    %v1480 = vadd.f32 %v1297, %v1479
    %v1481 = vpop.f32.mrb[0].mxu0
    %1482 = vmatprep.mubr.f32.mxu0 0.0
    %1483 = vmatmul.mubr.f32.gmra.mrb[0].mxu0 %v1276
    %v1484 = vpop.f32.mrb[0].mxu0
    %v1485 = vadd.f32 %v1297, %v1484
    %v1486 = vpop.f32.mrb[0].mxu0
    %1487 = vdwg.mxu0
    %1488 = vst [vmem:[#allocation5] sm:$0xff] %v1365
    %1489 = vst [vmem:[#allocation5 + $0x8] sm:$0xff] %v1370
    %1490 = vst [vmem:[#allocation5 + $0x10] sm:$0xff] %v1375
    %1491 = vst [vmem:[#allocation5 + $0x18] sm:$0xff] %v1380
    %1492 = vst [vmem:[#allocation5 + $0x20] sm:$0xff] %v1385
    %1493 = vst [vmem:[#allocation5 + $0x28] sm:$0xff] %v1390
    %1494 = vst [vmem:[#allocation5 + $0x30] sm:$0xff] %v1395
    %1495 = vst [vmem:[#allocation5 + $0x38] sm:$0xff] %v1400
    %1496 = vst [vmem:[#allocation5 + $0x40] sm:$0xff] %v1405
    %1497 = vst [vmem:[#allocation5 + $0x48] sm:$0xff] %v1410
    %1498 = vst [vmem:[#allocation5 + $0x50] sm:$0xff] %v1415
    %1499 = vst [vmem:[#allocation5 + $0x58] sm:$0xff] %v1420
    %1500 = vst [vmem:[#allocation5 + $0x60] sm:$0xff] %v1425
    %1501 = vst [vmem:[#allocation5 + $0x68] sm:$0xff] %v1430
    %1502 = vst [vmem:[#allocation5 + $0x70] sm:$0xff] %v1435
    %1503 = vst [vmem:[#allocation5 + $0x78] sm:$0xff] %v1440
    %1504 = vst [vmem:[#allocation5 + $0x80] sm:$0xff] %v1445
    %1505 = vst [vmem:[#allocation5 + $0x88] sm:$0xff] %v1450
    %1506 = vst [vmem:[#allocation5 + $0x90] sm:$0xff] %v1455
    %1507 = vst [vmem:[#allocation5 + $0x98] sm:$0xff] %v1460
    %1508 = vst [vmem:[#allocation5 + $0xa0] sm:$0xff] %v1465
    %1509 = vst [vmem:[#allocation5 + $0xa8] sm:$0xff] %v1470
    %1510 = vst [vmem:[#allocation5 + $0xb0] sm:$0xff] %v1475
    %1511 = vst [vmem:[#allocation5 + $0xb8] sm:$0xff] %v1480
    %1512 = vst [vmem:[#allocation5 + $0xc0] sm:$0xff] %v1485
    // Predicated region
    $region18: #{tpu_custom_call.1} parent=1 // pred_check
      _
    $region19: #{tpu_custom_call.1} parent=1 // pred_check_branch
      %1514 = sbr.rel (0) target = $region21
    $region20: #{tpu_custom_call.1} parent=1 // pred_region
      %s1516 = ssub.s32 3200, 3200
      %1517 = vsyncadd [#allocation4], %s1516
      %s1518 = sshll.u32 [#allocation5], 4
      %s1519 = int_to_ptr.vmem [resolvable:$true] %s1518
      %1524 = dma.vmem_to_hbm [thread:$0]  %s1519, 3200, %s3, [#allocation4], 128, 128, 8
    $region21: #{tpu_custom_call.1} parent=1 // pred_fallthru
      _
    // Predicated region
    $region22: #{tpu_custom_call.1} parent=1 // pred_check
      _
    $region23: #{tpu_custom_call.1} parent=1 // pred_check_branch
      %1526 = sbr.rel (0) target = $region25
    $region24: #{tpu_custom_call.1} parent=1 // pred_region
      %1527 = dma.done [#allocation4], 3200
    $region25: #{tpu_custom_call.1} parent=1 // pred_fallthru
      _
    %1528 = vsyncpa [#allocation3], 1
    %1529 = vsyncpa [#allocation4], 1

</llo_original>
